<compile_context>
chip_gen: v7x
topology: tpu7x:2x2x1
jax: 0.10.0
libtpu: 0.0.40
codegen_flags: <defaults>
</compile_context>

<pallas_src>
import functools

import jax
import jax.numpy as jnp
from jax.experimental import pallas as pl
from jax.experimental.pallas import tpu as pltpu


# ----------------------------------------------------------------------------
# Pallas kernels
# ----------------------------------------------------------------------------
def conv_bias_lrelu_kernel(p_ref, w_ref, b_ref, o_ref, *, neg_slope):
    """One M-tile of: o = leaky_relu(patches @ w + b)."""
    y = jnp.dot(p_ref[...], w_ref[...], preferred_element_type=jnp.float32)
    y = y + b_ref[...]                       # (1, N) broadcasts over rows
    o_ref[...] = jnp.where(y > 0, y, neg_slope * y)


def conv_bn_lrelu_kernel(p_ref, w_ref, b_ref, g_ref, be_ref, o_ref, acc_ref,
                         *, eps, neg_slope):
    """Fused conv-as-matmul + bias + train-mode BatchNorm + leaky_relu.

    Grid axis 0 tiles the contraction dim K ("arbitrary").  The full (M, Cout)
    accumulator lives in VMEM scratch; batch statistics are computed from it
    on the last K step, so the pre-BN activation never touches HBM.
    """
    k = pl.program_id(0)

    @pl.when(k == 0)
    def _():
        acc_ref[...] = jnp.zeros_like(acc_ref)

    acc_ref[...] += jnp.dot(p_ref[...], w_ref[...],
                            preferred_element_type=jnp.float32)

    @pl.when(k == pl.num_programs(0) - 1)
    def _():
        y = acc_ref[...] + b_ref[...]
        # Training-mode BN over the batch axis (M = N*H*W), biased variance.
        mean = jnp.mean(y, axis=0, keepdims=True)
        var = jnp.maximum(jnp.mean(y * y, axis=0, keepdims=True) - mean * mean,
                          0.0)
        inv = jax.lax.rsqrt(var + eps)
        z = (y - mean) * inv * g_ref[...] + be_ref[...]
        o_ref[...] = jnp.where(z > 0, z, neg_slope * z)


# ----------------------------------------------------------------------------
# Pallas wrappers
# ----------------------------------------------------------------------------
_VMEM_LIMIT = 32 * 1024 * 1024


def _pick_tile(dim, candidates=(512, 256, 128)):
    for c in candidates:
        if dim % c == 0:
            return c
    return dim


def pallas_conv_bias_lrelu(patches, w, b, neg_slope=0.2):
    """conv1: leaky_relu(patches @ w + b), M-tiled, pipelined, parallel grid."""
    M, K = patches.shape
    _, N = w.shape
    tm = _pick_tile(M)
    kern = functools.partial(conv_bias_lrelu_kernel, neg_slope=neg_slope)
    cost = pl.CostEstimate(flops=2 * M * K * N,
                           transcendentals=0,
                           bytes_accessed=(M * K + K * N + M * N + N) * 4)
    return pl.pallas_call(
        kern,
        out_shape=jax.ShapeDtypeStruct((M, N), jnp.float32),
        grid=(M // tm,),
        in_specs=[
            pl.BlockSpec((tm, K), lambda i: (i, 0)),   # patch rows: tiled on M
            pl.BlockSpec((K, N), lambda i: (0, 0)),    # weights: DMA'd once
            pl.BlockSpec((1, N), lambda i: (0, 0)),    # bias:    DMA'd once
        ],
        out_specs=pl.BlockSpec((tm, N), lambda i: (i, 0)),
        compiler_params=pltpu.CompilerParams(
            dimension_semantics=("parallel",),
            vmem_limit_bytes=_VMEM_LIMIT),
        cost_estimate=cost,
    )(patches, w, b)


def pallas_conv_bn_lrelu(patches, w, b, gamma, beta, eps=1e-5, neg_slope=0.2):
    """conv2/conv3: fused matmul + bias + BatchNorm(train) + leaky_relu.

    Full M block is kept resident (exact batch statistics); the contraction
    dim K is tiled over the grid and accumulated into VMEM scratch.
    NOTE: for much larger M*Cout (> ~20 MiB, e.g. v7x with big batches) this
    would need a two-pass sum/sumsq scheme instead of a single resident block.
    """
    M, K = patches.shape
    _, N = w.shape
    tk = _pick_tile(K)
    kern = functools.partial(conv_bn_lrelu_kernel, eps=eps, neg_slope=neg_slope)
    cost = pl.CostEstimate(flops=2 * M * K * N + 10 * M * N,
                           transcendentals=N,
                           bytes_accessed=(M * K + K * N + M * N + 3 * N) * 4)
    return pl.pallas_call(
        kern,
        out_shape=jax.ShapeDtypeStruct((M, N), jnp.float32),
        grid=(K // tk,),
        in_specs=[
            pl.BlockSpec((M, tk), lambda k: (0, k)),   # patch cols: tiled on K
            pl.BlockSpec((tk, N), lambda k: (k, 0)),   # weight rows: tiled on K
            pl.BlockSpec((1, N), lambda k: (0, 0)),    # bias
            pl.BlockSpec((1, N), lambda k: (0, 0)),    # gamma
            pl.BlockSpec((1, N), lambda k: (0, 0)),    # beta
        ],
        out_specs=pl.BlockSpec((M, N), lambda k: (0, 0)),
        scratch_shapes=[pltpu.VMEM((M, N), jnp.float32)],
        compiler_params=pltpu.CompilerParams(
            dimension_semantics=("arbitrary",),
            vmem_limit_bytes=_VMEM_LIMIT),
        cost_estimate=cost,
    )(patches, w, b, gamma, beta)


# ----------------------------------------------------------------------------
# Glue: im2col (NHWC) for a k=4, s=2, p=1 conv, and weight re-layout
# ----------------------------------------------------------------------------
def im2col(x_nhwc, k=4, s=2, p=1):
    N, H, W, C = x_nhwc.shape
    xp = jnp.pad(x_nhwc, ((0, 0), (p, p), (p, p), (0, 0)))
    OH = (H + 2 * p - k) // s + 1
    OW = (W + 2 * p - k) // s + 1
    cols = []
    for i in range(k):
        for j in range(k):
            cols.append(xp[:, i:i + s * OH:s, j:j + s * OW:s, :])  # (N,OH,OW,C)
    patches = jnp.stack(cols, axis=3)                   # (N, OH, OW, k*k, C)
    return patches.reshape(N * OH * OW, k * k * C), OH, OW


def conv_w_to_matmul(w_oihw):
    """(Cout, Cin, KH, KW) -> (KH*KW*Cin, Cout) matching im2col patch order."""
    Cout, Cin, KH, KW = w_oihw.shape
    return jnp.transpose(w_oihw, (2, 3, 1, 0)).reshape(KH * KW * Cin, Cout)


# ----------------------------------------------------------------------------
# Discriminator forward
# ----------------------------------------------------------------------------
def conv_step(sz, k=4, s=2, p=1):
    return (sz + 2 * p - k) // s + 1


def init_params(key, conv_dim, num_classes=1):
    ks = jax.random.split(key, 10)
    cd = conv_dim
    img = conv_step(conv_step(conv_step(conv_dim)))
    p = {
        "w1": jax.random.normal(ks[0], (cd, 3, 4, 4), jnp.float32) * 0.05,
        "b1": jax.random.normal(ks[1], (cd,), jnp.float32) * 0.05,
        "w2": jax.random.normal(ks[2], (cd * 2, cd, 4, 4), jnp.float32) * 0.05,
        "b2": jax.random.normal(ks[3], (cd * 2,), jnp.float32) * 0.05,
        "w3": jax.random.normal(ks[4], (cd * 4, cd * 2, 4, 4), jnp.float32) * 0.05,
        "b3": jax.random.normal(ks[5], (cd * 4,), jnp.float32) * 0.05,
        "g2": jnp.ones((cd * 2,), jnp.float32),
        "be2": jnp.zeros((cd * 2,), jnp.float32),
        "g3": jnp.ones((cd * 4,), jnp.float32),
        "be3": jnp.zeros((cd * 4,), jnp.float32),
        "wfc": jax.random.normal(ks[6],
                                 (num_classes, img * img * cd * 4),
                                 jnp.float32) * 0.05,
        "bfc": jax.random.normal(ks[7], (num_classes,), jnp.float32) * 0.05,
    }
    return p


def discriminator_forward(params, x_nchw, conv_dim, num_classes=1):
    N = x_nchw.shape[0]
    x = jnp.transpose(x_nchw, (0, 2, 3, 1)).astype(jnp.float32)  # NCHW -> NHWC

    # --- conv1 + leaky_relu(0.2): pad Cin 3 -> 8 so K = 4*4*8 = 128 ---------
    x = jnp.pad(x, ((0, 0), (0, 0), (0, 0), (0, 5)))
    w1 = jnp.pad(params["w1"], ((0, 0), (0, 5), (0, 0), (0, 0)))
    pat, oh, ow = im2col(x)
    a1 = pallas_conv_bias_lrelu(pat, conv_w_to_matmul(w1),
                                params["b1"].reshape(1, -1))
    a1 = a1.reshape(N, oh, ow, conv_dim)

    # --- conv2 -> BN(train) -> leaky_relu(0.2), fused in one kernel ---------
    pat, oh, ow = im2col(a1)
    a2 = pallas_conv_bn_lrelu(pat, conv_w_to_matmul(params["w2"]),
                              params["b2"].reshape(1, -1),
                              params["g2"].reshape(1, -1),
                              params["be2"].reshape(1, -1))
    a2 = a2.reshape(N, oh, ow, conv_dim * 2)

    # --- conv3 -> BN(train) -> leaky_relu(0.2), fused in one kernel ---------
    pat, oh, ow = im2col(a2)
    a3 = pallas_conv_bn_lrelu(pat, conv_w_to_matmul(params["w3"]),
                              params["b3"].reshape(1, -1),
                              params["g3"].reshape(1, -1),
                              params["be3"].reshape(1, -1))

    # --- flatten exactly like PyTorch's NCHW .view(): permute the FC weight
    # from (C,H,W) order to the NHWC (H,W,C) flatten order of a3.  The FC
    # itself (M=N, K=oh*ow*C3, N=1) is left to XLA: no MXU benefit, a
    # pallas_call launch would cost more than the compute.
    C3 = conv_dim * 4
    x_flat = a3.reshape(N, oh * ow * C3)                       # (N, H*W*C)
    wfc = params["wfc"].reshape(num_classes, C3, oh, ow)
    wfc = jnp.transpose(wfc, (0, 2, 3, 1)).reshape(num_classes, oh * ow * C3)
    out = x_flat @ wfc.T + params["bfc"].reshape(1, -1)
    return out                                                 # (N, num_classes)


# ----------------------------------------------------------------------------
if __name__ == "__main__":
    CONV_DIM = 32          # module default: image_size == conv_dim -> 32x32x3
    NUM_CLASSES = 1
    BATCH = 4

    key = jax.random.PRNGKey(0)
    k_param, k_x = jax.random.split(key)
    params = init_params(k_param, CONV_DIM, NUM_CLASSES)
    x = jax.random.normal(k_x, (BATCH, 3, CONV_DIM, CONV_DIM), jnp.float32)

    fwd = jax.jit(functools.partial(discriminator_forward,
                                    conv_dim=CONV_DIM,
                                    num_classes=NUM_CLASSES))
    out = fwd(params, x)
    out = jax.block_until_ready(out)
    assert out.shape == (BATCH, NUM_CLASSES), out.shape
    assert jnp.all(jnp.isfinite(out))
    print("KERNEL_OK")
</pallas_src>

<mosaic_0001>
module attributes {stable_mosaic.version = 11 : i64} {
  func.func @conv_bias_lrelu_kernel(%arg0: i32, %arg1: memref<512x128xf32, #tpu.memory_space<vmem>>, %arg2: memref<128x32xf32, #tpu.memory_space<vmem>>, %arg3: memref<1x32xf32, #tpu.memory_space<vmem>>, %arg4: memref<512x32xf32, #tpu.memory_space<vmem>>) attributes {dimension_semantics = [#tpu.dimension_semantics<parallel>], iteration_bounds = array<i64: 2>, scalar_prefetch = 0 : i64, scratch_operands = 0 : i64, tpu.core_type = #tpu.core_type<tc>, window_params = [{transform_indices = @transform_0, window_bounds = array<i64: 512, 128>}, {pipeline_mode = #tpu.pipeline_mode<synchronous>, transform_indices = @transform_1, window_bounds = array<i64: 128, 32>}, {pipeline_mode = #tpu.pipeline_mode<synchronous>, transform_indices = @transform_2, window_bounds = array<i64: 1, 32>}, {transform_indices = @transform_3, window_bounds = array<i64: 512, 32>}]} {
    %c0 = arith.constant 0 : index
    %c0_0 = arith.constant 0 : index
    %0 = vector.load %arg1[%c0, %c0_0] : memref<512x128xf32, #tpu.memory_space<vmem>>, vector<512x128xf32>
    %c0_1 = arith.constant 0 : index
    %c0_2 = arith.constant 0 : index
    %1 = vector.load %arg2[%c0_1, %c0_2] : memref<128x32xf32, #tpu.memory_space<vmem>>, vector<128x32xf32>
    %cst = arith.constant dense<0.000000e+00> : vector<512x32xf32>
    %2 = tpu.matmul %0, %1, %cst {dimension_numbers = #tpu.dot_dimension_numbers<[1], [0], [0], [1], [0, 0, 1, 1], [], []>} : vector<512x128xf32>, vector<128x32xf32>, vector<512x32xf32> -> vector<512x32xf32>
    %c0_3 = arith.constant 0 : index
    %c0_4 = arith.constant 0 : index
    %3 = vector.load %arg3[%c0_3, %c0_4] : memref<1x32xf32, #tpu.memory_space<vmem>>, vector<1x32xf32>
    %4 = vector.broadcast %3 : vector<1x32xf32> to vector<512x32xf32>
    %5 = arith.addf %2, %4 : vector<512x32xf32>
    %cst_5 = arith.constant 0.000000e+00 : f32
    %6 = vector.broadcast %cst_5 : f32 to vector<512x32xf32>
    %7 = arith.cmpf ogt, %5, %6 : vector<512x32xf32>
    %cst_6 = arith.constant 2.000000e-01 : f32
    %8 = vector.broadcast %cst_6 : f32 to vector<512x32xf32>
    %9 = arith.mulf %8, %5 : vector<512x32xf32>
    %10 = arith.select %7, %5, %9 : vector<512x32xi1>, vector<512x32xf32>
    %c0_7 = arith.constant 0 : index
    %c0_8 = arith.constant 0 : index
    %11 = vector.load %arg4[%c0_7, %c0_8] : memref<512x32xf32, #tpu.memory_space<vmem>>, vector<512x32xf32>
    tpu.vector_store %arg4[%c0_7, %c0_8], %10 {strides = array<i32>} : memref<512x32xf32, #tpu.memory_space<vmem>>, vector<512x32xf32>,
    return
  }
  func.func @transform_0(%arg0: i32) -> (i32, i32) {
    %c0_i32 = arith.constant 0 : i32
    %c0_i32_0 = arith.constant 0 : i32
    return %arg0, %c0_i32 : i32, i32
  }
  func.func @transform_1(%arg0: i32) -> (i32, i32) {
    %c0_i32 = arith.constant 0 : i32
    %c0_i32_0 = arith.constant 0 : i32
    %c0_i32_1 = arith.constant 0 : i32
    return %c0_i32, %c0_i32_0 : i32, i32
  }
  func.func @transform_2(%arg0: i32) -> (i32, i32) {
    %c0_i32 = arith.constant 0 : i32
    %c0_i32_0 = arith.constant 0 : i32
    %c0_i32_1 = arith.constant 0 : i32
    return %c0_i32, %c0_i32_0 : i32, i32
  }
  func.func @transform_3(%arg0: i32) -> (i32, i32) {
    %c0_i32 = arith.constant 0 : i32
    %c0_i32_0 = arith.constant 0 : i32
    return %arg0, %c0_i32 : i32, i32
  }
}

module attributes {stable_mosaic.version = 11 : i64} {
  func.func @conv_bn_lrelu_kernel(%arg0: i32, %arg1: memref<256x512xf32, #tpu.memory_space<vmem>>, %arg2: memref<512x64xf32, #tpu.memory_space<vmem>>, %arg3: memref<1x64xf32, #tpu.memory_space<vmem>>, %arg4: memref<1x64xf32, #tpu.memory_space<vmem>>, %arg5: memref<1x64xf32, #tpu.memory_space<vmem>>, %arg6: memref<256x64xf32, #tpu.memory_space<vmem>>, %arg7: memref<256x64xf32, #tpu.memory_space<vmem>>) attributes {dimension_semantics = [#tpu.dimension_semantics<arbitrary>], iteration_bounds = array<i64: 1>, scalar_prefetch = 0 : i64, scratch_operands = 1 : i64, tpu.core_type = #tpu.core_type<tc>, window_params = [{transform_indices = @transform_0, window_bounds = array<i64: 256, 512>}, {transform_indices = @transform_1, window_bounds = array<i64: 512, 64>}, {pipeline_mode = #tpu.pipeline_mode<synchronous>, transform_indices = @transform_2, window_bounds = array<i64: 1, 64>}, {pipeline_mode = #tpu.pipeline_mode<synchronous>, transform_indices = @transform_3, window_bounds = array<i64: 1, 64>}, {pipeline_mode = #tpu.pipeline_mode<synchronous>, transform_indices = @transform_4, window_bounds = array<i64: 1, 64>}, {pipeline_mode = #tpu.pipeline_mode<synchronous>, transform_indices = @transform_5, window_bounds = array<i64: 256, 64>}]} {
    %c0_i32 = arith.constant 0 : i32
    %0 = arith.cmpi eq, %arg0, %c0_i32 : i32
    %1 = arith.extui %0 : i1 to i32
    %c0_i32_0 = arith.constant 0 : i32
    %2 = arith.cmpi ne, %1, %c0_i32_0 : i32
    scf.if %2 {
      %cst_10 = arith.constant 0.000000e+00 : f32
      %12 = vector.broadcast %cst_10 : f32 to vector<256x64xf32>
      %c0_11 = arith.constant 0 : index
      %c0_12 = arith.constant 0 : index
      %13 = vector.load %arg7[%c0_11, %c0_12] : memref<256x64xf32, #tpu.memory_space<vmem>>, vector<256x64xf32>
      tpu.vector_store %arg7[%c0_11, %c0_12], %12 {strides = array<i32>} : memref<256x64xf32, #tpu.memory_space<vmem>>, vector<256x64xf32>,
    } else {
    }
    %c0 = arith.constant 0 : index
    %c0_1 = arith.constant 0 : index
    %3 = vector.load %arg7[%c0, %c0_1] : memref<256x64xf32, #tpu.memory_space<vmem>>, vector<256x64xf32>
    %c0_2 = arith.constant 0 : index
    %c0_3 = arith.constant 0 : index
    %4 = vector.load %arg1[%c0_2, %c0_3] : memref<256x512xf32, #tpu.memory_space<vmem>>, vector<256x512xf32>
    %c0_4 = arith.constant 0 : index
    %c0_5 = arith.constant 0 : index
    %5 = vector.load %arg2[%c0_4, %c0_5] : memref<512x64xf32, #tpu.memory_space<vmem>>, vector<512x64xf32>
    %cst = arith.constant dense<0.000000e+00> : vector<256x64xf32>
    %6 = tpu.matmul %4, %5, %cst {dimension_numbers = #tpu.dot_dimension_numbers<[1], [0], [0], [1], [0, 0, 1, 1], [], []>} : vector<256x512xf32>, vector<512x64xf32>, vector<256x64xf32> -> vector<256x64xf32>
    %7 = arith.addf %3, %6 : vector<256x64xf32>
    %c0_6 = arith.constant 0 : index
    %c0_7 = arith.constant 0 : index
    %8 = vector.load %arg7[%c0_6, %c0_7] : memref<256x64xf32, #tpu.memory_space<vmem>>, vector<256x64xf32>
    tpu.vector_store %arg7[%c0_6, %c0_7], %7 {strides = array<i32>} : memref<256x64xf32, #tpu.memory_space<vmem>>, vector<256x64xf32>,
    %c0_i32_8 = arith.constant 0 : i32
    %9 = arith.cmpi eq, %arg0, %c0_i32_8 : i32
    %10 = arith.extui %9 : i1 to i32
    %c0_i32_9 = arith.constant 0 : i32
    %11 = arith.cmpi ne, %10, %c0_i32_9 : i32
    scf.if %11 {
      %c0_10 = arith.constant 0 : index
      %c0_11 = arith.constant 0 : index
      %12 = vector.load %arg7[%c0_10, %c0_11] : memref<256x64xf32, #tpu.memory_space<vmem>>, vector<256x64xf32>
      %c0_12 = arith.constant 0 : index
      %c0_13 = arith.constant 0 : index
      %13 = vector.load %arg3[%c0_12, %c0_13] : memref<1x64xf32, #tpu.memory_space<vmem>>, vector<1x64xf32>
      %14 = vector.broadcast %13 : vector<1x64xf32> to vector<256x64xf32>
      %15 = arith.addf %12, %14 : vector<256x64xf32>
      %cst_14 = arith.constant dense<0.000000e+00> : vector<64xf32>
      %16 = vector.multi_reduction <add>, %15, %cst_14 [0] : vector<256x64xf32> to vector<64xf32>
      %17 = vector.shape_cast %16 : vector<64xf32> to vector<1x64xf32>
      %cst_15 = arith.constant 2.560000e+02 : f32
      %18 = vector.broadcast %cst_15 : f32 to vector<1x64xf32>
      %19 = arith.divf %17, %18 : vector<1x64xf32>
      %20 = arith.mulf %15, %15 : vector<256x64xf32>
      %cst_16 = arith.constant dense<0.000000e+00> : vector<64xf32>
      %21 = vector.multi_reduction <add>, %20, %cst_16 [0] : vector<256x64xf32> to vector<64xf32>
      %22 = vector.shape_cast %21 : vector<64xf32> to vector<1x64xf32>
      %cst_17 = arith.constant 2.560000e+02 : f32
      %23 = vector.broadcast %cst_17 : f32 to vector<1x64xf32>
      %24 = arith.divf %22, %23 : vector<1x64xf32>
      %25 = arith.mulf %19, %19 : vector<1x64xf32>
      %26 = arith.subf %24, %25 : vector<1x64xf32>
      %cst_18 = arith.constant 0.000000e+00 : f32
      %27 = vector.broadcast %cst_18 : f32 to vector<1x64xf32>
      %28 = arith.maximumf %26, %27 : vector<1x64xf32>
      %cst_19 = arith.constant 9.99999974E-6 : f32
      %29 = vector.broadcast %cst_19 : f32 to vector<1x64xf32>
      %30 = arith.addf %28, %29 : vector<1x64xf32>
      %31 = math.rsqrt %30 : vector<1x64xf32>
      %32 = vector.broadcast %19 : vector<1x64xf32> to vector<256x64xf32>
      %33 = arith.subf %15, %32 : vector<256x64xf32>
      %34 = vector.broadcast %31 : vector<1x64xf32> to vector<256x64xf32>
      %35 = arith.mulf %33, %34 : vector<256x64xf32>
      %c0_20 = arith.constant 0 : index
      %c0_21 = arith.constant 0 : index
      %36 = vector.load %arg4[%c0_20, %c0_21] : memref<1x64xf32, #tpu.memory_space<vmem>>, vector<1x64xf32>
      %37 = vector.broadcast %36 : vector<1x64xf32> to vector<256x64xf32>
      %38 = arith.mulf %35, %37 : vector<256x64xf32>
      %c0_22 = arith.constant 0 : index
      %c0_23 = arith.constant 0 : index
      %39 = vector.load %arg5[%c0_22, %c0_23] : memref<1x64xf32, #tpu.memory_space<vmem>>, vector<1x64xf32>
      %40 = vector.broadcast %39 : vector<1x64xf32> to vector<256x64xf32>
      %41 = arith.addf %38, %40 : vector<256x64xf32>
      %cst_24 = arith.constant 0.000000e+00 : f32
      %42 = vector.broadcast %cst_24 : f32 to vector<256x64xf32>
      %43 = arith.cmpf ogt, %41, %42 : vector<256x64xf32>
      %cst_25 = arith.constant 2.000000e-01 : f32
      %44 = vector.broadcast %cst_25 : f32 to vector<256x64xf32>
      %45 = arith.mulf %44, %41 : vector<256x64xf32>
      %46 = arith.select %43, %41, %45 : vector<256x64xi1>, vector<256x64xf32>
      %c0_26 = arith.constant 0 : index
      %c0_27 = arith.constant 0 : index
      %47 = vector.load %arg6[%c0_26, %c0_27] : memref<256x64xf32, #tpu.memory_space<vmem>>, vector<256x64xf32>
      tpu.vector_store %arg6[%c0_26, %c0_27], %46 {strides = array<i32>} : memref<256x64xf32, #tpu.memory_space<vmem>>, vector<256x64xf32>,
    } else {
    }
    return
  }
  func.func @transform_0(%arg0: i32) -> (i32, i32) {
    %c0_i32 = arith.constant 0 : i32
    %c0_i32_0 = arith.constant 0 : i32
    return %c0_i32, %arg0 : i32, i32
  }
  func.func @transform_1(%arg0: i32) -> (i32, i32) {
    %c0_i32 = arith.constant 0 : i32
    %c0_i32_0 = arith.constant 0 : i32
    return %arg0, %c0_i32 : i32, i32
  }
  func.func @transform_2(%arg0: i32) -> (i32, i32) {
    %c0_i32 = arith.constant 0 : i32
    %c0_i32_0 = arith.constant 0 : i32
    %c0_i32_1 = arith.constant 0 : i32
    return %c0_i32, %c0_i32_0 : i32, i32
  }
  func.func @transform_3(%arg0: i32) -> (i32, i32) {
    %c0_i32 = arith.constant 0 : i32
    %c0_i32_0 = arith.constant 0 : i32
    %c0_i32_1 = arith.constant 0 : i32
    return %c0_i32, %c0_i32_0 : i32, i32
  }
  func.func @transform_4(%arg0: i32) -> (i32, i32) {
    %c0_i32 = arith.constant 0 : i32
    %c0_i32_0 = arith.constant 0 : i32
    %c0_i32_1 = arith.constant 0 : i32
    return %c0_i32, %c0_i32_0 : i32, i32
  }
  func.func @transform_5(%arg0: i32) -> (i32, i32) {
    %c0_i32 = arith.constant 0 : i32
    %c0_i32_0 = arith.constant 0 : i32
    %c0_i32_1 = arith.constant 0 : i32
    return %c0_i32, %c0_i32_0 : i32, i32
  }
}

module attributes {stable_mosaic.version = 11 : i64} {
  func.func @conv_bn_lrelu_kernel(%arg0: i32, %arg1: memref<64x512xf32, #tpu.memory_space<vmem>>, %arg2: memref<512x128xf32, #tpu.memory_space<vmem>>, %arg3: memref<1x128xf32, #tpu.memory_space<vmem>>, %arg4: memref<1x128xf32, #tpu.memory_space<vmem>>, %arg5: memref<1x128xf32, #tpu.memory_space<vmem>>, %arg6: memref<64x128xf32, #tpu.memory_space<vmem>>, %arg7: memref<64x128xf32, #tpu.memory_space<vmem>>) attributes {dimension_semantics = [#tpu.dimension_semantics<arbitrary>], iteration_bounds = array<i64: 2>, scalar_prefetch = 0 : i64, scratch_operands = 1 : i64, tpu.core_type = #tpu.core_type<tc>, window_params = [{transform_indices = @transform_0, window_bounds = array<i64: 64, 512>}, {transform_indices = @transform_1, window_bounds = array<i64: 512, 128>}, {pipeline_mode = #tpu.pipeline_mode<synchronous>, transform_indices = @transform_2, window_bounds = array<i64: 1, 128>}, {pipeline_mode = #tpu.pipeline_mode<synchronous>, transform_indices = @transform_3, window_bounds = array<i64: 1, 128>}, {pipeline_mode = #tpu.pipeline_mode<synchronous>, transform_indices = @transform_4, window_bounds = array<i64: 1, 128>}, {pipeline_mode = #tpu.pipeline_mode<synchronous>, transform_indices = @transform_5, window_bounds = array<i64: 64, 128>}]} {
    %c0_i32 = arith.constant 0 : i32
    %0 = arith.cmpi eq, %arg0, %c0_i32 : i32
    %1 = arith.extui %0 : i1 to i32
    %c0_i32_0 = arith.constant 0 : i32
    %2 = arith.cmpi ne, %1, %c0_i32_0 : i32
    scf.if %2 {
      %cst_9 = arith.constant 0.000000e+00 : f32
      %12 = vector.broadcast %cst_9 : f32 to vector<64x128xf32>
      %c0_10 = arith.constant 0 : index
      %c0_11 = arith.constant 0 : index
      %13 = vector.load %arg7[%c0_10, %c0_11] : memref<64x128xf32, #tpu.memory_space<vmem>>, vector<64x128xf32>
      tpu.vector_store %arg7[%c0_10, %c0_11], %12 {strides = array<i32>} : memref<64x128xf32, #tpu.memory_space<vmem>>, vector<64x128xf32>,
    } else {
    }
    %c0 = arith.constant 0 : index
    %c0_1 = arith.constant 0 : index
    %3 = vector.load %arg7[%c0, %c0_1] : memref<64x128xf32, #tpu.memory_space<vmem>>, vector<64x128xf32>
    %c0_2 = arith.constant 0 : index
    %c0_3 = arith.constant 0 : index
    %4 = vector.load %arg1[%c0_2, %c0_3] : memref<64x512xf32, #tpu.memory_space<vmem>>, vector<64x512xf32>
    %c0_4 = arith.constant 0 : index
    %c0_5 = arith.constant 0 : index
    %5 = vector.load %arg2[%c0_4, %c0_5] : memref<512x128xf32, #tpu.memory_space<vmem>>, vector<512x128xf32>
    %cst = arith.constant dense<0.000000e+00> : vector<64x128xf32>
    %6 = tpu.matmul %4, %5, %cst {dimension_numbers = #tpu.dot_dimension_numbers<[1], [0], [0], [1], [0, 0, 1, 1], [], []>} : vector<64x512xf32>, vector<512x128xf32>, vector<64x128xf32> -> vector<64x128xf32>
    %7 = arith.addf %3, %6 : vector<64x128xf32>
    %c0_6 = arith.constant 0 : index
    %c0_7 = arith.constant 0 : index
    %8 = vector.load %arg7[%c0_6, %c0_7] : memref<64x128xf32, #tpu.memory_space<vmem>>, vector<64x128xf32>
    tpu.vector_store %arg7[%c0_6, %c0_7], %7 {strides = array<i32>} : memref<64x128xf32, #tpu.memory_space<vmem>>, vector<64x128xf32>,
    %c1_i32 = arith.constant 1 : i32
    %9 = arith.cmpi eq, %arg0, %c1_i32 : i32
    %10 = arith.extui %9 : i1 to i32
    %c0_i32_8 = arith.constant 0 : i32
    %11 = arith.cmpi ne, %10, %c0_i32_8 : i32
    scf.if %11 {
      %c0_9 = arith.constant 0 : index
      %c0_10 = arith.constant 0 : index
      %12 = vector.load %arg7[%c0_9, %c0_10] : memref<64x128xf32, #tpu.memory_space<vmem>>, vector<64x128xf32>
      %c0_11 = arith.constant 0 : index
      %c0_12 = arith.constant 0 : index
      %13 = vector.load %arg3[%c0_11, %c0_12] : memref<1x128xf32, #tpu.memory_space<vmem>>, vector<1x128xf32>
      %14 = vector.broadcast %13 : vector<1x128xf32> to vector<64x128xf32>
      %15 = arith.addf %12, %14 : vector<64x128xf32>
      %cst_13 = arith.constant dense<0.000000e+00> : vector<128xf32>
      %16 = vector.multi_reduction <add>, %15, %cst_13 [0] : vector<64x128xf32> to vector<128xf32>
      %17 = vector.shape_cast %16 : vector<128xf32> to vector<1x128xf32>
      %cst_14 = arith.constant 6.400000e+01 : f32
      %18 = vector.broadcast %cst_14 : f32 to vector<1x128xf32>
      %19 = arith.divf %17, %18 : vector<1x128xf32>
      %20 = arith.mulf %15, %15 : vector<64x128xf32>
      %cst_15 = arith.constant dense<0.000000e+00> : vector<128xf32>
      %21 = vector.multi_reduction <add>, %20, %cst_15 [0] : vector<64x128xf32> to vector<128xf32>
      %22 = vector.shape_cast %21 : vector<128xf32> to vector<1x128xf32>
      %cst_16 = arith.constant 6.400000e+01 : f32
      %23 = vector.broadcast %cst_16 : f32 to vector<1x128xf32>
      %24 = arith.divf %22, %23 : vector<1x128xf32>
      %25 = arith.mulf %19, %19 : vector<1x128xf32>
      %26 = arith.subf %24, %25 : vector<1x128xf32>
      %cst_17 = arith.constant 0.000000e+00 : f32
      %27 = vector.broadcast %cst_17 : f32 to vector<1x128xf32>
      %28 = arith.maximumf %26, %27 : vector<1x128xf32>
      %cst_18 = arith.constant 9.99999974E-6 : f32
      %29 = vector.broadcast %cst_18 : f32 to vector<1x128xf32>
      %30 = arith.addf %28, %29 : vector<1x128xf32>
      %31 = math.rsqrt %30 : vector<1x128xf32>
      %32 = vector.broadcast %19 : vector<1x128xf32> to vector<64x128xf32>
      %33 = arith.subf %15, %32 : vector<64x128xf32>
      %34 = vector.broadcast %31 : vector<1x128xf32> to vector<64x128xf32>
      %35 = arith.mulf %33, %34 : vector<64x128xf32>
      %c0_19 = arith.constant 0 : index
      %c0_20 = arith.constant 0 : index
      %36 = vector.load %arg4[%c0_19, %c0_20] : memref<1x128xf32, #tpu.memory_space<vmem>>, vector<1x128xf32>
      %37 = vector.broadcast %36 : vector<1x128xf32> to vector<64x128xf32>
      %38 = arith.mulf %35, %37 : vector<64x128xf32>
      %c0_21 = arith.constant 0 : index
      %c0_22 = arith.constant 0 : index
      %39 = vector.load %arg5[%c0_21, %c0_22] : memref<1x128xf32, #tpu.memory_space<vmem>>, vector<1x128xf32>
      %40 = vector.broadcast %39 : vector<1x128xf32> to vector<64x128xf32>
      %41 = arith.addf %38, %40 : vector<64x128xf32>
      %cst_23 = arith.constant 0.000000e+00 : f32
      %42 = vector.broadcast %cst_23 : f32 to vector<64x128xf32>
      %43 = arith.cmpf ogt, %41, %42 : vector<64x128xf32>
      %cst_24 = arith.constant 2.000000e-01 : f32
      %44 = vector.broadcast %cst_24 : f32 to vector<64x128xf32>
      %45 = arith.mulf %44, %41 : vector<64x128xf32>
      %46 = arith.select %43, %41, %45 : vector<64x128xi1>, vector<64x128xf32>
      %c0_25 = arith.constant 0 : index
      %c0_26 = arith.constant 0 : index
      %47 = vector.load %arg6[%c0_25, %c0_26] : memref<64x128xf32, #tpu.memory_space<vmem>>, vector<64x128xf32>
      tpu.vector_store %arg6[%c0_25, %c0_26], %46 {strides = array<i32>} : memref<64x128xf32, #tpu.memory_space<vmem>>, vector<64x128xf32>,
    } else {
    }
    return
  }
  func.func @transform_0(%arg0: i32) -> (i32, i32) {
    %c0_i32 = arith.constant 0 : i32
    %c0_i32_0 = arith.constant 0 : i32
    return %c0_i32, %arg0 : i32, i32
  }
  func.func @transform_1(%arg0: i32) -> (i32, i32) {
    %c0_i32 = arith.constant 0 : i32
    %c0_i32_0 = arith.constant 0 : i32
    return %arg0, %c0_i32 : i32, i32
  }
  func.func @transform_2(%arg0: i32) -> (i32, i32) {
    %c0_i32 = arith.constant 0 : i32
    %c0_i32_0 = arith.constant 0 : i32
    %c0_i32_1 = arith.constant 0 : i32
    return %c0_i32, %c0_i32_0 : i32, i32
  }
  func.func @transform_3(%arg0: i32) -> (i32, i32) {
    %c0_i32 = arith.constant 0 : i32
    %c0_i32_0 = arith.constant 0 : i32
    %c0_i32_1 = arith.constant 0 : i32
    return %c0_i32, %c0_i32_0 : i32, i32
  }
  func.func @transform_4(%arg0: i32) -> (i32, i32) {
    %c0_i32 = arith.constant 0 : i32
    %c0_i32_0 = arith.constant 0 : i32
    %c0_i32_1 = arith.constant 0 : i32
    return %c0_i32, %c0_i32_0 : i32, i32
  }
  func.func @transform_5(%arg0: i32) -> (i32, i32) {
    %c0_i32 = arith.constant 0 : i32
    %c0_i32_0 = arith.constant 0 : i32
    %c0_i32_1 = arith.constant 0 : i32
    return %c0_i32, %c0_i32_0 : i32, i32
  }
}

</mosaic_0001>

<llo_original>
// kernel: discriminator_forward.3
$region0: #{discriminator_forward.3}
  #allocation0 [shape = 'u32[]', space=smem, size = 0x4, offset = 0x4, fixed_abs, tag = 'smem constant byte address 0x4 - core index']
  #allocation1 [shape = 'u32[144,128]{1,0:T(1,128)}', space=vmem, size = 0x12000, scoped, tag = 'internal scratch']
  %s0 = inlined_call_operand.vmem [shape: f32[1024,128], index: 0, kind: input, shape index: {}]
  %s1 = inlined_call_operand.vmem [shape: f32[128,32], index: 1, kind: input, shape index: {}]
  %s2 = inlined_call_operand.vmem [shape: f32[1,32], index: 2, kind: input, shape index: {}]
  %s3 = inlined_call_operand.vmem [shape: f32[1024,32], index: 3, kind: output, shape index: {}]
  %s4 = sld [smem:[#allocation0]]
  $region45: #{discriminator_forward.3} parent=0
    _
  %s6 = ssub.s32 1, %s4
  %s7 = scalar_select 0, %s6, %s4
  loop: start=0, step=1, limit=4
  $region2: #{discriminator_forward.3} parent=0 // loop_pre_header
    _
  $region3: #{discriminator_forward.3} parent=0 // loop_header
    %s9 = sphi 0, %s13
    %p10 = scmp.ge.s32.totalorder %s9, 4
    %s19 = sphi 0, %s21
    %s22 = sphi 0, %s19
    %s23 = sphi 0, %s22
    %s39 = sphi 0, %s23
    %s43 = sphi 0, %s43
    %s45 = sphi 0, %s43
    %s46 = sphi 0, %s45
    %s60 = sphi 0, %s46
    %s64 = sphi 0, %s64
    %s66 = sphi 0, %s64
    %s67 = sphi 0, %s66
    %s81 = sphi 0, %s67
    %s87 = sphi 0, %s89
    %s90 = sphi 0, %s87
    %s91 = sphi 0, %s90
    %s107 = sphi 0, %s91
  $region4: #{discriminator_forward.3} parent=0 // loop_header_branch
    %12 = sbr.rel (%p10) target = $region8
  $region5: #{discriminator_forward.3} parent=0 // loop_body
    %s14 = ssub.s32 %s9, 1
    %s15 = ssub.s32 %s9, 2
    %s16 = sadd.s32 %s9, 1
    %s17 = ssub.s32 %s9, %s16
    %p18 = scmp.eq.s32.totalorder %s17, 0
    %s20 = sadd.s32 %s19, 1
    %s21 = scalar_select %p18, %s19, %s20
    %p24 = pneg %p18
    %p25 = scmp.eq.s32.totalorder %s9, 1
    %p26 = por %p24, %p25
    %p27 = scmp.ne.s32.totalorder %s19, %s22
    %p28 = scmp.eq.s32.totalorder %s9, 0
    %p29 = por %p27, %p28
    %p30 = scmp.ne.s32.totalorder %s19, %s22
    %p31 = scmp.eq.s32.totalorder %s14, 1
    %p32 = por %p30, %p31
    %p33 = scmp.ne.s32.totalorder %s22, %s23
    %p34 = scmp.eq.s32.totalorder %s14, 0
    %p35 = por %p33, %p34
    %p36 = scmp.ne.s32.totalorder %s22, %s23
    %p37 = scmp.eq.s32.totalorder %s15, 1
    %p38 = por %p36, %p37
    %p40 = scmp.ne.s32.totalorder %s23, %s39
    %p41 = scmp.eq.s32.totalorder %s15, 0
    %p42 = por %p40, %p41
    %s44 = sadd.s32 %s43, 1
    %p47 = scmp.eq.s32.totalorder %s9, 1
    %p48 = scmp.ne.s32.totalorder %s43, %s45
    %p49 = scmp.eq.s32.totalorder %s9, 0
    %p50 = por %p48, %p49
    %p51 = scmp.ne.s32.totalorder %s43, %s45
    %p52 = scmp.eq.s32.totalorder %s14, 1
    %p53 = por %p51, %p52
    %p54 = scmp.ne.s32.totalorder %s45, %s46
    %p55 = scmp.eq.s32.totalorder %s14, 0
    %p56 = por %p54, %p55
    %p57 = scmp.ne.s32.totalorder %s45, %s46
    %p58 = scmp.eq.s32.totalorder %s15, 1
    %p59 = por %p57, %p58
    %p61 = scmp.ne.s32.totalorder %s46, %s60
    %p62 = scmp.eq.s32.totalorder %s15, 0
    %p63 = por %p61, %p62
    %s65 = sadd.s32 %s64, 1
    %p68 = scmp.eq.s32.totalorder %s9, 1
    %p69 = scmp.ne.s32.totalorder %s64, %s66
    %p70 = scmp.eq.s32.totalorder %s9, 0
    %p71 = por %p69, %p70
    %p72 = scmp.ne.s32.totalorder %s64, %s66
    %p73 = scmp.eq.s32.totalorder %s14, 1
    %p74 = por %p72, %p73
    %p75 = scmp.ne.s32.totalorder %s66, %s67
    %p76 = scmp.eq.s32.totalorder %s14, 0
    %p77 = por %p75, %p76
    %p78 = scmp.ne.s32.totalorder %s66, %s67
    %p79 = scmp.eq.s32.totalorder %s15, 1
    %p80 = por %p78, %p79
    %p82 = scmp.ne.s32.totalorder %s67, %s81
    %p83 = scmp.eq.s32.totalorder %s15, 0
    %p84 = por %p82, %p83
    %s85 = ssub.s32 %s9, %s16
    %p86 = scmp.eq.s32.totalorder %s85, 0
    %s88 = sadd.s32 %s87, 1
    %s89 = scalar_select %p86, %s87, %s88
    %p92 = pneg %p86
    %p93 = scmp.eq.s32.totalorder %s9, 1
    %p94 = por %p92, %p93
    %p95 = scmp.ne.s32.totalorder %s87, %s90
    %p96 = scmp.eq.s32.totalorder %s9, 0
    %p97 = por %p95, %p96
    %p98 = scmp.ne.s32.totalorder %s87, %s90
    %p99 = scmp.eq.s32.totalorder %s14, 1
    %p100 = por %p98, %p99
    %p101 = scmp.ne.s32.totalorder %s90, %s91
    %p102 = scmp.eq.s32.totalorder %s14, 0
    %p103 = por %p101, %p102
    %p104 = scmp.ne.s32.totalorder %s90, %s91
    %p105 = scmp.eq.s32.totalorder %s15, 1
    %p106 = por %p104, %p105
    %p108 = scmp.ne.s32.totalorder %s91, %s107
    %p109 = scmp.eq.s32.totalorder %s15, 0
    %p110 = por %p108, %p109
    %p111 = scmp.le.s32.totalorder 1, %s9
    %p112 = scmp.lt.s32.totalorder %s9, 3
    %p113 = pnand %p111, %p112
    %p114 = pneg %p113
    // Predicated region
    $region9: #{discriminator_forward.3} parent=5 // pred_check
      _
    $region10: #{discriminator_forward.3} parent=5 // pred_check_branch
      %116 = sbr.rel (%p113) target = $region12
    $region11: #{discriminator_forward.3} parent=5 // pred_region
      %s117 = ssub.s32 %s9, 1
      // Predicated region
      $region13: #{discriminator_forward.3} parent=11 // pred_check
        %p118 = pneg %p56
      $region14: #{discriminator_forward.3} parent=11 // pred_check_branch
        %120 = sbr.rel (%p118) target = $region16
      $region15: #{discriminator_forward.3} parent=11 // pred_region
        _
      $region16: #{discriminator_forward.3} parent=11 // pred_fallthru
        _
      // Predicated region
      $region17: #{discriminator_forward.3} parent=11 // pred_check
        %p121 = pneg %p77
      $region18: #{discriminator_forward.3} parent=11 // pred_check_branch
        %123 = sbr.rel (%p121) target = $region20
      $region19: #{discriminator_forward.3} parent=11 // pred_region
        _
      $region20: #{discriminator_forward.3} parent=11 // pred_fallthru
        _
    $region12: #{discriminator_forward.3} parent=5 // pred_fallthru
      _
    %p124 = scmp.lt.s32.totalorder %s9, 2
    // Predicated region
    $region21: #{discriminator_forward.3} parent=5 // pred_check
      %p125 = pneg %p124
    $region22: #{discriminator_forward.3} parent=5 // pred_check_branch
      %127 = sbr.rel (%p125) target = $region24
    $region23: #{discriminator_forward.3} parent=5 // pred_region
      // Predicated region
      $region25: #{discriminator_forward.3} parent=23 // pred_check
        %p128 = pneg %p29
      $region26: #{discriminator_forward.3} parent=23 // pred_check_branch
        %130 = sbr.rel (%p128) target = $region28
      $region27: #{discriminator_forward.3} parent=23 // pred_region
        %s131 = smul.u32 64, %s9
        %p132 = scmp.lt.s32.totalorder %s131, 127
        %s133 = scalar_select %p132, %s131, 127
        %s134 = smul.addr %s133, 8
        %s135 = scalar_lea.vmem %s0, %s134
        %s136 = smul.u32 64, %s9
      $region28: #{discriminator_forward.3} parent=23 // pred_fallthru
        _
    $region24: #{discriminator_forward.3} parent=5 // pred_fallthru
      _
    %p137 = scmp.le.s32.totalorder 1, %s9
    %p138 = scmp.lt.s32.totalorder %s9, 3
    %p139 = pnand %p137, %p138
    %p140 = pneg %p139
    // Predicated region
    $region29: #{discriminator_forward.3} parent=5 // pred_check
      _
    $region30: #{discriminator_forward.3} parent=5 // pred_check_branch
      %142 = sbr.rel (%p139) target = $region32
    $region31: #{discriminator_forward.3} parent=5 // pred_region
      %s143 = ssub.s32 %s9, 1
      %s144 = smul.u32 64, %s14
      %p145 = scmp.lt.s32.totalorder %s144, 127
      %s146 = scalar_select %p145, %s144, 127
      %s147 = smul.addr %s146, 8
      %s148 = scalar_lea.vmem %s0, %s147
      %p149 = pneg %p35
      %p150 = pneg %p32
      %p151 = pneg %p56
      %p152 = pneg %p53
      %p153 = pneg %p77
      %p154 = pneg %p74
      %p155 = pneg %p103
      %p156 = pneg %p100
      %s157 = smul.u32 64, %s14
      %p158 = scmp.lt.s32.totalorder %s157, 127
      %s159 = scalar_select %p158, %s157, 127
      %s160 = smul.addr %s159, 8
      %s161 = scalar_lea.vmem %s3, %s160
      %s162 = smul.u32 64, %s14
      %p163 = scmp.lt.s32.totalorder %s162, 127
      %s164 = scalar_select %p163, %s162, 127
      %s165 = smul.addr %s164, 8
      %s166 = scalar_lea.vmem %s0, %s165
      %s167 = smul.u32 64, %s14
      %s168 = smul.u32 64, %s14
      %p169 = scmp.lt.s32.totalorder %s168, 127
      %s170 = scalar_select %p169, %s168, 127
      %s171 = smul.addr %s170, 8
      %s172 = scalar_lea.vmem %s3, %s171
      %s173 = smul.u32 64, %s14
      %v174 = vld [vmem:[%s166] sm:$0xff]
      %v175 = vld [vmem:[%s166 + $0x8] sm:$0xff]
      %v176 = vld [vmem:[%s166 + $0x10] sm:$0xff]
      %v177 = vld [vmem:[%s166 + $0x18] sm:$0xff]
      %v178 = vld [vmem:[%s166 + $0x20] sm:$0xff]
      %v179 = vld [vmem:[%s166 + $0x28] sm:$0xff]
      %v180 = vld [vmem:[%s166 + $0x30] sm:$0xff]
      %v181 = vld [vmem:[%s166 + $0x38] sm:$0xff]
      %v182 = vld [vmem:[%s166 + $0x40] sm:$0xff]
      %v183 = vld [vmem:[%s166 + $0x48] sm:$0xff]
      %v184 = vld [vmem:[%s166 + $0x50] sm:$0xff]
      %v185 = vld [vmem:[%s166 + $0x58] sm:$0xff]
      %v186 = vld [vmem:[%s166 + $0x60] sm:$0xff]
      %v187 = vld [vmem:[%s166 + $0x68] sm:$0xff]
      %v188 = vld [vmem:[%s166 + $0x70] sm:$0xff]
      %v189 = vld [vmem:[%s166 + $0x78] sm:$0xff]
      %v190 = vld [vmem:[%s166 + $0x80] sm:$0xff]
      %v191 = vld [vmem:[%s166 + $0x88] sm:$0xff]
      %v192 = vld [vmem:[%s166 + $0x90] sm:$0xff]
      %v193 = vld [vmem:[%s166 + $0x98] sm:$0xff]
      %v194 = vld [vmem:[%s166 + $0xa0] sm:$0xff]
      %v195 = vld [vmem:[%s166 + $0xa8] sm:$0xff]
      %v196 = vld [vmem:[%s166 + $0xb0] sm:$0xff]
      %v197 = vld [vmem:[%s166 + $0xb8] sm:$0xff]
      %v198 = vld [vmem:[%s166 + $0xc0] sm:$0xff]
      %v199 = vld [vmem:[%s166 + $0xc8] sm:$0xff]
      %v200 = vld [vmem:[%s166 + $0xd0] sm:$0xff]
      %v201 = vld [vmem:[%s166 + $0xd8] sm:$0xff]
      %v202 = vld [vmem:[%s166 + $0xe0] sm:$0xff]
      %v203 = vld [vmem:[%s166 + $0xe8] sm:$0xff]
      %v204 = vld [vmem:[%s166 + $0xf0] sm:$0xff]
      %v205 = vld [vmem:[%s166 + $0xf8] sm:$0xff]
      %v206 = vld [vmem:[%s166 + $0x100] sm:$0xff]
      %v207 = vld [vmem:[%s166 + $0x108] sm:$0xff]
      %v208 = vld [vmem:[%s166 + $0x110] sm:$0xff]
      %v209 = vld [vmem:[%s166 + $0x118] sm:$0xff]
      %v210 = vld [vmem:[%s166 + $0x120] sm:$0xff]
      %v211 = vld [vmem:[%s166 + $0x128] sm:$0xff]
      %v212 = vld [vmem:[%s166 + $0x130] sm:$0xff]
      %v213 = vld [vmem:[%s166 + $0x138] sm:$0xff]
      %v214 = vld [vmem:[%s166 + $0x140] sm:$0xff]
      %v215 = vld [vmem:[%s166 + $0x148] sm:$0xff]
      %v216 = vld [vmem:[%s166 + $0x150] sm:$0xff]
      %v217 = vld [vmem:[%s166 + $0x158] sm:$0xff]
      %v218 = vld [vmem:[%s166 + $0x160] sm:$0xff]
      %v219 = vld [vmem:[%s166 + $0x168] sm:$0xff]
      %v220 = vld [vmem:[%s166 + $0x170] sm:$0xff]
      %v221 = vld [vmem:[%s166 + $0x178] sm:$0xff]
      %v222 = vld [vmem:[%s166 + $0x180] sm:$0xff]
      %v223 = vld [vmem:[%s166 + $0x188] sm:$0xff]
      %v224 = vld [vmem:[%s166 + $0x190] sm:$0xff]
      %v225 = vld [vmem:[%s166 + $0x198] sm:$0xff]
      %v226 = vld [vmem:[%s166 + $0x1a0] sm:$0xff]
      %v227 = vld [vmem:[%s166 + $0x1a8] sm:$0xff]
      %v228 = vld [vmem:[%s166 + $0x1b0] sm:$0xff]
      %v229 = vld [vmem:[%s166 + $0x1b8] sm:$0xff]
      %v230 = vld [vmem:[%s166 + $0x1c0] sm:$0xff]
      %v231 = vld [vmem:[%s166 + $0x1c8] sm:$0xff]
      %v232 = vld [vmem:[%s166 + $0x1d0] sm:$0xff]
      %v233 = vld [vmem:[%s166 + $0x1d8] sm:$0xff]
      %v234 = vld [vmem:[%s166 + $0x1e0] sm:$0xff]
      %v235 = vld [vmem:[%s166 + $0x1e8] sm:$0xff]
      %v236 = vld [vmem:[%s166 + $0x1f0] sm:$0xff]
      %v237 = vld [vmem:[%s166 + $0x1f8] sm:$0xff]
      %v238 = vld [vmem:[%s1] sm:$0xff]
      %v239 = vld [vmem:[%s1 + $0x8] sm:$0xff]
      %v240 = vld [vmem:[%s1 + $0x10] sm:$0xff]
      %v241 = vld [vmem:[%s1 + $0x18] sm:$0xff]
      %v242 = vld [vmem:[%s1 + $0x20] sm:$0xff]
      %v243 = vld [vmem:[%s1 + $0x28] sm:$0xff]
      %v244 = vld [vmem:[%s1 + $0x30] sm:$0xff]
      %v245 = vld [vmem:[%s1 + $0x38] sm:$0xff]
      %v246 = vld [vmem:[%s1 + $0x40] sm:$0xff]
      %v247 = vld [vmem:[%s1 + $0x48] sm:$0xff]
      %v248 = vld [vmem:[%s1 + $0x50] sm:$0xff]
      %v249 = vld [vmem:[%s1 + $0x58] sm:$0xff]
      %v250 = vld [vmem:[%s1 + $0x60] sm:$0xff]
      %v251 = vld [vmem:[%s1 + $0x68] sm:$0xff]
      %v252 = vld [vmem:[%s1 + $0x70] sm:$0xff]
      %v253 = vld [vmem:[%s1 + $0x78] sm:$0xff]
      %v254 = vld [vmem:[%s2] sm:$0x1]
      %v256 = vlaneseq
      %v257 = vshrl.u32 %v256, 7
      %v258 = vsub.s32 0, %v257
      %v259 = vrot.slane %v254, %v258
      %261 = vmatprep.subr.mxu0 0.0
      %262 = vmatpush1.msra.mxu0 %v238
      %263 = vmatprep.subr.mxu0 0.0
      %264 = vmatpush1.msra.mxu0 %v239
      %265 = vmatprep.subr.mxu0 0.0
      %266 = vmatpush1.msra.mxu0 %v240
      %267 = vmatprep.subr.mxu0 0.0
      %268 = vmatpush1.msra.mxu0 %v241
      %269 = vmatprep.subr.mxu0 0.0
      %270 = vmatpush1.msra.mxu0 %v242
      %271 = vmatprep.subr.mxu0 0.0
      %272 = vmatpush1.msra.mxu0 %v243
      %273 = vmatprep.subr.mxu0 0.0
      %274 = vmatpush1.msra.mxu0 %v244
      %275 = vmatprep.subr.mxu0 0.0
      %276 = vmatpush1.msra.mxu0 %v245
      %277 = vmatprep.subr.mxu0 0.0
      %278 = vmatpush1.msra.mxu0 %v246
      %279 = vmatprep.subr.mxu0 0.0
      %280 = vmatpush1.msra.mxu0 %v247
      %281 = vmatprep.subr.mxu0 0.0
      %282 = vmatpush1.msra.mxu0 %v248
      %283 = vmatprep.subr.mxu0 0.0
      %284 = vmatpush1.msra.mxu0 %v249
      %285 = vmatprep.subr.mxu0 0.0
      %286 = vmatpush1.msra.mxu0 %v250
      %287 = vmatprep.subr.mxu0 0.0
      %288 = vmatpush1.msra.mxu0 %v251
      %289 = vmatprep.subr.mxu0 0.0
      %290 = vmatpush1.msra.mxu0 %v252
      %291 = vmatprep.subr.mxu0 0.0
      %292 = vmatpush1.msra.mxu0 %v253
      %293 = vmatprep.subr.mxu0 0.0
      %294 = vmatpush1.msra.mxu0 0.0
      %295 = vmatprep.subr.mxu0 0.0
      %296 = vmatpush1.msra.mxu0 0.0
      %297 = vmatprep.subr.mxu0 0.0
      %298 = vmatpush1.msra.mxu0 0.0
      %299 = vmatprep.subr.mxu0 0.0
      %300 = vmatpush1.msra.mxu0 0.0
      %301 = vmatprep.subr.mxu0 0.0
      %302 = vmatpush1.msra.mxu0 0.0
      %303 = vmatprep.subr.mxu0 0.0
      %304 = vmatpush1.msra.mxu0 0.0
      %305 = vmatprep.subr.mxu0 0.0
      %306 = vmatpush1.msra.mxu0 0.0
      %307 = vmatprep.subr.mxu0 0.0
      %308 = vmatpush1.msra.mxu0 0.0
      %309 = vmatprep.subr.mxu0 0.0
      %310 = vmatpush1.msra.mxu0 0.0
      %311 = vmatprep.subr.mxu0 0.0
      %312 = vmatpush1.msra.mxu0 0.0
      %313 = vmatprep.subr.mxu0 0.0
      %314 = vmatpush1.msra.mxu0 0.0
      %315 = vmatprep.subr.mxu0 0.0
      %316 = vmatpush1.msra.mxu0 0.0
      %317 = vmatprep.subr.mxu0 0.0
      %318 = vmatpush1.msra.mxu0 0.0
      %319 = vmatprep.subr.mxu0 0.0
      %320 = vmatpush1.msra.mxu0 0.0
      %321 = vmatprep.subr.mxu0 0.0
      %322 = vmatpush1.msra.mxu0 0.0
      %323 = vmatprep.subr.mxu0 0.0
      %324 = vmatpush1.msra.mxu0 0.0
      %325 = vmatprep.mubr.f32.mxu0 0.0
      %326 = vmatmul.mubr.f32.gmra.mrb[0].mxu0 %v174
      %v327 = vpop.f32.mrb[0].mxu0
      %v328 = vadd.f32 %v259, %v327
      %v329 = vpop.f32.mrb[0].mxu0
      %330 = vmatprep.mubr.f32.mxu0 0.0
      %331 = vmatmul.mubr.f32.gmra.mrb[0].mxu0 %v175
      %v332 = vpop.f32.mrb[0].mxu0
      %v333 = vadd.f32 %v259, %v332
      %v334 = vpop.f32.mrb[0].mxu0
      %335 = vmatprep.mubr.f32.mxu0 0.0
      %336 = vmatmul.mubr.f32.gmra.mrb[0].mxu0 %v176
      %v337 = vpop.f32.mrb[0].mxu0
      %v338 = vadd.f32 %v259, %v337
      %v339 = vpop.f32.mrb[0].mxu0
      %340 = vmatprep.mubr.f32.mxu0 0.0
      %341 = vmatmul.mubr.f32.gmra.mrb[0].mxu0 %v177
      %v342 = vpop.f32.mrb[0].mxu0
      %v343 = vadd.f32 %v259, %v342
      %v344 = vpop.f32.mrb[0].mxu0
      %345 = vmatprep.mubr.f32.mxu0 0.0
      %346 = vmatmul.mubr.f32.gmra.mrb[0].mxu0 %v178
      %v347 = vpop.f32.mrb[0].mxu0
      %v348 = vadd.f32 %v259, %v347
      %v349 = vpop.f32.mrb[0].mxu0
      %350 = vmatprep.mubr.f32.mxu0 0.0
      %351 = vmatmul.mubr.f32.gmra.mrb[0].mxu0 %v179
      %v352 = vpop.f32.mrb[0].mxu0
      %v353 = vadd.f32 %v259, %v352
      %v354 = vpop.f32.mrb[0].mxu0
      %355 = vmatprep.mubr.f32.mxu0 0.0
      %356 = vmatmul.mubr.f32.gmra.mrb[0].mxu0 %v180
      %v357 = vpop.f32.mrb[0].mxu0
      %v358 = vadd.f32 %v259, %v357
      %v359 = vpop.f32.mrb[0].mxu0
      %360 = vmatprep.mubr.f32.mxu0 0.0
      %361 = vmatmul.mubr.f32.gmra.mrb[0].mxu0 %v181
      %v362 = vpop.f32.mrb[0].mxu0
      %v363 = vadd.f32 %v259, %v362
      %v364 = vpop.f32.mrb[0].mxu0
      %365 = vmatprep.mubr.f32.mxu0 0.0
      %366 = vmatmul.mubr.f32.gmra.mrb[0].mxu0 %v182
      %v367 = vpop.f32.mrb[0].mxu0
      %v368 = vadd.f32 %v259, %v367
      %v369 = vpop.f32.mrb[0].mxu0
      %370 = vmatprep.mubr.f32.mxu0 0.0
      %371 = vmatmul.mubr.f32.gmra.mrb[0].mxu0 %v183
      %v372 = vpop.f32.mrb[0].mxu0
      %v373 = vadd.f32 %v259, %v372
      %v374 = vpop.f32.mrb[0].mxu0
      %375 = vmatprep.mubr.f32.mxu0 0.0
      %376 = vmatmul.mubr.f32.gmra.mrb[0].mxu0 %v184
      %v377 = vpop.f32.mrb[0].mxu0
      %v378 = vadd.f32 %v259, %v377
      %v379 = vpop.f32.mrb[0].mxu0
      %380 = vmatprep.mubr.f32.mxu0 0.0
      %381 = vmatmul.mubr.f32.gmra.mrb[0].mxu0 %v185
      %v382 = vpop.f32.mrb[0].mxu0
      %v383 = vadd.f32 %v259, %v382
      %v384 = vpop.f32.mrb[0].mxu0
      %385 = vmatprep.mubr.f32.mxu0 0.0
      %386 = vmatmul.mubr.f32.gmra.mrb[0].mxu0 %v186
      %v387 = vpop.f32.mrb[0].mxu0
      %v388 = vadd.f32 %v259, %v387
      %v389 = vpop.f32.mrb[0].mxu0
      %390 = vmatprep.mubr.f32.mxu0 0.0
      %391 = vmatmul.mubr.f32.gmra.mrb[0].mxu0 %v187
      %v392 = vpop.f32.mrb[0].mxu0
      %v393 = vadd.f32 %v259, %v392
      %v394 = vpop.f32.mrb[0].mxu0
      %395 = vmatprep.mubr.f32.mxu0 0.0
      %396 = vmatmul.mubr.f32.gmra.mrb[0].mxu0 %v188
      %v397 = vpop.f32.mrb[0].mxu0
      %v398 = vadd.f32 %v259, %v397
      %v399 = vpop.f32.mrb[0].mxu0
      %400 = vmatprep.mubr.f32.mxu0 0.0
      %401 = vmatmul.mubr.f32.gmra.mrb[0].mxu0 %v189
      %v402 = vpop.f32.mrb[0].mxu0
      %v403 = vadd.f32 %v259, %v402
      %v404 = vpop.f32.mrb[0].mxu0
      %405 = vmatprep.mubr.f32.mxu0 0.0
      %406 = vmatmul.mubr.f32.gmra.mrb[0].mxu0 %v190
      %v407 = vpop.f32.mrb[0].mxu0
      %v408 = vadd.f32 %v259, %v407
      %v409 = vpop.f32.mrb[0].mxu0
      %410 = vmatprep.mubr.f32.mxu0 0.0
      %411 = vmatmul.mubr.f32.gmra.mrb[0].mxu0 %v191
      %v412 = vpop.f32.mrb[0].mxu0
      %v413 = vadd.f32 %v259, %v412
      %v414 = vpop.f32.mrb[0].mxu0
      %415 = vmatprep.mubr.f32.mxu0 0.0
      %416 = vmatmul.mubr.f32.gmra.mrb[0].mxu0 %v192
      %v417 = vpop.f32.mrb[0].mxu0
      %v418 = vadd.f32 %v259, %v417
      %v419 = vpop.f32.mrb[0].mxu0
      %420 = vmatprep.mubr.f32.mxu0 0.0
      %421 = vmatmul.mubr.f32.gmra.mrb[0].mxu0 %v193
      %v422 = vpop.f32.mrb[0].mxu0
      %v423 = vadd.f32 %v259, %v422
      %v424 = vpop.f32.mrb[0].mxu0
      %425 = vmatprep.mubr.f32.mxu0 0.0
      %426 = vmatmul.mubr.f32.gmra.mrb[0].mxu0 %v194
      %v427 = vpop.f32.mrb[0].mxu0
      %v428 = vadd.f32 %v259, %v427
      %v429 = vpop.f32.mrb[0].mxu0
      %430 = vmatprep.mubr.f32.mxu0 0.0
      %431 = vmatmul.mubr.f32.gmra.mrb[0].mxu0 %v195
      %v432 = vpop.f32.mrb[0].mxu0
      %v433 = vadd.f32 %v259, %v432
      %v434 = vpop.f32.mrb[0].mxu0
      %435 = vmatprep.mubr.f32.mxu0 0.0
      %436 = vmatmul.mubr.f32.gmra.mrb[0].mxu0 %v196
      %v437 = vpop.f32.mrb[0].mxu0
      %v438 = vadd.f32 %v259, %v437
      %v439 = vpop.f32.mrb[0].mxu0
      %440 = vmatprep.mubr.f32.mxu0 0.0
      %441 = vmatmul.mubr.f32.gmra.mrb[0].mxu0 %v197
      %v442 = vpop.f32.mrb[0].mxu0
      %v443 = vadd.f32 %v259, %v442
      %v444 = vpop.f32.mrb[0].mxu0
      %445 = vmatprep.mubr.f32.mxu0 0.0
      %446 = vmatmul.mubr.f32.gmra.mrb[0].mxu0 %v198
      %v447 = vpop.f32.mrb[0].mxu0
      %v448 = vadd.f32 %v259, %v447
      %v449 = vpop.f32.mrb[0].mxu0
      %450 = vmatprep.mubr.f32.mxu0 0.0
      %451 = vmatmul.mubr.f32.gmra.mrb[0].mxu0 %v199
      %v452 = vpop.f32.mrb[0].mxu0
      %v453 = vadd.f32 %v259, %v452
      %v454 = vpop.f32.mrb[0].mxu0
      %455 = vmatprep.mubr.f32.mxu0 0.0
      %456 = vmatmul.mubr.f32.gmra.mrb[0].mxu0 %v200
      %v457 = vpop.f32.mrb[0].mxu0
      %v458 = vadd.f32 %v259, %v457
      %v459 = vpop.f32.mrb[0].mxu0
      %460 = vmatprep.mubr.f32.mxu0 0.0
      %461 = vmatmul.mubr.f32.gmra.mrb[0].mxu0 %v201
      %v462 = vpop.f32.mrb[0].mxu0
      %v463 = vadd.f32 %v259, %v462
      %v464 = vpop.f32.mrb[0].mxu0
      %465 = vmatprep.mubr.f32.mxu0 0.0
      %466 = vmatmul.mubr.f32.gmra.mrb[0].mxu0 %v202
      %v467 = vpop.f32.mrb[0].mxu0
      %v468 = vadd.f32 %v259, %v467
      %v469 = vpop.f32.mrb[0].mxu0
      %470 = vmatprep.mubr.f32.mxu0 0.0
      %471 = vmatmul.mubr.f32.gmra.mrb[0].mxu0 %v203
      %v472 = vpop.f32.mrb[0].mxu0
      %v473 = vadd.f32 %v259, %v472
      %v474 = vpop.f32.mrb[0].mxu0
      %475 = vmatprep.mubr.f32.mxu0 0.0
      %476 = vmatmul.mubr.f32.gmra.mrb[0].mxu0 %v204
      %v477 = vpop.f32.mrb[0].mxu0
      %v478 = vadd.f32 %v259, %v477
      %v479 = vpop.f32.mrb[0].mxu0
      %480 = vmatprep.mubr.f32.mxu0 0.0
      %481 = vmatmul.mubr.f32.gmra.mrb[0].mxu0 %v205
      %v482 = vpop.f32.mrb[0].mxu0
      %v483 = vadd.f32 %v259, %v482
      %v484 = vpop.f32.mrb[0].mxu0
      %485 = vmatprep.mubr.f32.mxu0 0.0
      %486 = vmatmul.mubr.f32.gmra.mrb[0].mxu0 %v206
      %v487 = vpop.f32.mrb[0].mxu0
      %v488 = vadd.f32 %v259, %v487
      %v489 = vpop.f32.mrb[0].mxu0
      %490 = vmatprep.mubr.f32.mxu0 0.0
      %491 = vmatmul.mubr.f32.gmra.mrb[0].mxu0 %v207
      %v492 = vpop.f32.mrb[0].mxu0
      %v493 = vadd.f32 %v259, %v492
      %v494 = vpop.f32.mrb[0].mxu0
      %495 = vmatprep.mubr.f32.mxu0 0.0
      %496 = vmatmul.mubr.f32.gmra.mrb[0].mxu0 %v208
      %v497 = vpop.f32.mrb[0].mxu0
      %v498 = vadd.f32 %v259, %v497
      %v499 = vpop.f32.mrb[0].mxu0
      %500 = vmatprep.mubr.f32.mxu0 0.0
      %501 = vmatmul.mubr.f32.gmra.mrb[0].mxu0 %v209
      %v502 = vpop.f32.mrb[0].mxu0
      %v503 = vadd.f32 %v259, %v502
      %v504 = vpop.f32.mrb[0].mxu0
      %505 = vmatprep.mubr.f32.mxu0 0.0
      %506 = vmatmul.mubr.f32.gmra.mrb[0].mxu0 %v210
      %v507 = vpop.f32.mrb[0].mxu0
      %v508 = vadd.f32 %v259, %v507
      %v509 = vpop.f32.mrb[0].mxu0
      %510 = vmatprep.mubr.f32.mxu0 0.0
      %511 = vmatmul.mubr.f32.gmra.mrb[0].mxu0 %v211
      %v512 = vpop.f32.mrb[0].mxu0
      %v513 = vadd.f32 %v259, %v512
      %v514 = vpop.f32.mrb[0].mxu0
      %515 = vmatprep.mubr.f32.mxu0 0.0
      %516 = vmatmul.mubr.f32.gmra.mrb[0].mxu0 %v212
      %v517 = vpop.f32.mrb[0].mxu0
      %v518 = vadd.f32 %v259, %v517
      %v519 = vpop.f32.mrb[0].mxu0
      %520 = vmatprep.mubr.f32.mxu0 0.0
      %521 = vmatmul.mubr.f32.gmra.mrb[0].mxu0 %v213
      %v522 = vpop.f32.mrb[0].mxu0
      %v523 = vadd.f32 %v259, %v522
      %v524 = vpop.f32.mrb[0].mxu0
      %525 = vmatprep.mubr.f32.mxu0 0.0
      %526 = vmatmul.mubr.f32.gmra.mrb[0].mxu0 %v214
      %v527 = vpop.f32.mrb[0].mxu0
      %v528 = vadd.f32 %v259, %v527
      %v529 = vpop.f32.mrb[0].mxu0
      %530 = vmatprep.mubr.f32.mxu0 0.0
      %531 = vmatmul.mubr.f32.gmra.mrb[0].mxu0 %v215
      %v532 = vpop.f32.mrb[0].mxu0
      %v533 = vadd.f32 %v259, %v532
      %v534 = vpop.f32.mrb[0].mxu0
      %535 = vmatprep.mubr.f32.mxu0 0.0
      %536 = vmatmul.mubr.f32.gmra.mrb[0].mxu0 %v216
      %v537 = vpop.f32.mrb[0].mxu0
      %v538 = vadd.f32 %v259, %v537
      %v539 = vpop.f32.mrb[0].mxu0
      %540 = vmatprep.mubr.f32.mxu0 0.0
      %541 = vmatmul.mubr.f32.gmra.mrb[0].mxu0 %v217
      %v542 = vpop.f32.mrb[0].mxu0
      %v543 = vadd.f32 %v259, %v542
      %v544 = vpop.f32.mrb[0].mxu0
      %545 = vmatprep.mubr.f32.mxu0 0.0
      %546 = vmatmul.mubr.f32.gmra.mrb[0].mxu0 %v218
      %v547 = vpop.f32.mrb[0].mxu0
      %v548 = vadd.f32 %v259, %v547
      %v549 = vpop.f32.mrb[0].mxu0
      %550 = vmatprep.mubr.f32.mxu0 0.0
      %551 = vmatmul.mubr.f32.gmra.mrb[0].mxu0 %v219
      %v552 = vpop.f32.mrb[0].mxu0
      %v553 = vadd.f32 %v259, %v552
      %v554 = vpop.f32.mrb[0].mxu0
      %555 = vmatprep.mubr.f32.mxu0 0.0
      %556 = vmatmul.mubr.f32.gmra.mrb[0].mxu0 %v220
      %v557 = vpop.f32.mrb[0].mxu0
      %v558 = vadd.f32 %v259, %v557
      %v559 = vpop.f32.mrb[0].mxu0
      %560 = vmatprep.mubr.f32.mxu0 0.0
      %561 = vmatmul.mubr.f32.gmra.mrb[0].mxu0 %v221
      %v562 = vpop.f32.mrb[0].mxu0
      %v563 = vadd.f32 %v259, %v562
      %v564 = vpop.f32.mrb[0].mxu0
      %565 = vmatprep.mubr.f32.mxu0 0.0
      %566 = vmatmul.mubr.f32.gmra.mrb[0].mxu0 %v222
      %v567 = vpop.f32.mrb[0].mxu0
      %v568 = vadd.f32 %v259, %v567
      %v569 = vpop.f32.mrb[0].mxu0
      %570 = vmatprep.mubr.f32.mxu0 0.0
      %571 = vmatmul.mubr.f32.gmra.mrb[0].mxu0 %v223
      %v572 = vpop.f32.mrb[0].mxu0
      %v573 = vadd.f32 %v259, %v572
      %v574 = vpop.f32.mrb[0].mxu0
      %575 = vmatprep.mubr.f32.mxu0 0.0
      %576 = vmatmul.mubr.f32.gmra.mrb[0].mxu0 %v224
      %v577 = vpop.f32.mrb[0].mxu0
      %v578 = vadd.f32 %v259, %v577
      %v579 = vpop.f32.mrb[0].mxu0
      %580 = vmatprep.mubr.f32.mxu0 0.0
      %581 = vmatmul.mubr.f32.gmra.mrb[0].mxu0 %v225
      %v582 = vpop.f32.mrb[0].mxu0
      %v583 = vadd.f32 %v259, %v582
      %v584 = vpop.f32.mrb[0].mxu0
      %585 = vmatprep.mubr.f32.mxu0 0.0
      %586 = vmatmul.mubr.f32.gmra.mrb[0].mxu0 %v226
      %v587 = vpop.f32.mrb[0].mxu0
      %v588 = vadd.f32 %v259, %v587
      %v589 = vpop.f32.mrb[0].mxu0
      %590 = vmatprep.mubr.f32.mxu0 0.0
      %591 = vmatmul.mubr.f32.gmra.mrb[0].mxu0 %v227
      %v592 = vpop.f32.mrb[0].mxu0
      %v593 = vadd.f32 %v259, %v592
      %v594 = vpop.f32.mrb[0].mxu0
      %595 = vmatprep.mubr.f32.mxu0 0.0
      %596 = vmatmul.mubr.f32.gmra.mrb[0].mxu0 %v228
      %v597 = vpop.f32.mrb[0].mxu0
      %v598 = vadd.f32 %v259, %v597
      %v599 = vpop.f32.mrb[0].mxu0
      %600 = vmatprep.mubr.f32.mxu0 0.0
      %601 = vmatmul.mubr.f32.gmra.mrb[0].mxu0 %v229
      %v602 = vpop.f32.mrb[0].mxu0
      %v603 = vadd.f32 %v259, %v602
      %v604 = vpop.f32.mrb[0].mxu0
      %605 = vmatprep.mubr.f32.mxu0 0.0
      %606 = vmatmul.mubr.f32.gmra.mrb[0].mxu0 %v230
      %v607 = vpop.f32.mrb[0].mxu0
      %v608 = vadd.f32 %v259, %v607
      %v609 = vpop.f32.mrb[0].mxu0
      %610 = vmatprep.mubr.f32.mxu0 0.0
      %611 = vmatmul.mubr.f32.gmra.mrb[0].mxu0 %v231
      %v612 = vpop.f32.mrb[0].mxu0
      %v613 = vadd.f32 %v259, %v612
      %v614 = vpop.f32.mrb[0].mxu0
      %615 = vmatprep.mubr.f32.mxu0 0.0
      %616 = vmatmul.mubr.f32.gmra.mrb[0].mxu0 %v232
      %v617 = vpop.f32.mrb[0].mxu0
      %v618 = vadd.f32 %v259, %v617
      %v619 = vpop.f32.mrb[0].mxu0
      %620 = vmatprep.mubr.f32.mxu0 0.0
      %621 = vmatmul.mubr.f32.gmra.mrb[0].mxu0 %v233
      %v622 = vpop.f32.mrb[0].mxu0
      %v623 = vadd.f32 %v259, %v622
      %v624 = vpop.f32.mrb[0].mxu0
      %625 = vmatprep.mubr.f32.mxu0 0.0
      %626 = vmatmul.mubr.f32.gmra.mrb[0].mxu0 %v234
      %v627 = vpop.f32.mrb[0].mxu0
      %v628 = vadd.f32 %v259, %v627
      %v629 = vpop.f32.mrb[0].mxu0
      %630 = vmatprep.mubr.f32.mxu0 0.0
      %631 = vmatmul.mubr.f32.gmra.mrb[0].mxu0 %v235
      %v632 = vpop.f32.mrb[0].mxu0
      %v633 = vadd.f32 %v259, %v632
      %v634 = vpop.f32.mrb[0].mxu0
      %635 = vmatprep.mubr.f32.mxu0 0.0
      %636 = vmatmul.mubr.f32.gmra.mrb[0].mxu0 %v236
      %v637 = vpop.f32.mrb[0].mxu0
      %v638 = vadd.f32 %v259, %v637
      %v639 = vpop.f32.mrb[0].mxu0
      %640 = vmatprep.mubr.f32.mxu0 0.0
      %641 = vmatmul.mubr.f32.gmra.mrb[0].mxu0 %v237
      %v642 = vpop.f32.mrb[0].mxu0
      %v643 = vadd.f32 %v259, %v642
      %v644 = vpop.f32.mrb[0].mxu0
      %645 = vdwg.mxu0
      %vm646 = vcmp.gt.f32.partialorder %v328, 0.0
      %vm647 = vcmp.gt.f32.partialorder %v333, 0.0
      %vm648 = vcmp.gt.f32.partialorder %v338, 0.0
      %vm649 = vcmp.gt.f32.partialorder %v343, 0.0
      %vm650 = vcmp.gt.f32.partialorder %v348, 0.0
      %vm651 = vcmp.gt.f32.partialorder %v353, 0.0
      %vm652 = vcmp.gt.f32.partialorder %v358, 0.0
      %vm653 = vcmp.gt.f32.partialorder %v363, 0.0
      %vm654 = vcmp.gt.f32.partialorder %v368, 0.0
      %vm655 = vcmp.gt.f32.partialorder %v373, 0.0
      %vm656 = vcmp.gt.f32.partialorder %v378, 0.0
      %vm657 = vcmp.gt.f32.partialorder %v383, 0.0
      %vm658 = vcmp.gt.f32.partialorder %v388, 0.0
      %vm659 = vcmp.gt.f32.partialorder %v393, 0.0
      %vm660 = vcmp.gt.f32.partialorder %v398, 0.0
      %vm661 = vcmp.gt.f32.partialorder %v403, 0.0
      %vm662 = vcmp.gt.f32.partialorder %v408, 0.0
      %vm663 = vcmp.gt.f32.partialorder %v413, 0.0
      %vm664 = vcmp.gt.f32.partialorder %v418, 0.0
      %vm665 = vcmp.gt.f32.partialorder %v423, 0.0
      %vm666 = vcmp.gt.f32.partialorder %v428, 0.0
      %vm667 = vcmp.gt.f32.partialorder %v433, 0.0
      %vm668 = vcmp.gt.f32.partialorder %v438, 0.0
      %vm669 = vcmp.gt.f32.partialorder %v443, 0.0
      %vm670 = vcmp.gt.f32.partialorder %v448, 0.0
      %vm671 = vcmp.gt.f32.partialorder %v453, 0.0
      %vm672 = vcmp.gt.f32.partialorder %v458, 0.0
      %vm673 = vcmp.gt.f32.partialorder %v463, 0.0
      %vm674 = vcmp.gt.f32.partialorder %v468, 0.0
      %vm675 = vcmp.gt.f32.partialorder %v473, 0.0
      %vm676 = vcmp.gt.f32.partialorder %v478, 0.0
      %vm677 = vcmp.gt.f32.partialorder %v483, 0.0
      %vm678 = vcmp.gt.f32.partialorder %v488, 0.0
      %vm679 = vcmp.gt.f32.partialorder %v493, 0.0
      %vm680 = vcmp.gt.f32.partialorder %v498, 0.0
      %vm681 = vcmp.gt.f32.partialorder %v503, 0.0
      %vm682 = vcmp.gt.f32.partialorder %v508, 0.0
      %vm683 = vcmp.gt.f32.partialorder %v513, 0.0
      %vm684 = vcmp.gt.f32.partialorder %v518, 0.0
      %vm685 = vcmp.gt.f32.partialorder %v523, 0.0
      %vm686 = vcmp.gt.f32.partialorder %v528, 0.0
      %vm687 = vcmp.gt.f32.partialorder %v533, 0.0
      %vm688 = vcmp.gt.f32.partialorder %v538, 0.0
      %vm689 = vcmp.gt.f32.partialorder %v543, 0.0
      %vm690 = vcmp.gt.f32.partialorder %v548, 0.0
      %vm691 = vcmp.gt.f32.partialorder %v553, 0.0
      %vm692 = vcmp.gt.f32.partialorder %v558, 0.0
      %vm693 = vcmp.gt.f32.partialorder %v563, 0.0
      %vm694 = vcmp.gt.f32.partialorder %v568, 0.0
      %vm695 = vcmp.gt.f32.partialorder %v573, 0.0
      %vm696 = vcmp.gt.f32.partialorder %v578, 0.0
      %vm697 = vcmp.gt.f32.partialorder %v583, 0.0
      %vm698 = vcmp.gt.f32.partialorder %v588, 0.0
      %vm699 = vcmp.gt.f32.partialorder %v593, 0.0
      %vm700 = vcmp.gt.f32.partialorder %v598, 0.0
      %vm701 = vcmp.gt.f32.partialorder %v603, 0.0
      %vm702 = vcmp.gt.f32.partialorder %v608, 0.0
      %vm703 = vcmp.gt.f32.partialorder %v613, 0.0
      %vm704 = vcmp.gt.f32.partialorder %v618, 0.0
      %vm705 = vcmp.gt.f32.partialorder %v623, 0.0
      %vm706 = vcmp.gt.f32.partialorder %v628, 0.0
      %vm707 = vcmp.gt.f32.partialorder %v633, 0.0
      %vm708 = vcmp.gt.f32.partialorder %v638, 0.0
      %vm709 = vcmp.gt.f32.partialorder %v643, 0.0
      %v710 = vmul.f32 %v328, 0.2
      %v711 = vmul.f32 %v333, 0.2
      %v712 = vmul.f32 %v338, 0.2
      %v713 = vmul.f32 %v343, 0.2
      %v714 = vmul.f32 %v348, 0.2
      %v715 = vmul.f32 %v353, 0.2
      %v716 = vmul.f32 %v358, 0.2
      %v717 = vmul.f32 %v363, 0.2
      %v718 = vmul.f32 %v368, 0.2
      %v719 = vmul.f32 %v373, 0.2
      %v720 = vmul.f32 %v378, 0.2
      %v721 = vmul.f32 %v383, 0.2
      %v722 = vmul.f32 %v388, 0.2
      %v723 = vmul.f32 %v393, 0.2
      %v724 = vmul.f32 %v398, 0.2
      %v725 = vmul.f32 %v403, 0.2
      %v726 = vmul.f32 %v408, 0.2
      %v727 = vmul.f32 %v413, 0.2
      %v728 = vmul.f32 %v418, 0.2
      %v729 = vmul.f32 %v423, 0.2
      %v730 = vmul.f32 %v428, 0.2
      %v731 = vmul.f32 %v433, 0.2
      %v732 = vmul.f32 %v438, 0.2
      %v733 = vmul.f32 %v443, 0.2
      %v734 = vmul.f32 %v448, 0.2
      %v735 = vmul.f32 %v453, 0.2
      %v736 = vmul.f32 %v458, 0.2
      %v737 = vmul.f32 %v463, 0.2
      %v738 = vmul.f32 %v468, 0.2
      %v739 = vmul.f32 %v473, 0.2
      %v740 = vmul.f32 %v478, 0.2
      %v741 = vmul.f32 %v483, 0.2
      %v742 = vmul.f32 %v488, 0.2
      %v743 = vmul.f32 %v493, 0.2
      %v744 = vmul.f32 %v498, 0.2
      %v745 = vmul.f32 %v503, 0.2
      %v746 = vmul.f32 %v508, 0.2
      %v747 = vmul.f32 %v513, 0.2
      %v748 = vmul.f32 %v518, 0.2
      %v749 = vmul.f32 %v523, 0.2
      %v750 = vmul.f32 %v528, 0.2
      %v751 = vmul.f32 %v533, 0.2
      %v752 = vmul.f32 %v538, 0.2
      %v753 = vmul.f32 %v543, 0.2
      %v754 = vmul.f32 %v548, 0.2
      %v755 = vmul.f32 %v553, 0.2
      %v756 = vmul.f32 %v558, 0.2
      %v757 = vmul.f32 %v563, 0.2
      %v758 = vmul.f32 %v568, 0.2
      %v759 = vmul.f32 %v573, 0.2
      %v760 = vmul.f32 %v578, 0.2
      %v761 = vmul.f32 %v583, 0.2
      %v762 = vmul.f32 %v588, 0.2
      %v763 = vmul.f32 %v593, 0.2
      %v764 = vmul.f32 %v598, 0.2
      %v765 = vmul.f32 %v603, 0.2
      %v766 = vmul.f32 %v608, 0.2
      %v767 = vmul.f32 %v613, 0.2
      %v768 = vmul.f32 %v618, 0.2
      %v769 = vmul.f32 %v623, 0.2
      %v770 = vmul.f32 %v628, 0.2
      %v771 = vmul.f32 %v633, 0.2
      %v772 = vmul.f32 %v638, 0.2
      %v773 = vmul.f32 %v643, 0.2
      %v774 = vsel %vm646, %v328, %v710
      %v775 = vsel %vm647, %v333, %v711
      %v776 = vsel %vm648, %v338, %v712
      %v777 = vsel %vm649, %v343, %v713
      %v778 = vsel %vm650, %v348, %v714
      %v779 = vsel %vm651, %v353, %v715
      %v780 = vsel %vm652, %v358, %v716
      %v781 = vsel %vm653, %v363, %v717
      %v782 = vsel %vm654, %v368, %v718
      %v783 = vsel %vm655, %v373, %v719
      %v784 = vsel %vm656, %v378, %v720
      %v785 = vsel %vm657, %v383, %v721
      %v786 = vsel %vm658, %v388, %v722
      %v787 = vsel %vm659, %v393, %v723
      %v788 = vsel %vm660, %v398, %v724
      %v789 = vsel %vm661, %v403, %v725
      %v790 = vsel %vm662, %v408, %v726
      %v791 = vsel %vm663, %v413, %v727
      %v792 = vsel %vm664, %v418, %v728
      %v793 = vsel %vm665, %v423, %v729
      %v794 = vsel %vm666, %v428, %v730
      %v795 = vsel %vm667, %v433, %v731
      %v796 = vsel %vm668, %v438, %v732
      %v797 = vsel %vm669, %v443, %v733
      %v798 = vsel %vm670, %v448, %v734
      %v799 = vsel %vm671, %v453, %v735
      %v800 = vsel %vm672, %v458, %v736
      %v801 = vsel %vm673, %v463, %v737
      %v802 = vsel %vm674, %v468, %v738
      %v803 = vsel %vm675, %v473, %v739
      %v804 = vsel %vm676, %v478, %v740
      %v805 = vsel %vm677, %v483, %v741
      %v806 = vsel %vm678, %v488, %v742
      %v807 = vsel %vm679, %v493, %v743
      %v808 = vsel %vm680, %v498, %v744
      %v809 = vsel %vm681, %v503, %v745
      %v810 = vsel %vm682, %v508, %v746
      %v811 = vsel %vm683, %v513, %v747
      %v812 = vsel %vm684, %v518, %v748
      %v813 = vsel %vm685, %v523, %v749
      %v814 = vsel %vm686, %v528, %v750
      %v815 = vsel %vm687, %v533, %v751
      %v816 = vsel %vm688, %v538, %v752
      %v817 = vsel %vm689, %v543, %v753
      %v818 = vsel %vm690, %v548, %v754
      %v819 = vsel %vm691, %v553, %v755
      %v820 = vsel %vm692, %v558, %v756
      %v821 = vsel %vm693, %v563, %v757
      %v822 = vsel %vm694, %v568, %v758
      %v823 = vsel %vm695, %v573, %v759
      %v824 = vsel %vm696, %v578, %v760
      %v825 = vsel %vm697, %v583, %v761
      %v826 = vsel %vm698, %v588, %v762
      %v827 = vsel %vm699, %v593, %v763
      %v828 = vsel %vm700, %v598, %v764
      %v829 = vsel %vm701, %v603, %v765
      %v830 = vsel %vm702, %v608, %v766
      %v831 = vsel %vm703, %v613, %v767
      %v832 = vsel %vm704, %v618, %v768
      %v833 = vsel %vm705, %v623, %v769
      %v834 = vsel %vm706, %v628, %v770
      %v835 = vsel %vm707, %v633, %v771
      %v836 = vsel %vm708, %v638, %v772
      %v837 = vsel %vm709, %v643, %v773
      %vm838 = vcmask 261120
      %839 = vst.msk [vmem:[%s172] sm:$0xff] %vm838, %v774
      %840 = vst.msk [vmem:[%s172 + $0x8] sm:$0xff] %vm838, %v775
      %841 = vst.msk [vmem:[%s172 + $0x10] sm:$0xff] %vm838, %v776
      %842 = vst.msk [vmem:[%s172 + $0x18] sm:$0xff] %vm838, %v777
      %843 = vst.msk [vmem:[%s172 + $0x20] sm:$0xff] %vm838, %v778
      %844 = vst.msk [vmem:[%s172 + $0x28] sm:$0xff] %vm838, %v779
      %845 = vst.msk [vmem:[%s172 + $0x30] sm:$0xff] %vm838, %v780
      %846 = vst.msk [vmem:[%s172 + $0x38] sm:$0xff] %vm838, %v781
      %847 = vst.msk [vmem:[%s172 + $0x40] sm:$0xff] %vm838, %v782
      %848 = vst.msk [vmem:[%s172 + $0x48] sm:$0xff] %vm838, %v783
      %849 = vst.msk [vmem:[%s172 + $0x50] sm:$0xff] %vm838, %v784
      %850 = vst.msk [vmem:[%s172 + $0x58] sm:$0xff] %vm838, %v785
      %851 = vst.msk [vmem:[%s172 + $0x60] sm:$0xff] %vm838, %v786
      %852 = vst.msk [vmem:[%s172 + $0x68] sm:$0xff] %vm838, %v787
      %853 = vst.msk [vmem:[%s172 + $0x70] sm:$0xff] %vm838, %v788
      %854 = vst.msk [vmem:[%s172 + $0x78] sm:$0xff] %vm838, %v789
      %855 = vst.msk [vmem:[%s172 + $0x80] sm:$0xff] %vm838, %v790
      %856 = vst.msk [vmem:[%s172 + $0x88] sm:$0xff] %vm838, %v791
      %857 = vst.msk [vmem:[%s172 + $0x90] sm:$0xff] %vm838, %v792
      %858 = vst.msk [vmem:[%s172 + $0x98] sm:$0xff] %vm838, %v793
      %859 = vst.msk [vmem:[%s172 + $0xa0] sm:$0xff] %vm838, %v794
      %860 = vst.msk [vmem:[%s172 + $0xa8] sm:$0xff] %vm838, %v795
      %861 = vst.msk [vmem:[%s172 + $0xb0] sm:$0xff] %vm838, %v796
      %862 = vst.msk [vmem:[%s172 + $0xb8] sm:$0xff] %vm838, %v797
      %863 = vst.msk [vmem:[%s172 + $0xc0] sm:$0xff] %vm838, %v798
      %864 = vst.msk [vmem:[%s172 + $0xc8] sm:$0xff] %vm838, %v799
      %865 = vst.msk [vmem:[%s172 + $0xd0] sm:$0xff] %vm838, %v800
      %866 = vst.msk [vmem:[%s172 + $0xd8] sm:$0xff] %vm838, %v801
      %867 = vst.msk [vmem:[%s172 + $0xe0] sm:$0xff] %vm838, %v802
      %868 = vst.msk [vmem:[%s172 + $0xe8] sm:$0xff] %vm838, %v803
      %869 = vst.msk [vmem:[%s172 + $0xf0] sm:$0xff] %vm838, %v804
      %870 = vst.msk [vmem:[%s172 + $0xf8] sm:$0xff] %vm838, %v805
      %871 = vst.msk [vmem:[%s172 + $0x100] sm:$0xff] %vm838, %v806
      %872 = vst.msk [vmem:[%s172 + $0x108] sm:$0xff] %vm838, %v807
      %873 = vst.msk [vmem:[%s172 + $0x110] sm:$0xff] %vm838, %v808
      %874 = vst.msk [vmem:[%s172 + $0x118] sm:$0xff] %vm838, %v809
      %875 = vst.msk [vmem:[%s172 + $0x120] sm:$0xff] %vm838, %v810
      %876 = vst.msk [vmem:[%s172 + $0x128] sm:$0xff] %vm838, %v811
      %877 = vst.msk [vmem:[%s172 + $0x130] sm:$0xff] %vm838, %v812
      %878 = vst.msk [vmem:[%s172 + $0x138] sm:$0xff] %vm838, %v813
      %879 = vst.msk [vmem:[%s172 + $0x140] sm:$0xff] %vm838, %v814
      %880 = vst.msk [vmem:[%s172 + $0x148] sm:$0xff] %vm838, %v815
      %881 = vst.msk [vmem:[%s172 + $0x150] sm:$0xff] %vm838, %v816
      %882 = vst.msk [vmem:[%s172 + $0x158] sm:$0xff] %vm838, %v817
      %883 = vst.msk [vmem:[%s172 + $0x160] sm:$0xff] %vm838, %v818
      %884 = vst.msk [vmem:[%s172 + $0x168] sm:$0xff] %vm838, %v819
      %885 = vst.msk [vmem:[%s172 + $0x170] sm:$0xff] %vm838, %v820
      %886 = vst.msk [vmem:[%s172 + $0x178] sm:$0xff] %vm838, %v821
      %887 = vst.msk [vmem:[%s172 + $0x180] sm:$0xff] %vm838, %v822
      %888 = vst.msk [vmem:[%s172 + $0x188] sm:$0xff] %vm838, %v823
      %889 = vst.msk [vmem:[%s172 + $0x190] sm:$0xff] %vm838, %v824
      %890 = vst.msk [vmem:[%s172 + $0x198] sm:$0xff] %vm838, %v825
      %891 = vst.msk [vmem:[%s172 + $0x1a0] sm:$0xff] %vm838, %v826
      %892 = vst.msk [vmem:[%s172 + $0x1a8] sm:$0xff] %vm838, %v827
      %893 = vst.msk [vmem:[%s172 + $0x1b0] sm:$0xff] %vm838, %v828
      %894 = vst.msk [vmem:[%s172 + $0x1b8] sm:$0xff] %vm838, %v829
      %895 = vst.msk [vmem:[%s172 + $0x1c0] sm:$0xff] %vm838, %v830
      %896 = vst.msk [vmem:[%s172 + $0x1c8] sm:$0xff] %vm838, %v831
      %897 = vst.msk [vmem:[%s172 + $0x1d0] sm:$0xff] %vm838, %v832
      %898 = vst.msk [vmem:[%s172 + $0x1d8] sm:$0xff] %vm838, %v833
      %899 = vst.msk [vmem:[%s172 + $0x1e0] sm:$0xff] %vm838, %v834
      %900 = vst.msk [vmem:[%s172 + $0x1e8] sm:$0xff] %vm838, %v835
      %901 = vst.msk [vmem:[%s172 + $0x1f0] sm:$0xff] %vm838, %v836
      %902 = vst.msk [vmem:[%s172 + $0x1f8] sm:$0xff] %vm838, %v837
      %s903 = smul.u32 64, %s14
      %p904 = scmp.lt.s32.totalorder %s903, 127
      %s905 = scalar_select %p904, %s903, 127
      %s906 = smul.addr %s905, 8
      %s907 = scalar_lea.vmem %s3, %s906
      // Predicated region
      $region33: #{discriminator_forward.3} parent=31 // pred_check
        %p908 = pneg %p100
      $region34: #{discriminator_forward.3} parent=31 // pred_check_branch
        %910 = sbr.rel (%p908) target = $region36
      $region35: #{discriminator_forward.3} parent=31 // pred_region
        %s911 = smul.u32 64, %s14
      $region36: #{discriminator_forward.3} parent=31 // pred_fallthru
        _
    $region32: #{discriminator_forward.3} parent=5 // pred_fallthru
      _
    %p912 = scmp.le.s32.totalorder 2, %s9
    // Predicated region
    $region37: #{discriminator_forward.3} parent=5 // pred_check
      %p913 = pneg %p912
    $region38: #{discriminator_forward.3} parent=5 // pred_check_branch
      %915 = sbr.rel (%p913) target = $region40
    $region39: #{discriminator_forward.3} parent=5 // pred_region
      %s916 = ssub.s32 %s9, 2
      // Predicated region
      $region41: #{discriminator_forward.3} parent=39 // pred_check
        %p917 = pneg %p106
      $region42: #{discriminator_forward.3} parent=39 // pred_check_branch
        %919 = sbr.rel (%p917) target = $region44
      $region43: #{discriminator_forward.3} parent=39 // pred_region
        %s920 = smul.u32 64, %s15
        %p921 = scmp.lt.s32.totalorder %s920, 127
        %s922 = scalar_select %p921, %s920, 127
        %s923 = smul.addr %s922, 8
        %s924 = scalar_lea.vmem %s3, %s923
      $region44: #{discriminator_forward.3} parent=39 // pred_fallthru
        _
    $region40: #{discriminator_forward.3} parent=5 // pred_fallthru
      _
  $region6: #{discriminator_forward.3} parent=0 // loop_footer
    %s13 = sadd.s32 1, %s9
  $region7: #{discriminator_forward.3} parent=0 // loop_footer_branch
    %8 = sbr.rel target = $region3
  $region8: #{discriminator_forward.3} parent=0 // loop_exit
    _

// kernel: discriminator_forward.4
$region0: #{discriminator_forward.4}
  #allocation0 [shape = 'u32[]', space=smem, size = 0x4, offset = 0x4, fixed_abs, tag = 'smem constant byte address 0x4 - core index']
  #allocation1 [shape = 'u32[144,128]{1,0:T(1,128)}', space=vmem, size = 0x12000, scoped, tag = 'internal scratch']
  #allocation2 [shape = 'f32[256,64]{1,0:T(8,128)}', space=vmem, size = 0x20000, scoped, tag = 'scratch operand']
  %s0 = inlined_call_operand.vmem [shape: f32[256,512], index: 0, kind: input, shape index: {}]
  %s1 = inlined_call_operand.vmem [shape: f32[512,64], index: 1, kind: input, shape index: {}]
  %s2 = inlined_call_operand.vmem [shape: f32[1,64], index: 2, kind: input, shape index: {}]
  %s3 = inlined_call_operand.vmem [shape: f32[1,64], index: 3, kind: input, shape index: {}]
  %s4 = inlined_call_operand.vmem [shape: f32[1,64], index: 4, kind: input, shape index: {}]
  %s5 = inlined_call_operand.vmem [shape: f32[256,64], index: 5, kind: output, shape index: {}]
  %s6 = sld [smem:[#allocation0]]
  $region38: #{discriminator_forward.4} parent=0
    _
  %s8 = ssub.s32 1, %s6
  %s9 = scalar_select 0, %s8, %s6
  // Predicated region
  $region2: #{discriminator_forward.4} parent=0 // pred_check
    _
  $region3: #{discriminator_forward.4} parent=0 // pred_check_branch
    %11 = sbr.rel (0) target = $region5
  $region4: #{discriminator_forward.4} parent=0 // pred_region
    _
  $region5: #{discriminator_forward.4} parent=0 // pred_fallthru
    _
  // Predicated region
  $region6: #{discriminator_forward.4} parent=0 // pred_check
    _
  $region7: #{discriminator_forward.4} parent=0 // pred_check_branch
    %13 = sbr.rel (0) target = $region9
  $region8: #{discriminator_forward.4} parent=0 // pred_region
    _
  $region9: #{discriminator_forward.4} parent=0 // pred_fallthru
    _
  // Predicated region
  $region10: #{discriminator_forward.4} parent=0 // pred_check
    _
  $region11: #{discriminator_forward.4} parent=0 // pred_check_branch
    %15 = sbr.rel (0) target = $region13
  $region12: #{discriminator_forward.4} parent=0 // pred_region
    _
  $region13: #{discriminator_forward.4} parent=0 // pred_fallthru
    _
  // Predicated region
  $region14: #{discriminator_forward.4} parent=0 // pred_check
    _
  $region15: #{discriminator_forward.4} parent=0 // pred_check_branch
    %17 = sbr.rel (0) target = $region17
  $region16: #{discriminator_forward.4} parent=0 // pred_region
    _
  $region17: #{discriminator_forward.4} parent=0 // pred_fallthru
    _
  // Predicated region
  $region18: #{discriminator_forward.4} parent=0 // pred_check
    _
  $region19: #{discriminator_forward.4} parent=0 // pred_check_branch
    %19 = sbr.rel (0) target = $region21
  $region20: #{discriminator_forward.4} parent=0 // pred_region
    _
  $region21: #{discriminator_forward.4} parent=0 // pred_fallthru
    _
  %p20 = scmp.eq.s32.totalorder 0, 0
  // Predicated region
  $region22: #{discriminator_forward.4} parent=0 // pred_check
    %p21 = pneg %p20
  $region23: #{discriminator_forward.4} parent=0 // pred_check_branch
    %23 = sbr.rel (%p21) target = $region25
  $region24: #{discriminator_forward.4} parent=0 // pred_region
    %vm24 = vcmask 523264
    %25 = vst.msk [vmem:[#allocation2] sm:$0xff] %vm24, 0.0
    %26 = vst.msk [vmem:[#allocation2 + $0x8] sm:$0xff] %vm24, 0.0
    %27 = vst.msk [vmem:[#allocation2 + $0x10] sm:$0xff] %vm24, 0.0
    %28 = vst.msk [vmem:[#allocation2 + $0x18] sm:$0xff] %vm24, 0.0
    %29 = vst.msk [vmem:[#allocation2 + $0x20] sm:$0xff] %vm24, 0.0
    %30 = vst.msk [vmem:[#allocation2 + $0x28] sm:$0xff] %vm24, 0.0
    %31 = vst.msk [vmem:[#allocation2 + $0x30] sm:$0xff] %vm24, 0.0
    %32 = vst.msk [vmem:[#allocation2 + $0x38] sm:$0xff] %vm24, 0.0
    %33 = vst.msk [vmem:[#allocation2 + $0x40] sm:$0xff] %vm24, 0.0
    %34 = vst.msk [vmem:[#allocation2 + $0x48] sm:$0xff] %vm24, 0.0
    %35 = vst.msk [vmem:[#allocation2 + $0x50] sm:$0xff] %vm24, 0.0
    %36 = vst.msk [vmem:[#allocation2 + $0x58] sm:$0xff] %vm24, 0.0
    %37 = vst.msk [vmem:[#allocation2 + $0x60] sm:$0xff] %vm24, 0.0
    %38 = vst.msk [vmem:[#allocation2 + $0x68] sm:$0xff] %vm24, 0.0
    %39 = vst.msk [vmem:[#allocation2 + $0x70] sm:$0xff] %vm24, 0.0
    %40 = vst.msk [vmem:[#allocation2 + $0x78] sm:$0xff] %vm24, 0.0
    %41 = vst.msk [vmem:[#allocation2 + $0x80] sm:$0xff] %vm24, 0.0
    %42 = vst.msk [vmem:[#allocation2 + $0x88] sm:$0xff] %vm24, 0.0
    %43 = vst.msk [vmem:[#allocation2 + $0x90] sm:$0xff] %vm24, 0.0
    %44 = vst.msk [vmem:[#allocation2 + $0x98] sm:$0xff] %vm24, 0.0
    %45 = vst.msk [vmem:[#allocation2 + $0xa0] sm:$0xff] %vm24, 0.0
    %46 = vst.msk [vmem:[#allocation2 + $0xa8] sm:$0xff] %vm24, 0.0
    %47 = vst.msk [vmem:[#allocation2 + $0xb0] sm:$0xff] %vm24, 0.0
    %48 = vst.msk [vmem:[#allocation2 + $0xb8] sm:$0xff] %vm24, 0.0
    %49 = vst.msk [vmem:[#allocation2 + $0xc0] sm:$0xff] %vm24, 0.0
    %50 = vst.msk [vmem:[#allocation2 + $0xc8] sm:$0xff] %vm24, 0.0
    %51 = vst.msk [vmem:[#allocation2 + $0xd0] sm:$0xff] %vm24, 0.0
    %52 = vst.msk [vmem:[#allocation2 + $0xd8] sm:$0xff] %vm24, 0.0
    %53 = vst.msk [vmem:[#allocation2 + $0xe0] sm:$0xff] %vm24, 0.0
    %54 = vst.msk [vmem:[#allocation2 + $0xe8] sm:$0xff] %vm24, 0.0
    %55 = vst.msk [vmem:[#allocation2 + $0xf0] sm:$0xff] %vm24, 0.0
    %56 = vst.msk [vmem:[#allocation2 + $0xf8] sm:$0xff] %vm24, 0.0
  $region25: #{discriminator_forward.4} parent=0 // pred_fallthru
    _
  %v57 = vld [vmem:[#allocation2] sm:$0xff]
  %v58 = vld [vmem:[#allocation2 + $0x8] sm:$0xff]
  %v59 = vld [vmem:[#allocation2 + $0x10] sm:$0xff]
  %v60 = vld [vmem:[#allocation2 + $0x18] sm:$0xff]
  %v61 = vld [vmem:[#allocation2 + $0x20] sm:$0xff]
  %v62 = vld [vmem:[#allocation2 + $0x28] sm:$0xff]
  %v63 = vld [vmem:[#allocation2 + $0x30] sm:$0xff]
  %v64 = vld [vmem:[#allocation2 + $0x38] sm:$0xff]
  %v65 = vld [vmem:[#allocation2 + $0x40] sm:$0xff]
  %v66 = vld [vmem:[#allocation2 + $0x48] sm:$0xff]
  %v67 = vld [vmem:[#allocation2 + $0x50] sm:$0xff]
  %v68 = vld [vmem:[#allocation2 + $0x58] sm:$0xff]
  %v69 = vld [vmem:[#allocation2 + $0x60] sm:$0xff]
  %v70 = vld [vmem:[#allocation2 + $0x68] sm:$0xff]
  %v71 = vld [vmem:[#allocation2 + $0x70] sm:$0xff]
  %v72 = vld [vmem:[#allocation2 + $0x78] sm:$0xff]
  %v73 = vld [vmem:[#allocation2 + $0x80] sm:$0xff]
  %v74 = vld [vmem:[#allocation2 + $0x88] sm:$0xff]
  %v75 = vld [vmem:[#allocation2 + $0x90] sm:$0xff]
  %v76 = vld [vmem:[#allocation2 + $0x98] sm:$0xff]
  %v77 = vld [vmem:[#allocation2 + $0xa0] sm:$0xff]
  %v78 = vld [vmem:[#allocation2 + $0xa8] sm:$0xff]
  %v79 = vld [vmem:[#allocation2 + $0xb0] sm:$0xff]
  %v80 = vld [vmem:[#allocation2 + $0xb8] sm:$0xff]
  %v81 = vld [vmem:[#allocation2 + $0xc0] sm:$0xff]
  %v82 = vld [vmem:[#allocation2 + $0xc8] sm:$0xff]
  %v83 = vld [vmem:[#allocation2 + $0xd0] sm:$0xff]
  %v84 = vld [vmem:[#allocation2 + $0xd8] sm:$0xff]
  %v85 = vld [vmem:[#allocation2 + $0xe0] sm:$0xff]
  %v86 = vld [vmem:[#allocation2 + $0xe8] sm:$0xff]
  %v87 = vld [vmem:[#allocation2 + $0xf0] sm:$0xff]
  %v88 = vld [vmem:[#allocation2 + $0xf8] sm:$0xff]
  %v89 = vld [vmem:[%s0] sm:$0xff]
  %v90 = vld [vmem:[%s0 + $0x8] sm:$0xff]
  %v91 = vld [vmem:[%s0 + $0x10] sm:$0xff]
  %v92 = vld [vmem:[%s0 + $0x18] sm:$0xff]
  %v93 = vld [vmem:[%s0 + $0x20] sm:$0xff]
  %v94 = vld [vmem:[%s0 + $0x28] sm:$0xff]
  %v95 = vld [vmem:[%s0 + $0x30] sm:$0xff]
  %v96 = vld [vmem:[%s0 + $0x38] sm:$0xff]
  %v97 = vld [vmem:[%s0 + $0x40] sm:$0xff]
  %v98 = vld [vmem:[%s0 + $0x48] sm:$0xff]
  %v99 = vld [vmem:[%s0 + $0x50] sm:$0xff]
  %v100 = vld [vmem:[%s0 + $0x58] sm:$0xff]
  %v101 = vld [vmem:[%s0 + $0x60] sm:$0xff]
  %v102 = vld [vmem:[%s0 + $0x68] sm:$0xff]
  %v103 = vld [vmem:[%s0 + $0x70] sm:$0xff]
  %v104 = vld [vmem:[%s0 + $0x78] sm:$0xff]
  %v105 = vld [vmem:[%s0 + $0x80] sm:$0xff]
  %v106 = vld [vmem:[%s0 + $0x88] sm:$0xff]
  %v107 = vld [vmem:[%s0 + $0x90] sm:$0xff]
  %v108 = vld [vmem:[%s0 + $0x98] sm:$0xff]
  %v109 = vld [vmem:[%s0 + $0xa0] sm:$0xff]
  %v110 = vld [vmem:[%s0 + $0xa8] sm:$0xff]
  %v111 = vld [vmem:[%s0 + $0xb0] sm:$0xff]
  %v112 = vld [vmem:[%s0 + $0xb8] sm:$0xff]
  %v113 = vld [vmem:[%s0 + $0xc0] sm:$0xff]
  %v114 = vld [vmem:[%s0 + $0xc8] sm:$0xff]
  %v115 = vld [vmem:[%s0 + $0xd0] sm:$0xff]
  %v116 = vld [vmem:[%s0 + $0xd8] sm:$0xff]
  %v117 = vld [vmem:[%s0 + $0xe0] sm:$0xff]
  %v118 = vld [vmem:[%s0 + $0xe8] sm:$0xff]
  %v119 = vld [vmem:[%s0 + $0xf0] sm:$0xff]
  %v120 = vld [vmem:[%s0 + $0xf8] sm:$0xff]
  %v121 = vld [vmem:[%s0 + $0x100] sm:$0xff]
  %v122 = vld [vmem:[%s0 + $0x108] sm:$0xff]
  %v123 = vld [vmem:[%s0 + $0x110] sm:$0xff]
  %v124 = vld [vmem:[%s0 + $0x118] sm:$0xff]
  %v125 = vld [vmem:[%s0 + $0x120] sm:$0xff]
  %v126 = vld [vmem:[%s0 + $0x128] sm:$0xff]
  %v127 = vld [vmem:[%s0 + $0x130] sm:$0xff]
  %v128 = vld [vmem:[%s0 + $0x138] sm:$0xff]
  %v129 = vld [vmem:[%s0 + $0x140] sm:$0xff]
  %v130 = vld [vmem:[%s0 + $0x148] sm:$0xff]
  %v131 = vld [vmem:[%s0 + $0x150] sm:$0xff]
  %v132 = vld [vmem:[%s0 + $0x158] sm:$0xff]
  %v133 = vld [vmem:[%s0 + $0x160] sm:$0xff]
  %v134 = vld [vmem:[%s0 + $0x168] sm:$0xff]
  %v135 = vld [vmem:[%s0 + $0x170] sm:$0xff]
  %v136 = vld [vmem:[%s0 + $0x178] sm:$0xff]
  %v137 = vld [vmem:[%s0 + $0x180] sm:$0xff]
  %v138 = vld [vmem:[%s0 + $0x188] sm:$0xff]
  %v139 = vld [vmem:[%s0 + $0x190] sm:$0xff]
  %v140 = vld [vmem:[%s0 + $0x198] sm:$0xff]
  %v141 = vld [vmem:[%s0 + $0x1a0] sm:$0xff]
  %v142 = vld [vmem:[%s0 + $0x1a8] sm:$0xff]
  %v143 = vld [vmem:[%s0 + $0x1b0] sm:$0xff]
  %v144 = vld [vmem:[%s0 + $0x1b8] sm:$0xff]
  %v145 = vld [vmem:[%s0 + $0x1c0] sm:$0xff]
  %v146 = vld [vmem:[%s0 + $0x1c8] sm:$0xff]
  %v147 = vld [vmem:[%s0 + $0x1d0] sm:$0xff]
  %v148 = vld [vmem:[%s0 + $0x1d8] sm:$0xff]
  %v149 = vld [vmem:[%s0 + $0x1e0] sm:$0xff]
  %v150 = vld [vmem:[%s0 + $0x1e8] sm:$0xff]
  %v151 = vld [vmem:[%s0 + $0x1f0] sm:$0xff]
  %v152 = vld [vmem:[%s0 + $0x1f8] sm:$0xff]
  %v153 = vld [vmem:[%s0 + $0x200] sm:$0xff]
  %v154 = vld [vmem:[%s0 + $0x208] sm:$0xff]
  %v155 = vld [vmem:[%s0 + $0x210] sm:$0xff]
  %v156 = vld [vmem:[%s0 + $0x218] sm:$0xff]
  %v157 = vld [vmem:[%s0 + $0x220] sm:$0xff]
  %v158 = vld [vmem:[%s0 + $0x228] sm:$0xff]
  %v159 = vld [vmem:[%s0 + $0x230] sm:$0xff]
  %v160 = vld [vmem:[%s0 + $0x238] sm:$0xff]
  %v161 = vld [vmem:[%s0 + $0x240] sm:$0xff]
  %v162 = vld [vmem:[%s0 + $0x248] sm:$0xff]
  %v163 = vld [vmem:[%s0 + $0x250] sm:$0xff]
  %v164 = vld [vmem:[%s0 + $0x258] sm:$0xff]
  %v165 = vld [vmem:[%s0 + $0x260] sm:$0xff]
  %v166 = vld [vmem:[%s0 + $0x268] sm:$0xff]
  %v167 = vld [vmem:[%s0 + $0x270] sm:$0xff]
  %v168 = vld [vmem:[%s0 + $0x278] sm:$0xff]
  %v169 = vld [vmem:[%s0 + $0x280] sm:$0xff]
  %v170 = vld [vmem:[%s0 + $0x288] sm:$0xff]
  %v171 = vld [vmem:[%s0 + $0x290] sm:$0xff]
  %v172 = vld [vmem:[%s0 + $0x298] sm:$0xff]
  %v173 = vld [vmem:[%s0 + $0x2a0] sm:$0xff]
  %v174 = vld [vmem:[%s0 + $0x2a8] sm:$0xff]
  %v175 = vld [vmem:[%s0 + $0x2b0] sm:$0xff]
  %v176 = vld [vmem:[%s0 + $0x2b8] sm:$0xff]
  %v177 = vld [vmem:[%s0 + $0x2c0] sm:$0xff]
  %v178 = vld [vmem:[%s0 + $0x2c8] sm:$0xff]
  %v179 = vld [vmem:[%s0 + $0x2d0] sm:$0xff]
  %v180 = vld [vmem:[%s0 + $0x2d8] sm:$0xff]
  %v181 = vld [vmem:[%s0 + $0x2e0] sm:$0xff]
  %v182 = vld [vmem:[%s0 + $0x2e8] sm:$0xff]
  %v183 = vld [vmem:[%s0 + $0x2f0] sm:$0xff]
  %v184 = vld [vmem:[%s0 + $0x2f8] sm:$0xff]
  %v185 = vld [vmem:[%s0 + $0x300] sm:$0xff]
  %v186 = vld [vmem:[%s0 + $0x308] sm:$0xff]
  %v187 = vld [vmem:[%s0 + $0x310] sm:$0xff]
  %v188 = vld [vmem:[%s0 + $0x318] sm:$0xff]
  %v189 = vld [vmem:[%s0 + $0x320] sm:$0xff]
  %v190 = vld [vmem:[%s0 + $0x328] sm:$0xff]
  %v191 = vld [vmem:[%s0 + $0x330] sm:$0xff]
  %v192 = vld [vmem:[%s0 + $0x338] sm:$0xff]
  %v193 = vld [vmem:[%s0 + $0x340] sm:$0xff]
  %v194 = vld [vmem:[%s0 + $0x348] sm:$0xff]
  %v195 = vld [vmem:[%s0 + $0x350] sm:$0xff]
  %v196 = vld [vmem:[%s0 + $0x358] sm:$0xff]
  %v197 = vld [vmem:[%s0 + $0x360] sm:$0xff]
  %v198 = vld [vmem:[%s0 + $0x368] sm:$0xff]
  %v199 = vld [vmem:[%s0 + $0x370] sm:$0xff]
  %v200 = vld [vmem:[%s0 + $0x378] sm:$0xff]
  %v201 = vld [vmem:[%s0 + $0x380] sm:$0xff]
  %v202 = vld [vmem:[%s0 + $0x388] sm:$0xff]
  %v203 = vld [vmem:[%s0 + $0x390] sm:$0xff]
  %v204 = vld [vmem:[%s0 + $0x398] sm:$0xff]
  %v205 = vld [vmem:[%s0 + $0x3a0] sm:$0xff]
  %v206 = vld [vmem:[%s0 + $0x3a8] sm:$0xff]
  %v207 = vld [vmem:[%s0 + $0x3b0] sm:$0xff]
  %v208 = vld [vmem:[%s0 + $0x3b8] sm:$0xff]
  %v209 = vld [vmem:[%s0 + $0x3c0] sm:$0xff]
  %v210 = vld [vmem:[%s0 + $0x3c8] sm:$0xff]
  %v211 = vld [vmem:[%s0 + $0x3d0] sm:$0xff]
  %v212 = vld [vmem:[%s0 + $0x3d8] sm:$0xff]
  %v213 = vld [vmem:[%s0 + $0x3e0] sm:$0xff]
  %v214 = vld [vmem:[%s0 + $0x3e8] sm:$0xff]
  %v215 = vld [vmem:[%s0 + $0x3f0] sm:$0xff]
  %v216 = vld [vmem:[%s0 + $0x3f8] sm:$0xff]
  %v217 = vld [vmem:[%s1] sm:$0xff]
  %v218 = vld [vmem:[%s1 + $0x8] sm:$0xff]
  %v219 = vld [vmem:[%s1 + $0x10] sm:$0xff]
  %v220 = vld [vmem:[%s1 + $0x18] sm:$0xff]
  %v221 = vld [vmem:[%s1 + $0x20] sm:$0xff]
  %v222 = vld [vmem:[%s1 + $0x28] sm:$0xff]
  %v223 = vld [vmem:[%s1 + $0x30] sm:$0xff]
  %v224 = vld [vmem:[%s1 + $0x38] sm:$0xff]
  %v225 = vld [vmem:[%s1 + $0x40] sm:$0xff]
  %v226 = vld [vmem:[%s1 + $0x48] sm:$0xff]
  %v227 = vld [vmem:[%s1 + $0x50] sm:$0xff]
  %v228 = vld [vmem:[%s1 + $0x58] sm:$0xff]
  %v229 = vld [vmem:[%s1 + $0x60] sm:$0xff]
  %v230 = vld [vmem:[%s1 + $0x68] sm:$0xff]
  %v231 = vld [vmem:[%s1 + $0x70] sm:$0xff]
  %v232 = vld [vmem:[%s1 + $0x78] sm:$0xff]
  %v233 = vld [vmem:[%s1 + $0x80] sm:$0xff]
  %v234 = vld [vmem:[%s1 + $0x88] sm:$0xff]
  %v235 = vld [vmem:[%s1 + $0x90] sm:$0xff]
  %v236 = vld [vmem:[%s1 + $0x98] sm:$0xff]
  %v237 = vld [vmem:[%s1 + $0xa0] sm:$0xff]
  %v238 = vld [vmem:[%s1 + $0xa8] sm:$0xff]
  %v239 = vld [vmem:[%s1 + $0xb0] sm:$0xff]
  %v240 = vld [vmem:[%s1 + $0xb8] sm:$0xff]
  %v241 = vld [vmem:[%s1 + $0xc0] sm:$0xff]
  %v242 = vld [vmem:[%s1 + $0xc8] sm:$0xff]
  %v243 = vld [vmem:[%s1 + $0xd0] sm:$0xff]
  %v244 = vld [vmem:[%s1 + $0xd8] sm:$0xff]
  %v245 = vld [vmem:[%s1 + $0xe0] sm:$0xff]
  %v246 = vld [vmem:[%s1 + $0xe8] sm:$0xff]
  %v247 = vld [vmem:[%s1 + $0xf0] sm:$0xff]
  %v248 = vld [vmem:[%s1 + $0xf8] sm:$0xff]
  %v249 = vld [vmem:[%s1 + $0x100] sm:$0xff]
  %v250 = vld [vmem:[%s1 + $0x108] sm:$0xff]
  %v251 = vld [vmem:[%s1 + $0x110] sm:$0xff]
  %v252 = vld [vmem:[%s1 + $0x118] sm:$0xff]
  %v253 = vld [vmem:[%s1 + $0x120] sm:$0xff]
  %v254 = vld [vmem:[%s1 + $0x128] sm:$0xff]
  %v255 = vld [vmem:[%s1 + $0x130] sm:$0xff]
  %v256 = vld [vmem:[%s1 + $0x138] sm:$0xff]
  %v257 = vld [vmem:[%s1 + $0x140] sm:$0xff]
  %v258 = vld [vmem:[%s1 + $0x148] sm:$0xff]
  %v259 = vld [vmem:[%s1 + $0x150] sm:$0xff]
  %v260 = vld [vmem:[%s1 + $0x158] sm:$0xff]
  %v261 = vld [vmem:[%s1 + $0x160] sm:$0xff]
  %v262 = vld [vmem:[%s1 + $0x168] sm:$0xff]
  %v263 = vld [vmem:[%s1 + $0x170] sm:$0xff]
  %v264 = vld [vmem:[%s1 + $0x178] sm:$0xff]
  %v265 = vld [vmem:[%s1 + $0x180] sm:$0xff]
  %v266 = vld [vmem:[%s1 + $0x188] sm:$0xff]
  %v267 = vld [vmem:[%s1 + $0x190] sm:$0xff]
  %v268 = vld [vmem:[%s1 + $0x198] sm:$0xff]
  %v269 = vld [vmem:[%s1 + $0x1a0] sm:$0xff]
  %v270 = vld [vmem:[%s1 + $0x1a8] sm:$0xff]
  %v271 = vld [vmem:[%s1 + $0x1b0] sm:$0xff]
  %v272 = vld [vmem:[%s1 + $0x1b8] sm:$0xff]
  %v273 = vld [vmem:[%s1 + $0x1c0] sm:$0xff]
  %v274 = vld [vmem:[%s1 + $0x1c8] sm:$0xff]
  %v275 = vld [vmem:[%s1 + $0x1d0] sm:$0xff]
  %v276 = vld [vmem:[%s1 + $0x1d8] sm:$0xff]
  %v277 = vld [vmem:[%s1 + $0x1e0] sm:$0xff]
  %v278 = vld [vmem:[%s1 + $0x1e8] sm:$0xff]
  %v279 = vld [vmem:[%s1 + $0x1f0] sm:$0xff]
  %v280 = vld [vmem:[%s1 + $0x1f8] sm:$0xff]
  %281 = vmatprep.subr.mxu0 0.0
  %282 = vmatpush1.msra.mxu0 %v217
  %283 = vmatprep.subr.mxu0 0.0
  %284 = vmatpush1.msra.mxu0 %v218
  %285 = vmatprep.subr.mxu0 0.0
  %286 = vmatpush1.msra.mxu0 %v219
  %287 = vmatprep.subr.mxu0 0.0
  %288 = vmatpush1.msra.mxu0 %v220
  %289 = vmatprep.subr.mxu0 0.0
  %290 = vmatpush1.msra.mxu0 %v221
  %291 = vmatprep.subr.mxu0 0.0
  %292 = vmatpush1.msra.mxu0 %v222
  %293 = vmatprep.subr.mxu0 0.0
  %294 = vmatpush1.msra.mxu0 %v223
  %295 = vmatprep.subr.mxu0 0.0
  %296 = vmatpush1.msra.mxu0 %v224
  %297 = vmatprep.subr.mxu0 0.0
  %298 = vmatpush1.msra.mxu0 %v225
  %299 = vmatprep.subr.mxu0 0.0
  %300 = vmatpush1.msra.mxu0 %v226
  %301 = vmatprep.subr.mxu0 0.0
  %302 = vmatpush1.msra.mxu0 %v227
  %303 = vmatprep.subr.mxu0 0.0
  %304 = vmatpush1.msra.mxu0 %v228
  %305 = vmatprep.subr.mxu0 0.0
  %306 = vmatpush1.msra.mxu0 %v229
  %307 = vmatprep.subr.mxu0 0.0
  %308 = vmatpush1.msra.mxu0 %v230
  %309 = vmatprep.subr.mxu0 0.0
  %310 = vmatpush1.msra.mxu0 %v231
  %311 = vmatprep.subr.mxu0 0.0
  %312 = vmatpush1.msra.mxu0 %v232
  %313 = vmatprep.subr.mxu0 0.0
  %314 = vmatpush1.msra.mxu0 %v233
  %315 = vmatprep.subr.mxu0 0.0
  %316 = vmatpush1.msra.mxu0 %v234
  %317 = vmatprep.subr.mxu0 0.0
  %318 = vmatpush1.msra.mxu0 %v235
  %319 = vmatprep.subr.mxu0 0.0
  %320 = vmatpush1.msra.mxu0 %v236
  %321 = vmatprep.subr.mxu0 0.0
  %322 = vmatpush1.msra.mxu0 %v237
  %323 = vmatprep.subr.mxu0 0.0
  %324 = vmatpush1.msra.mxu0 %v238
  %325 = vmatprep.subr.mxu0 0.0
  %326 = vmatpush1.msra.mxu0 %v239
  %327 = vmatprep.subr.mxu0 0.0
  %328 = vmatpush1.msra.mxu0 %v240
  %329 = vmatprep.subr.mxu0 0.0
  %330 = vmatpush1.msra.mxu0 %v241
  %331 = vmatprep.subr.mxu0 0.0
  %332 = vmatpush1.msra.mxu0 %v242
  %333 = vmatprep.subr.mxu0 0.0
  %334 = vmatpush1.msra.mxu0 %v243
  %335 = vmatprep.subr.mxu0 0.0
  %336 = vmatpush1.msra.mxu0 %v244
  %337 = vmatprep.subr.mxu0 0.0
  %338 = vmatpush1.msra.mxu0 %v245
  %339 = vmatprep.subr.mxu0 0.0
  %340 = vmatpush1.msra.mxu0 %v246
  %341 = vmatprep.subr.mxu0 0.0
  %342 = vmatpush1.msra.mxu0 %v247
  %343 = vmatprep.subr.mxu0 0.0
  %344 = vmatpush1.msra.mxu0 %v248
  %345 = vmatprep.mubr.f32.mxu0 %v90
  %346 = vmatmul.mubr.f32.gmra.mrb[0].mxu0 %v89
  %v347 = vpop.f32.mrb[0].mxu0
  %v348 = vadd.f32 0.0, %v347
  %v349 = vpop.f32.mrb[0].mxu0
  %350 = vmatprep.mubr.f32.mxu0 %v94
  %351 = vmatmul.mubr.f32.gmra.mrb[0].mxu0 %v93
  %v352 = vpop.f32.mrb[0].mxu0
  %v353 = vadd.f32 0.0, %v352
  %v354 = vpop.f32.mrb[0].mxu0
  %355 = vmatprep.mubr.f32.mxu0 %v98
  %356 = vmatmul.mubr.f32.gmra.mrb[0].mxu0 %v97
  %v357 = vpop.f32.mrb[0].mxu0
  %v358 = vadd.f32 0.0, %v357
  %v359 = vpop.f32.mrb[0].mxu0
  %360 = vmatprep.mubr.f32.mxu0 %v102
  %361 = vmatmul.mubr.f32.gmra.mrb[0].mxu0 %v101
  %v362 = vpop.f32.mrb[0].mxu0
  %v363 = vadd.f32 0.0, %v362
  %v364 = vpop.f32.mrb[0].mxu0
  %365 = vmatprep.mubr.f32.mxu0 %v106
  %366 = vmatmul.mubr.f32.gmra.mrb[0].mxu0 %v105
  %v367 = vpop.f32.mrb[0].mxu0
  %v368 = vadd.f32 0.0, %v367
  %v369 = vpop.f32.mrb[0].mxu0
  %370 = vmatprep.mubr.f32.mxu0 %v110
  %371 = vmatmul.mubr.f32.gmra.mrb[0].mxu0 %v109
  %v372 = vpop.f32.mrb[0].mxu0
  %v373 = vadd.f32 0.0, %v372
  %v374 = vpop.f32.mrb[0].mxu0
  %375 = vmatprep.mubr.f32.mxu0 %v114
  %376 = vmatmul.mubr.f32.gmra.mrb[0].mxu0 %v113
  %v377 = vpop.f32.mrb[0].mxu0
  %v378 = vadd.f32 0.0, %v377
  %v379 = vpop.f32.mrb[0].mxu0
  %380 = vmatprep.mubr.f32.mxu0 %v118
  %381 = vmatmul.mubr.f32.gmra.mrb[0].mxu0 %v117
  %v382 = vpop.f32.mrb[0].mxu0
  %v383 = vadd.f32 0.0, %v382
  %v384 = vpop.f32.mrb[0].mxu0
  %385 = vmatprep.mubr.f32.mxu0 %v122
  %386 = vmatmul.mubr.f32.gmra.mrb[0].mxu0 %v121
  %v387 = vpop.f32.mrb[0].mxu0
  %v388 = vadd.f32 0.0, %v387
  %v389 = vpop.f32.mrb[0].mxu0
  %390 = vmatprep.mubr.f32.mxu0 %v126
  %391 = vmatmul.mubr.f32.gmra.mrb[0].mxu0 %v125
  %v392 = vpop.f32.mrb[0].mxu0
  %v393 = vadd.f32 0.0, %v392
  %v394 = vpop.f32.mrb[0].mxu0
  %395 = vmatprep.mubr.f32.mxu0 %v130
  %396 = vmatmul.mubr.f32.gmra.mrb[0].mxu0 %v129
  %v397 = vpop.f32.mrb[0].mxu0
  %v398 = vadd.f32 0.0, %v397
  %v399 = vpop.f32.mrb[0].mxu0
  %400 = vmatprep.mubr.f32.mxu0 %v134
  %401 = vmatmul.mubr.f32.gmra.mrb[0].mxu0 %v133
  %v402 = vpop.f32.mrb[0].mxu0
  %v403 = vadd.f32 0.0, %v402
  %v404 = vpop.f32.mrb[0].mxu0
  %405 = vmatprep.mubr.f32.mxu0 %v138
  %406 = vmatmul.mubr.f32.gmra.mrb[0].mxu0 %v137
  %v407 = vpop.f32.mrb[0].mxu0
  %v408 = vadd.f32 0.0, %v407
  %v409 = vpop.f32.mrb[0].mxu0
  %410 = vmatprep.mubr.f32.mxu0 %v142
  %411 = vmatmul.mubr.f32.gmra.mrb[0].mxu0 %v141
  %v412 = vpop.f32.mrb[0].mxu0
  %v413 = vadd.f32 0.0, %v412
  %v414 = vpop.f32.mrb[0].mxu0
  %415 = vmatprep.mubr.f32.mxu0 %v146
  %416 = vmatmul.mubr.f32.gmra.mrb[0].mxu0 %v145
  %v417 = vpop.f32.mrb[0].mxu0
  %v418 = vadd.f32 0.0, %v417
  %v419 = vpop.f32.mrb[0].mxu0
  %420 = vmatprep.mubr.f32.mxu0 %v150
  %421 = vmatmul.mubr.f32.gmra.mrb[0].mxu0 %v149
  %v422 = vpop.f32.mrb[0].mxu0
  %v423 = vadd.f32 0.0, %v422
  %v424 = vpop.f32.mrb[0].mxu0
  %425 = vmatprep.mubr.f32.mxu0 %v154
  %426 = vmatmul.mubr.f32.gmra.mrb[0].mxu0 %v153
  %v427 = vpop.f32.mrb[0].mxu0
  %v428 = vadd.f32 0.0, %v427
  %v429 = vpop.f32.mrb[0].mxu0
  %430 = vmatprep.mubr.f32.mxu0 %v158
  %431 = vmatmul.mubr.f32.gmra.mrb[0].mxu0 %v157
  %v432 = vpop.f32.mrb[0].mxu0
  %v433 = vadd.f32 0.0, %v432
  %v434 = vpop.f32.mrb[0].mxu0
  %435 = vmatprep.mubr.f32.mxu0 %v162
  %436 = vmatmul.mubr.f32.gmra.mrb[0].mxu0 %v161
  %v437 = vpop.f32.mrb[0].mxu0
  %v438 = vadd.f32 0.0, %v437
  %v439 = vpop.f32.mrb[0].mxu0
  %440 = vmatprep.mubr.f32.mxu0 %v166
  %441 = vmatmul.mubr.f32.gmra.mrb[0].mxu0 %v165
  %v442 = vpop.f32.mrb[0].mxu0
  %v443 = vadd.f32 0.0, %v442
  %v444 = vpop.f32.mrb[0].mxu0
  %445 = vmatprep.mubr.f32.mxu0 %v170
  %446 = vmatmul.mubr.f32.gmra.mrb[0].mxu0 %v169
  %v447 = vpop.f32.mrb[0].mxu0
  %v448 = vadd.f32 0.0, %v447
  %v449 = vpop.f32.mrb[0].mxu0
  %450 = vmatprep.mubr.f32.mxu0 %v174
  %451 = vmatmul.mubr.f32.gmra.mrb[0].mxu0 %v173
  %v452 = vpop.f32.mrb[0].mxu0
  %v453 = vadd.f32 0.0, %v452
  %v454 = vpop.f32.mrb[0].mxu0
  %455 = vmatprep.mubr.f32.mxu0 %v178
  %456 = vmatmul.mubr.f32.gmra.mrb[0].mxu0 %v177
  %v457 = vpop.f32.mrb[0].mxu0
  %v458 = vadd.f32 0.0, %v457
  %v459 = vpop.f32.mrb[0].mxu0
  %460 = vmatprep.mubr.f32.mxu0 %v182
  %461 = vmatmul.mubr.f32.gmra.mrb[0].mxu0 %v181
  %v462 = vpop.f32.mrb[0].mxu0
  %v463 = vadd.f32 0.0, %v462
  %v464 = vpop.f32.mrb[0].mxu0
  %465 = vmatprep.mubr.f32.mxu0 %v186
  %466 = vmatmul.mubr.f32.gmra.mrb[0].mxu0 %v185
  %v467 = vpop.f32.mrb[0].mxu0
  %v468 = vadd.f32 0.0, %v467
  %v469 = vpop.f32.mrb[0].mxu0
  %470 = vmatprep.mubr.f32.mxu0 %v190
  %471 = vmatmul.mubr.f32.gmra.mrb[0].mxu0 %v189
  %v472 = vpop.f32.mrb[0].mxu0
  %v473 = vadd.f32 0.0, %v472
  %v474 = vpop.f32.mrb[0].mxu0
  %475 = vmatprep.mubr.f32.mxu0 %v194
  %476 = vmatmul.mubr.f32.gmra.mrb[0].mxu0 %v193
  %v477 = vpop.f32.mrb[0].mxu0
  %v478 = vadd.f32 0.0, %v477
  %v479 = vpop.f32.mrb[0].mxu0
  %480 = vmatprep.mubr.f32.mxu0 %v198
  %481 = vmatmul.mubr.f32.gmra.mrb[0].mxu0 %v197
  %v482 = vpop.f32.mrb[0].mxu0
  %v483 = vadd.f32 0.0, %v482
  %v484 = vpop.f32.mrb[0].mxu0
  %485 = vmatprep.mubr.f32.mxu0 %v202
  %486 = vmatmul.mubr.f32.gmra.mrb[0].mxu0 %v201
  %v487 = vpop.f32.mrb[0].mxu0
  %v488 = vadd.f32 0.0, %v487
  %v489 = vpop.f32.mrb[0].mxu0
  %490 = vmatprep.mubr.f32.mxu0 %v206
  %491 = vmatmul.mubr.f32.gmra.mrb[0].mxu0 %v205
  %v492 = vpop.f32.mrb[0].mxu0
  %v493 = vadd.f32 0.0, %v492
  %v494 = vpop.f32.mrb[0].mxu0
  %495 = vmatprep.mubr.f32.mxu0 %v210
  %496 = vmatmul.mubr.f32.gmra.mrb[0].mxu0 %v209
  %v497 = vpop.f32.mrb[0].mxu0
  %v498 = vadd.f32 0.0, %v497
  %v499 = vpop.f32.mrb[0].mxu0
  %500 = vmatprep.mubr.f32.mxu0 %v214
  %501 = vmatmul.mubr.f32.gmra.mrb[0].mxu0 %v213
  %v502 = vpop.f32.mrb[0].mxu0
  %v503 = vadd.f32 0.0, %v502
  %v504 = vpop.f32.mrb[0].mxu0
  %505 = vdwg.mxu0
  %506 = vmatprep.subr.mxu0 0.0
  %507 = vmatpush1.msra.mxu0 %v249
  %508 = vmatprep.subr.mxu0 0.0
  %509 = vmatpush1.msra.mxu0 %v250
  %510 = vmatprep.subr.mxu0 0.0
  %511 = vmatpush1.msra.mxu0 %v251
  %512 = vmatprep.subr.mxu0 0.0
  %513 = vmatpush1.msra.mxu0 %v252
  %514 = vmatprep.subr.mxu0 0.0
  %515 = vmatpush1.msra.mxu0 %v253
  %516 = vmatprep.subr.mxu0 0.0
  %517 = vmatpush1.msra.mxu0 %v254
  %518 = vmatprep.subr.mxu0 0.0
  %519 = vmatpush1.msra.mxu0 %v255
  %520 = vmatprep.subr.mxu0 0.0
  %521 = vmatpush1.msra.mxu0 %v256
  %522 = vmatprep.subr.mxu0 0.0
  %523 = vmatpush1.msra.mxu0 %v257
  %524 = vmatprep.subr.mxu0 0.0
  %525 = vmatpush1.msra.mxu0 %v258
  %526 = vmatprep.subr.mxu0 0.0
  %527 = vmatpush1.msra.mxu0 %v259
  %528 = vmatprep.subr.mxu0 0.0
  %529 = vmatpush1.msra.mxu0 %v260
  %530 = vmatprep.subr.mxu0 0.0
  %531 = vmatpush1.msra.mxu0 %v261
  %532 = vmatprep.subr.mxu0 0.0
  %533 = vmatpush1.msra.mxu0 %v262
  %534 = vmatprep.subr.mxu0 0.0
  %535 = vmatpush1.msra.mxu0 %v263
  %536 = vmatprep.subr.mxu0 0.0
  %537 = vmatpush1.msra.mxu0 %v264
  %538 = vmatprep.subr.mxu0 0.0
  %539 = vmatpush1.msra.mxu0 %v265
  %540 = vmatprep.subr.mxu0 0.0
  %541 = vmatpush1.msra.mxu0 %v266
  %542 = vmatprep.subr.mxu0 0.0
  %543 = vmatpush1.msra.mxu0 %v267
  %544 = vmatprep.subr.mxu0 0.0
  %545 = vmatpush1.msra.mxu0 %v268
  %546 = vmatprep.subr.mxu0 0.0
  %547 = vmatpush1.msra.mxu0 %v269
  %548 = vmatprep.subr.mxu0 0.0
  %549 = vmatpush1.msra.mxu0 %v270
  %550 = vmatprep.subr.mxu0 0.0
  %551 = vmatpush1.msra.mxu0 %v271
  %552 = vmatprep.subr.mxu0 0.0
  %553 = vmatpush1.msra.mxu0 %v272
  %554 = vmatprep.subr.mxu0 0.0
  %555 = vmatpush1.msra.mxu0 %v273
  %556 = vmatprep.subr.mxu0 0.0
  %557 = vmatpush1.msra.mxu0 %v274
  %558 = vmatprep.subr.mxu0 0.0
  %559 = vmatpush1.msra.mxu0 %v275
  %560 = vmatprep.subr.mxu0 0.0
  %561 = vmatpush1.msra.mxu0 %v276
  %562 = vmatprep.subr.mxu0 0.0
  %563 = vmatpush1.msra.mxu0 %v277
  %564 = vmatprep.subr.mxu0 0.0
  %565 = vmatpush1.msra.mxu0 %v278
  %566 = vmatprep.subr.mxu0 0.0
  %567 = vmatpush1.msra.mxu0 %v279
  %568 = vmatprep.subr.mxu0 0.0
  %569 = vmatpush1.msra.mxu0 %v280
  %570 = vmatprep.mubr.f32.mxu0 %v92
  %571 = vmatmul.mubr.f32.gmra.mrb[0].mxu0 %v91
  %v572 = vpop.f32.mrb[0].mxu0
  %v573 = vadd.f32 %v348, %v572
  %v574 = vpop.f32.mrb[0].mxu0
  %575 = vmatprep.mubr.f32.mxu0 %v96
  %576 = vmatmul.mubr.f32.gmra.mrb[0].mxu0 %v95
  %v577 = vpop.f32.mrb[0].mxu0
  %v578 = vadd.f32 %v353, %v577
  %v579 = vpop.f32.mrb[0].mxu0
  %580 = vmatprep.mubr.f32.mxu0 %v100
  %581 = vmatmul.mubr.f32.gmra.mrb[0].mxu0 %v99
  %v582 = vpop.f32.mrb[0].mxu0
  %v583 = vadd.f32 %v358, %v582
  %v584 = vpop.f32.mrb[0].mxu0
  %585 = vmatprep.mubr.f32.mxu0 %v104
  %586 = vmatmul.mubr.f32.gmra.mrb[0].mxu0 %v103
  %v587 = vpop.f32.mrb[0].mxu0
  %v588 = vadd.f32 %v363, %v587
  %v589 = vpop.f32.mrb[0].mxu0
  %590 = vmatprep.mubr.f32.mxu0 %v108
  %591 = vmatmul.mubr.f32.gmra.mrb[0].mxu0 %v107
  %v592 = vpop.f32.mrb[0].mxu0
  %v593 = vadd.f32 %v368, %v592
  %v594 = vpop.f32.mrb[0].mxu0
  %595 = vmatprep.mubr.f32.mxu0 %v112
  %596 = vmatmul.mubr.f32.gmra.mrb[0].mxu0 %v111
  %v597 = vpop.f32.mrb[0].mxu0
  %v598 = vadd.f32 %v373, %v597
  %v599 = vpop.f32.mrb[0].mxu0
  %600 = vmatprep.mubr.f32.mxu0 %v116
  %601 = vmatmul.mubr.f32.gmra.mrb[0].mxu0 %v115
  %v602 = vpop.f32.mrb[0].mxu0
  %v603 = vadd.f32 %v378, %v602
  %v604 = vpop.f32.mrb[0].mxu0
  %605 = vmatprep.mubr.f32.mxu0 %v120
  %606 = vmatmul.mubr.f32.gmra.mrb[0].mxu0 %v119
  %v607 = vpop.f32.mrb[0].mxu0
  %v608 = vadd.f32 %v383, %v607
  %v609 = vpop.f32.mrb[0].mxu0
  %610 = vmatprep.mubr.f32.mxu0 %v124
  %611 = vmatmul.mubr.f32.gmra.mrb[0].mxu0 %v123
  %v612 = vpop.f32.mrb[0].mxu0
  %v613 = vadd.f32 %v388, %v612
  %v614 = vpop.f32.mrb[0].mxu0
  %615 = vmatprep.mubr.f32.mxu0 %v128
  %616 = vmatmul.mubr.f32.gmra.mrb[0].mxu0 %v127
  %v617 = vpop.f32.mrb[0].mxu0
  %v618 = vadd.f32 %v393, %v617
  %v619 = vpop.f32.mrb[0].mxu0
  %620 = vmatprep.mubr.f32.mxu0 %v132
  %621 = vmatmul.mubr.f32.gmra.mrb[0].mxu0 %v131
  %v622 = vpop.f32.mrb[0].mxu0
  %v623 = vadd.f32 %v398, %v622
  %v624 = vpop.f32.mrb[0].mxu0
  %625 = vmatprep.mubr.f32.mxu0 %v136
  %626 = vmatmul.mubr.f32.gmra.mrb[0].mxu0 %v135
  %v627 = vpop.f32.mrb[0].mxu0
  %v628 = vadd.f32 %v403, %v627
  %v629 = vpop.f32.mrb[0].mxu0
  %630 = vmatprep.mubr.f32.mxu0 %v140
  %631 = vmatmul.mubr.f32.gmra.mrb[0].mxu0 %v139
  %v632 = vpop.f32.mrb[0].mxu0
  %v633 = vadd.f32 %v408, %v632
  %v634 = vpop.f32.mrb[0].mxu0
  %635 = vmatprep.mubr.f32.mxu0 %v144
  %636 = vmatmul.mubr.f32.gmra.mrb[0].mxu0 %v143
  %v637 = vpop.f32.mrb[0].mxu0
  %v638 = vadd.f32 %v413, %v637
  %v639 = vpop.f32.mrb[0].mxu0
  %640 = vmatprep.mubr.f32.mxu0 %v148
  %641 = vmatmul.mubr.f32.gmra.mrb[0].mxu0 %v147
  %v642 = vpop.f32.mrb[0].mxu0
  %v643 = vadd.f32 %v418, %v642
  %v644 = vpop.f32.mrb[0].mxu0
  %645 = vmatprep.mubr.f32.mxu0 %v152
  %646 = vmatmul.mubr.f32.gmra.mrb[0].mxu0 %v151
  %v647 = vpop.f32.mrb[0].mxu0
  %v648 = vadd.f32 %v423, %v647
  %v649 = vpop.f32.mrb[0].mxu0
  %650 = vmatprep.mubr.f32.mxu0 %v156
  %651 = vmatmul.mubr.f32.gmra.mrb[0].mxu0 %v155
  %v652 = vpop.f32.mrb[0].mxu0
  %v653 = vadd.f32 %v428, %v652
  %v654 = vpop.f32.mrb[0].mxu0
  %655 = vmatprep.mubr.f32.mxu0 %v160
  %656 = vmatmul.mubr.f32.gmra.mrb[0].mxu0 %v159
  %v657 = vpop.f32.mrb[0].mxu0
  %v658 = vadd.f32 %v433, %v657
  %v659 = vpop.f32.mrb[0].mxu0
  %660 = vmatprep.mubr.f32.mxu0 %v164
  %661 = vmatmul.mubr.f32.gmra.mrb[0].mxu0 %v163
  %v662 = vpop.f32.mrb[0].mxu0
  %v663 = vadd.f32 %v438, %v662
  %v664 = vpop.f32.mrb[0].mxu0
  %665 = vmatprep.mubr.f32.mxu0 %v168
  %666 = vmatmul.mubr.f32.gmra.mrb[0].mxu0 %v167
  %v667 = vpop.f32.mrb[0].mxu0
  %v668 = vadd.f32 %v443, %v667
  %v669 = vpop.f32.mrb[0].mxu0
  %670 = vmatprep.mubr.f32.mxu0 %v172
  %671 = vmatmul.mubr.f32.gmra.mrb[0].mxu0 %v171
  %v672 = vpop.f32.mrb[0].mxu0
  %v673 = vadd.f32 %v448, %v672
  %v674 = vpop.f32.mrb[0].mxu0
  %675 = vmatprep.mubr.f32.mxu0 %v176
  %676 = vmatmul.mubr.f32.gmra.mrb[0].mxu0 %v175
  %v677 = vpop.f32.mrb[0].mxu0
  %v678 = vadd.f32 %v453, %v677
  %v679 = vpop.f32.mrb[0].mxu0
  %680 = vmatprep.mubr.f32.mxu0 %v180
  %681 = vmatmul.mubr.f32.gmra.mrb[0].mxu0 %v179
  %v682 = vpop.f32.mrb[0].mxu0
  %v683 = vadd.f32 %v458, %v682
  %v684 = vpop.f32.mrb[0].mxu0
  %685 = vmatprep.mubr.f32.mxu0 %v184
  %686 = vmatmul.mubr.f32.gmra.mrb[0].mxu0 %v183
  %v687 = vpop.f32.mrb[0].mxu0
  %v688 = vadd.f32 %v463, %v687
  %v689 = vpop.f32.mrb[0].mxu0
  %690 = vmatprep.mubr.f32.mxu0 %v188
  %691 = vmatmul.mubr.f32.gmra.mrb[0].mxu0 %v187
  %v692 = vpop.f32.mrb[0].mxu0
  %v693 = vadd.f32 %v468, %v692
  %v694 = vpop.f32.mrb[0].mxu0
  %695 = vmatprep.mubr.f32.mxu0 %v192
  %696 = vmatmul.mubr.f32.gmra.mrb[0].mxu0 %v191
  %v697 = vpop.f32.mrb[0].mxu0
  %v698 = vadd.f32 %v473, %v697
  %v699 = vpop.f32.mrb[0].mxu0
  %700 = vmatprep.mubr.f32.mxu0 %v196
  %701 = vmatmul.mubr.f32.gmra.mrb[0].mxu0 %v195
  %v702 = vpop.f32.mrb[0].mxu0
  %v703 = vadd.f32 %v478, %v702
  %v704 = vpop.f32.mrb[0].mxu0
  %705 = vmatprep.mubr.f32.mxu0 %v200
  %706 = vmatmul.mubr.f32.gmra.mrb[0].mxu0 %v199
  %v707 = vpop.f32.mrb[0].mxu0
  %v708 = vadd.f32 %v483, %v707
  %v709 = vpop.f32.mrb[0].mxu0
  %710 = vmatprep.mubr.f32.mxu0 %v204
  %711 = vmatmul.mubr.f32.gmra.mrb[0].mxu0 %v203
  %v712 = vpop.f32.mrb[0].mxu0
  %v713 = vadd.f32 %v488, %v712
  %v714 = vpop.f32.mrb[0].mxu0
  %715 = vmatprep.mubr.f32.mxu0 %v208
  %716 = vmatmul.mubr.f32.gmra.mrb[0].mxu0 %v207
  %v717 = vpop.f32.mrb[0].mxu0
  %v718 = vadd.f32 %v493, %v717
  %v719 = vpop.f32.mrb[0].mxu0
  %720 = vmatprep.mubr.f32.mxu0 %v212
  %721 = vmatmul.mubr.f32.gmra.mrb[0].mxu0 %v211
  %v722 = vpop.f32.mrb[0].mxu0
  %v723 = vadd.f32 %v498, %v722
  %v724 = vpop.f32.mrb[0].mxu0
  %725 = vmatprep.mubr.f32.mxu0 %v216
  %726 = vmatmul.mubr.f32.gmra.mrb[0].mxu0 %v215
  %v727 = vpop.f32.mrb[0].mxu0
  %v728 = vadd.f32 %v503, %v727
  %v729 = vpop.f32.mrb[0].mxu0
  %730 = vdwg.mxu0
  %v731 = vadd.f32 %v57, %v573
  %v732 = vadd.f32 %v58, %v578
  %v733 = vadd.f32 %v59, %v583
  %v734 = vadd.f32 %v60, %v588
  %v735 = vadd.f32 %v61, %v593
  %v736 = vadd.f32 %v62, %v598
  %v737 = vadd.f32 %v63, %v603
  %v738 = vadd.f32 %v64, %v608
  %v739 = vadd.f32 %v65, %v613
  %v740 = vadd.f32 %v66, %v618
  %v741 = vadd.f32 %v67, %v623
  %v742 = vadd.f32 %v68, %v628
  %v743 = vadd.f32 %v69, %v633
  %v744 = vadd.f32 %v70, %v638
  %v745 = vadd.f32 %v71, %v643
  %v746 = vadd.f32 %v72, %v648
  %v747 = vadd.f32 %v73, %v653
  %v748 = vadd.f32 %v74, %v658
  %v749 = vadd.f32 %v75, %v663
  %v750 = vadd.f32 %v76, %v668
  %v751 = vadd.f32 %v77, %v673
  %v752 = vadd.f32 %v78, %v678
  %v753 = vadd.f32 %v79, %v683
  %v754 = vadd.f32 %v80, %v688
  %v755 = vadd.f32 %v81, %v693
  %v756 = vadd.f32 %v82, %v698
  %v757 = vadd.f32 %v83, %v703
  %v758 = vadd.f32 %v84, %v708
  %v759 = vadd.f32 %v85, %v713
  %v760 = vadd.f32 %v86, %v718
  %v761 = vadd.f32 %v87, %v723
  %v762 = vadd.f32 %v88, %v728
  %vm763 = vcmask 523264
  %764 = vst.msk [vmem:[#allocation2] sm:$0xff] %vm763, %v731
  %765 = vst.msk [vmem:[#allocation2 + $0x8] sm:$0xff] %vm763, %v732
  %766 = vst.msk [vmem:[#allocation2 + $0x10] sm:$0xff] %vm763, %v733
  %767 = vst.msk [vmem:[#allocation2 + $0x18] sm:$0xff] %vm763, %v734
  %768 = vst.msk [vmem:[#allocation2 + $0x20] sm:$0xff] %vm763, %v735
  %769 = vst.msk [vmem:[#allocation2 + $0x28] sm:$0xff] %vm763, %v736
  %770 = vst.msk [vmem:[#allocation2 + $0x30] sm:$0xff] %vm763, %v737
  %771 = vst.msk [vmem:[#allocation2 + $0x38] sm:$0xff] %vm763, %v738
  %772 = vst.msk [vmem:[#allocation2 + $0x40] sm:$0xff] %vm763, %v739
  %773 = vst.msk [vmem:[#allocation2 + $0x48] sm:$0xff] %vm763, %v740
  %774 = vst.msk [vmem:[#allocation2 + $0x50] sm:$0xff] %vm763, %v741
  %775 = vst.msk [vmem:[#allocation2 + $0x58] sm:$0xff] %vm763, %v742
  %776 = vst.msk [vmem:[#allocation2 + $0x60] sm:$0xff] %vm763, %v743
  %777 = vst.msk [vmem:[#allocation2 + $0x68] sm:$0xff] %vm763, %v744
  %778 = vst.msk [vmem:[#allocation2 + $0x70] sm:$0xff] %vm763, %v745
  %779 = vst.msk [vmem:[#allocation2 + $0x78] sm:$0xff] %vm763, %v746
  %780 = vst.msk [vmem:[#allocation2 + $0x80] sm:$0xff] %vm763, %v747
  %781 = vst.msk [vmem:[#allocation2 + $0x88] sm:$0xff] %vm763, %v748
  %782 = vst.msk [vmem:[#allocation2 + $0x90] sm:$0xff] %vm763, %v749
  %783 = vst.msk [vmem:[#allocation2 + $0x98] sm:$0xff] %vm763, %v750
  %784 = vst.msk [vmem:[#allocation2 + $0xa0] sm:$0xff] %vm763, %v751
  %785 = vst.msk [vmem:[#allocation2 + $0xa8] sm:$0xff] %vm763, %v752
  %786 = vst.msk [vmem:[#allocation2 + $0xb0] sm:$0xff] %vm763, %v753
  %787 = vst.msk [vmem:[#allocation2 + $0xb8] sm:$0xff] %vm763, %v754
  %788 = vst.msk [vmem:[#allocation2 + $0xc0] sm:$0xff] %vm763, %v755
  %789 = vst.msk [vmem:[#allocation2 + $0xc8] sm:$0xff] %vm763, %v756
  %790 = vst.msk [vmem:[#allocation2 + $0xd0] sm:$0xff] %vm763, %v757
  %791 = vst.msk [vmem:[#allocation2 + $0xd8] sm:$0xff] %vm763, %v758
  %792 = vst.msk [vmem:[#allocation2 + $0xe0] sm:$0xff] %vm763, %v759
  %793 = vst.msk [vmem:[#allocation2 + $0xe8] sm:$0xff] %vm763, %v760
  %794 = vst.msk [vmem:[#allocation2 + $0xf0] sm:$0xff] %vm763, %v761
  %795 = vst.msk [vmem:[#allocation2 + $0xf8] sm:$0xff] %vm763, %v762
  // Predicated region
  $region26: #{discriminator_forward.4} parent=0 // pred_check
    %p796 = pneg %p20
  $region27: #{discriminator_forward.4} parent=0 // pred_check_branch
    %798 = sbr.rel (%p796) target = $region29
  $region28: #{discriminator_forward.4} parent=0 // pred_region
    %v799 = vld [vmem:[#allocation2] sm:$0xff]
    %v800 = vld [vmem:[#allocation2 + $0x8] sm:$0xff]
    %v801 = vld [vmem:[#allocation2 + $0x10] sm:$0xff]
    %v802 = vld [vmem:[#allocation2 + $0x18] sm:$0xff]
    %v803 = vld [vmem:[#allocation2 + $0x20] sm:$0xff]
    %v804 = vld [vmem:[#allocation2 + $0x28] sm:$0xff]
    %v805 = vld [vmem:[#allocation2 + $0x30] sm:$0xff]
    %v806 = vld [vmem:[#allocation2 + $0x38] sm:$0xff]
    %v807 = vld [vmem:[#allocation2 + $0x40] sm:$0xff]
    %v808 = vld [vmem:[#allocation2 + $0x48] sm:$0xff]
    %v809 = vld [vmem:[#allocation2 + $0x50] sm:$0xff]
    %v810 = vld [vmem:[#allocation2 + $0x58] sm:$0xff]
    %v811 = vld [vmem:[#allocation2 + $0x60] sm:$0xff]
    %v812 = vld [vmem:[#allocation2 + $0x68] sm:$0xff]
    %v813 = vld [vmem:[#allocation2 + $0x70] sm:$0xff]
    %v814 = vld [vmem:[#allocation2 + $0x78] sm:$0xff]
    %v815 = vld [vmem:[#allocation2 + $0x80] sm:$0xff]
    %v816 = vld [vmem:[#allocation2 + $0x88] sm:$0xff]
    %v817 = vld [vmem:[#allocation2 + $0x90] sm:$0xff]
    %v818 = vld [vmem:[#allocation2 + $0x98] sm:$0xff]
    %v819 = vld [vmem:[#allocation2 + $0xa0] sm:$0xff]
    %v820 = vld [vmem:[#allocation2 + $0xa8] sm:$0xff]
    %v821 = vld [vmem:[#allocation2 + $0xb0] sm:$0xff]
    %v822 = vld [vmem:[#allocation2 + $0xb8] sm:$0xff]
    %v823 = vld [vmem:[#allocation2 + $0xc0] sm:$0xff]
    %v824 = vld [vmem:[#allocation2 + $0xc8] sm:$0xff]
    %v825 = vld [vmem:[#allocation2 + $0xd0] sm:$0xff]
    %v826 = vld [vmem:[#allocation2 + $0xd8] sm:$0xff]
    %v827 = vld [vmem:[#allocation2 + $0xe0] sm:$0xff]
    %v828 = vld [vmem:[#allocation2 + $0xe8] sm:$0xff]
    %v829 = vld [vmem:[#allocation2 + $0xf0] sm:$0xff]
    %v830 = vld [vmem:[#allocation2 + $0xf8] sm:$0xff]
    %v831 = vld [vmem:[%s2] sm:$0x1]
    %v833 = vlaneseq
    %v834 = vshrl.u32 %v833, 7
    %v835 = vsub.s32 0, %v834
    %v836 = vrot.slane %v831, %v835
    %v838 = vadd.f32 %v799, %v836
    %v839 = vadd.f32 %v800, %v836
    %v840 = vadd.f32 %v801, %v836
    %v841 = vadd.f32 %v802, %v836
    %v842 = vadd.f32 %v803, %v836
    %v843 = vadd.f32 %v804, %v836
    %v844 = vadd.f32 %v805, %v836
    %v845 = vadd.f32 %v806, %v836
    %v846 = vadd.f32 %v807, %v836
    %v847 = vadd.f32 %v808, %v836
    %v848 = vadd.f32 %v809, %v836
    %v849 = vadd.f32 %v810, %v836
    %v850 = vadd.f32 %v811, %v836
    %v851 = vadd.f32 %v812, %v836
    %v852 = vadd.f32 %v813, %v836
    %v853 = vadd.f32 %v814, %v836
    %v854 = vadd.f32 %v815, %v836
    %v855 = vadd.f32 %v816, %v836
    %v856 = vadd.f32 %v817, %v836
    %v857 = vadd.f32 %v818, %v836
    %v858 = vadd.f32 %v819, %v836
    %v859 = vadd.f32 %v820, %v836
    %v860 = vadd.f32 %v821, %v836
    %v861 = vadd.f32 %v822, %v836
    %v862 = vadd.f32 %v823, %v836
    %v863 = vadd.f32 %v824, %v836
    %v864 = vadd.f32 %v825, %v836
    %v865 = vadd.f32 %v826, %v836
    %v866 = vadd.f32 %v827, %v836
    %v867 = vadd.f32 %v828, %v836
    %v868 = vadd.f32 %v829, %v836
    %v869 = vadd.f32 %v830, %v836
    %v870 = vsel %vm763, %v838, 0.0
    %v871 = vsel %vm763, %v839, 0.0
    %v872 = vadd.f32 %v870, %v871
    %v873 = vsel %vm763, %v840, 0.0
    %v874 = vadd.f32 %v872, %v873
    %v875 = vsel %vm763, %v841, 0.0
    %v876 = vadd.f32 %v874, %v875
    %v877 = vsel %vm763, %v842, 0.0
    %v878 = vadd.f32 %v876, %v877
    %v879 = vsel %vm763, %v843, 0.0
    %v880 = vadd.f32 %v878, %v879
    %v881 = vsel %vm763, %v844, 0.0
    %v882 = vadd.f32 %v880, %v881
    %v883 = vsel %vm763, %v845, 0.0
    %v884 = vadd.f32 %v882, %v883
    %v885 = vsel %vm763, %v846, 0.0
    %v886 = vadd.f32 %v884, %v885
    %v887 = vsel %vm763, %v847, 0.0
    %v888 = vadd.f32 %v886, %v887
    %v889 = vsel %vm763, %v848, 0.0
    %v890 = vadd.f32 %v888, %v889
    %v891 = vsel %vm763, %v849, 0.0
    %v892 = vadd.f32 %v890, %v891
    %v893 = vsel %vm763, %v850, 0.0
    %v894 = vadd.f32 %v892, %v893
    %v895 = vsel %vm763, %v851, 0.0
    %v896 = vadd.f32 %v894, %v895
    %v897 = vsel %vm763, %v852, 0.0
    %v898 = vadd.f32 %v896, %v897
    %v899 = vsel %vm763, %v853, 0.0
    %v900 = vadd.f32 %v898, %v899
    %v901 = vsel %vm763, %v854, 0.0
    %v902 = vadd.f32 %v900, %v901
    %v903 = vsel %vm763, %v855, 0.0
    %v904 = vadd.f32 %v902, %v903
    %v905 = vsel %vm763, %v856, 0.0
    %v906 = vadd.f32 %v904, %v905
    %v907 = vsel %vm763, %v857, 0.0
    %v908 = vadd.f32 %v906, %v907
    %v909 = vsel %vm763, %v858, 0.0
    %v910 = vadd.f32 %v908, %v909
    %v911 = vsel %vm763, %v859, 0.0
    %v912 = vadd.f32 %v910, %v911
    %v913 = vsel %vm763, %v860, 0.0
    %v914 = vadd.f32 %v912, %v913
    %v915 = vsel %vm763, %v861, 0.0
    %v916 = vadd.f32 %v914, %v915
    %v917 = vsel %vm763, %v862, 0.0
    %v918 = vadd.f32 %v916, %v917
    %v919 = vsel %vm763, %v863, 0.0
    %v920 = vadd.f32 %v918, %v919
    %v921 = vsel %vm763, %v864, 0.0
    %v922 = vadd.f32 %v920, %v921
    %v923 = vsel %vm763, %v865, 0.0
    %v924 = vadd.f32 %v922, %v923
    %v925 = vsel %vm763, %v866, 0.0
    %v926 = vadd.f32 %v924, %v925
    %v927 = vsel %vm763, %v867, 0.0
    %v928 = vadd.f32 %v926, %v927
    %v929 = vsel %vm763, %v868, 0.0
    %v930 = vadd.f32 %v928, %v929
    %v931 = vsel %vm763, %v869, 0.0
    %v932 = vadd.f32 %v930, %v931
    %v933 = vrot.slane %v932, 4
    %v934 = vadd.f32 %v932, %v933
    %v935 = vrot.slane %v934, 2
    %v936 = vadd.f32 %v934, %v935
    %v937 = vrot.slane %v936, 1
    %v938 = vadd.f32 %v936, %v937
    %v939 = vrcp.pop 256.0
    %v940 = vmul.f32 %v938, %v939
    %v941 = vmul.f32 %v838, %v838
    %v942 = vmul.f32 %v839, %v839
    %v943 = vmul.f32 %v840, %v840
    %v944 = vmul.f32 %v841, %v841
    %v945 = vmul.f32 %v842, %v842
    %v946 = vmul.f32 %v843, %v843
    %v947 = vmul.f32 %v844, %v844
    %v948 = vmul.f32 %v845, %v845
    %v949 = vmul.f32 %v846, %v846
    %v950 = vmul.f32 %v847, %v847
    %v951 = vmul.f32 %v848, %v848
    %v952 = vmul.f32 %v849, %v849
    %v953 = vmul.f32 %v850, %v850
    %v954 = vmul.f32 %v851, %v851
    %v955 = vmul.f32 %v852, %v852
    %v956 = vmul.f32 %v853, %v853
    %v957 = vmul.f32 %v854, %v854
    %v958 = vmul.f32 %v855, %v855
    %v959 = vmul.f32 %v856, %v856
    %v960 = vmul.f32 %v857, %v857
    %v961 = vmul.f32 %v858, %v858
    %v962 = vmul.f32 %v859, %v859
    %v963 = vmul.f32 %v860, %v860
    %v964 = vmul.f32 %v861, %v861
    %v965 = vmul.f32 %v862, %v862
    %v966 = vmul.f32 %v863, %v863
    %v967 = vmul.f32 %v864, %v864
    %v968 = vmul.f32 %v865, %v865
    %v969 = vmul.f32 %v866, %v866
    %v970 = vmul.f32 %v867, %v867
    %v971 = vmul.f32 %v868, %v868
    %v972 = vmul.f32 %v869, %v869
    %v973 = vsel %vm763, %v941, 0.0
    %v974 = vsel %vm763, %v942, 0.0
    %v975 = vadd.f32 %v973, %v974
    %v976 = vsel %vm763, %v943, 0.0
    %v977 = vadd.f32 %v975, %v976
    %v978 = vsel %vm763, %v944, 0.0
    %v979 = vadd.f32 %v977, %v978
    %v980 = vsel %vm763, %v945, 0.0
    %v981 = vadd.f32 %v979, %v980
    %v982 = vsel %vm763, %v946, 0.0
    %v983 = vadd.f32 %v981, %v982
    %v984 = vsel %vm763, %v947, 0.0
    %v985 = vadd.f32 %v983, %v984
    %v986 = vsel %vm763, %v948, 0.0
    %v987 = vadd.f32 %v985, %v986
    %v988 = vsel %vm763, %v949, 0.0
    %v989 = vadd.f32 %v987, %v988
    %v990 = vsel %vm763, %v950, 0.0
    %v991 = vadd.f32 %v989, %v990
    %v992 = vsel %vm763, %v951, 0.0
    %v993 = vadd.f32 %v991, %v992
    %v994 = vsel %vm763, %v952, 0.0
    %v995 = vadd.f32 %v993, %v994
    %v996 = vsel %vm763, %v953, 0.0
    %v997 = vadd.f32 %v995, %v996
    %v998 = vsel %vm763, %v954, 0.0
    %v999 = vadd.f32 %v997, %v998
    %v1000 = vsel %vm763, %v955, 0.0
    %v1001 = vadd.f32 %v999, %v1000
    %v1002 = vsel %vm763, %v956, 0.0
    %v1003 = vadd.f32 %v1001, %v1002
    %v1004 = vsel %vm763, %v957, 0.0
    %v1005 = vadd.f32 %v1003, %v1004
    %v1006 = vsel %vm763, %v958, 0.0
    %v1007 = vadd.f32 %v1005, %v1006
    %v1008 = vsel %vm763, %v959, 0.0
    %v1009 = vadd.f32 %v1007, %v1008
    %v1010 = vsel %vm763, %v960, 0.0
    %v1011 = vadd.f32 %v1009, %v1010
    %v1012 = vsel %vm763, %v961, 0.0
    %v1013 = vadd.f32 %v1011, %v1012
    %v1014 = vsel %vm763, %v962, 0.0
    %v1015 = vadd.f32 %v1013, %v1014
    %v1016 = vsel %vm763, %v963, 0.0
    %v1017 = vadd.f32 %v1015, %v1016
    %v1018 = vsel %vm763, %v964, 0.0
    %v1019 = vadd.f32 %v1017, %v1018
    %v1020 = vsel %vm763, %v965, 0.0
    %v1021 = vadd.f32 %v1019, %v1020
    %v1022 = vsel %vm763, %v966, 0.0
    %v1023 = vadd.f32 %v1021, %v1022
    %v1024 = vsel %vm763, %v967, 0.0
    %v1025 = vadd.f32 %v1023, %v1024
    %v1026 = vsel %vm763, %v968, 0.0
    %v1027 = vadd.f32 %v1025, %v1026
    %v1028 = vsel %vm763, %v969, 0.0
    %v1029 = vadd.f32 %v1027, %v1028
    %v1030 = vsel %vm763, %v970, 0.0
    %v1031 = vadd.f32 %v1029, %v1030
    %v1032 = vsel %vm763, %v971, 0.0
    %v1033 = vadd.f32 %v1031, %v1032
    %v1034 = vsel %vm763, %v972, 0.0
    %v1035 = vadd.f32 %v1033, %v1034
    %v1036 = vrot.slane %v1035, 4
    %v1037 = vadd.f32 %v1035, %v1036
    %v1038 = vrot.slane %v1037, 2
    %v1039 = vadd.f32 %v1037, %v1038
    %v1040 = vrot.slane %v1039, 1
    %v1041 = vadd.f32 %v1039, %v1040
    %v1042 = vmul.f32 %v1041, %v939
    %v1043 = vmul.f32 %v940, %v940
    %v1044 = vsub.f32 %v1042, %v1043
    %v1045 = vmax.f32 %v1044, 0.0
    %v1046 = vadd.f32 %v1045, 1e-05
    %v1047 = vrsqrt.pop %v1046
    %v1048 = vsub.f32 %v838, %v940
    %v1049 = vsub.f32 %v839, %v940
    %v1050 = vsub.f32 %v840, %v940
    %v1051 = vsub.f32 %v841, %v940
    %v1052 = vsub.f32 %v842, %v940
    %v1053 = vsub.f32 %v843, %v940
    %v1054 = vsub.f32 %v844, %v940
    %v1055 = vsub.f32 %v845, %v940
    %v1056 = vsub.f32 %v846, %v940
    %v1057 = vsub.f32 %v847, %v940
    %v1058 = vsub.f32 %v848, %v940
    %v1059 = vsub.f32 %v849, %v940
    %v1060 = vsub.f32 %v850, %v940
    %v1061 = vsub.f32 %v851, %v940
    %v1062 = vsub.f32 %v852, %v940
    %v1063 = vsub.f32 %v853, %v940
    %v1064 = vsub.f32 %v854, %v940
    %v1065 = vsub.f32 %v855, %v940
    %v1066 = vsub.f32 %v856, %v940
    %v1067 = vsub.f32 %v857, %v940
    %v1068 = vsub.f32 %v858, %v940
    %v1069 = vsub.f32 %v859, %v940
    %v1070 = vsub.f32 %v860, %v940
    %v1071 = vsub.f32 %v861, %v940
    %v1072 = vsub.f32 %v862, %v940
    %v1073 = vsub.f32 %v863, %v940
    %v1074 = vsub.f32 %v864, %v940
    %v1075 = vsub.f32 %v865, %v940
    %v1076 = vsub.f32 %v866, %v940
    %v1077 = vsub.f32 %v867, %v940
    %v1078 = vsub.f32 %v868, %v940
    %v1079 = vsub.f32 %v869, %v940
    %v1080 = vmul.f32 %v1048, %v1047
    %v1081 = vmul.f32 %v1049, %v1047
    %v1082 = vmul.f32 %v1050, %v1047
    %v1083 = vmul.f32 %v1051, %v1047
    %v1084 = vmul.f32 %v1052, %v1047
    %v1085 = vmul.f32 %v1053, %v1047
    %v1086 = vmul.f32 %v1054, %v1047
    %v1087 = vmul.f32 %v1055, %v1047
    %v1088 = vmul.f32 %v1056, %v1047
    %v1089 = vmul.f32 %v1057, %v1047
    %v1090 = vmul.f32 %v1058, %v1047
    %v1091 = vmul.f32 %v1059, %v1047
    %v1092 = vmul.f32 %v1060, %v1047
    %v1093 = vmul.f32 %v1061, %v1047
    %v1094 = vmul.f32 %v1062, %v1047
    %v1095 = vmul.f32 %v1063, %v1047
    %v1096 = vmul.f32 %v1064, %v1047
    %v1097 = vmul.f32 %v1065, %v1047
    %v1098 = vmul.f32 %v1066, %v1047
    %v1099 = vmul.f32 %v1067, %v1047
    %v1100 = vmul.f32 %v1068, %v1047
    %v1101 = vmul.f32 %v1069, %v1047
    %v1102 = vmul.f32 %v1070, %v1047
    %v1103 = vmul.f32 %v1071, %v1047
    %v1104 = vmul.f32 %v1072, %v1047
    %v1105 = vmul.f32 %v1073, %v1047
    %v1106 = vmul.f32 %v1074, %v1047
    %v1107 = vmul.f32 %v1075, %v1047
    %v1108 = vmul.f32 %v1076, %v1047
    %v1109 = vmul.f32 %v1077, %v1047
    %v1110 = vmul.f32 %v1078, %v1047
    %v1111 = vmul.f32 %v1079, %v1047
    %v1112 = vld [vmem:[%s3] sm:$0x1]
    %v1114 = vlaneseq
    %v1115 = vshrl.u32 %v1114, 7
    %v1116 = vsub.s32 0, %v1115
    %v1117 = vrot.slane %v1112, %v1116
    %v1119 = vmul.f32 %v1080, %v1117
    %v1120 = vmul.f32 %v1081, %v1117
    %v1121 = vmul.f32 %v1082, %v1117
    %v1122 = vmul.f32 %v1083, %v1117
    %v1123 = vmul.f32 %v1084, %v1117
    %v1124 = vmul.f32 %v1085, %v1117
    %v1125 = vmul.f32 %v1086, %v1117
    %v1126 = vmul.f32 %v1087, %v1117
    %v1127 = vmul.f32 %v1088, %v1117
    %v1128 = vmul.f32 %v1089, %v1117
    %v1129 = vmul.f32 %v1090, %v1117
    %v1130 = vmul.f32 %v1091, %v1117
    %v1131 = vmul.f32 %v1092, %v1117
    %v1132 = vmul.f32 %v1093, %v1117
    %v1133 = vmul.f32 %v1094, %v1117
    %v1134 = vmul.f32 %v1095, %v1117
    %v1135 = vmul.f32 %v1096, %v1117
    %v1136 = vmul.f32 %v1097, %v1117
    %v1137 = vmul.f32 %v1098, %v1117
    %v1138 = vmul.f32 %v1099, %v1117
    %v1139 = vmul.f32 %v1100, %v1117
    %v1140 = vmul.f32 %v1101, %v1117
    %v1141 = vmul.f32 %v1102, %v1117
    %v1142 = vmul.f32 %v1103, %v1117
    %v1143 = vmul.f32 %v1104, %v1117
    %v1144 = vmul.f32 %v1105, %v1117
    %v1145 = vmul.f32 %v1106, %v1117
    %v1146 = vmul.f32 %v1107, %v1117
    %v1147 = vmul.f32 %v1108, %v1117
    %v1148 = vmul.f32 %v1109, %v1117
    %v1149 = vmul.f32 %v1110, %v1117
    %v1150 = vmul.f32 %v1111, %v1117
    %v1151 = vld [vmem:[%s4] sm:$0x1]
    %v1153 = vlaneseq
    %v1154 = vshrl.u32 %v1153, 7
    %v1155 = vsub.s32 0, %v1154
    %v1156 = vrot.slane %v1151, %v1155
    %v1158 = vadd.f32 %v1119, %v1156
    %v1159 = vadd.f32 %v1120, %v1156
    %v1160 = vadd.f32 %v1121, %v1156
    %v1161 = vadd.f32 %v1122, %v1156
    %v1162 = vadd.f32 %v1123, %v1156
    %v1163 = vadd.f32 %v1124, %v1156
    %v1164 = vadd.f32 %v1125, %v1156
    %v1165 = vadd.f32 %v1126, %v1156
    %v1166 = vadd.f32 %v1127, %v1156
    %v1167 = vadd.f32 %v1128, %v1156
    %v1168 = vadd.f32 %v1129, %v1156
    %v1169 = vadd.f32 %v1130, %v1156
    %v1170 = vadd.f32 %v1131, %v1156
    %v1171 = vadd.f32 %v1132, %v1156
    %v1172 = vadd.f32 %v1133, %v1156
    %v1173 = vadd.f32 %v1134, %v1156
    %v1174 = vadd.f32 %v1135, %v1156
    %v1175 = vadd.f32 %v1136, %v1156
    %v1176 = vadd.f32 %v1137, %v1156
    %v1177 = vadd.f32 %v1138, %v1156
    %v1178 = vadd.f32 %v1139, %v1156
    %v1179 = vadd.f32 %v1140, %v1156
    %v1180 = vadd.f32 %v1141, %v1156
    %v1181 = vadd.f32 %v1142, %v1156
    %v1182 = vadd.f32 %v1143, %v1156
    %v1183 = vadd.f32 %v1144, %v1156
    %v1184 = vadd.f32 %v1145, %v1156
    %v1185 = vadd.f32 %v1146, %v1156
    %v1186 = vadd.f32 %v1147, %v1156
    %v1187 = vadd.f32 %v1148, %v1156
    %v1188 = vadd.f32 %v1149, %v1156
    %v1189 = vadd.f32 %v1150, %v1156
    %vm1190 = vcmp.gt.f32.partialorder %v1158, 0.0
    %vm1191 = vcmp.gt.f32.partialorder %v1159, 0.0
    %vm1192 = vcmp.gt.f32.partialorder %v1160, 0.0
    %vm1193 = vcmp.gt.f32.partialorder %v1161, 0.0
    %vm1194 = vcmp.gt.f32.partialorder %v1162, 0.0
    %vm1195 = vcmp.gt.f32.partialorder %v1163, 0.0
    %vm1196 = vcmp.gt.f32.partialorder %v1164, 0.0
    %vm1197 = vcmp.gt.f32.partialorder %v1165, 0.0
    %vm1198 = vcmp.gt.f32.partialorder %v1166, 0.0
    %vm1199 = vcmp.gt.f32.partialorder %v1167, 0.0
    %vm1200 = vcmp.gt.f32.partialorder %v1168, 0.0
    %vm1201 = vcmp.gt.f32.partialorder %v1169, 0.0
    %vm1202 = vcmp.gt.f32.partialorder %v1170, 0.0
    %vm1203 = vcmp.gt.f32.partialorder %v1171, 0.0
    %vm1204 = vcmp.gt.f32.partialorder %v1172, 0.0
    %vm1205 = vcmp.gt.f32.partialorder %v1173, 0.0
    %vm1206 = vcmp.gt.f32.partialorder %v1174, 0.0
    %vm1207 = vcmp.gt.f32.partialorder %v1175, 0.0
    %vm1208 = vcmp.gt.f32.partialorder %v1176, 0.0
    %vm1209 = vcmp.gt.f32.partialorder %v1177, 0.0
    %vm1210 = vcmp.gt.f32.partialorder %v1178, 0.0
    %vm1211 = vcmp.gt.f32.partialorder %v1179, 0.0
    %vm1212 = vcmp.gt.f32.partialorder %v1180, 0.0
    %vm1213 = vcmp.gt.f32.partialorder %v1181, 0.0
    %vm1214 = vcmp.gt.f32.partialorder %v1182, 0.0
    %vm1215 = vcmp.gt.f32.partialorder %v1183, 0.0
    %vm1216 = vcmp.gt.f32.partialorder %v1184, 0.0
    %vm1217 = vcmp.gt.f32.partialorder %v1185, 0.0
    %vm1218 = vcmp.gt.f32.partialorder %v1186, 0.0
    %vm1219 = vcmp.gt.f32.partialorder %v1187, 0.0
    %vm1220 = vcmp.gt.f32.partialorder %v1188, 0.0
    %vm1221 = vcmp.gt.f32.partialorder %v1189, 0.0
    %v1222 = vmul.f32 %v1158, 0.2
    %v1223 = vmul.f32 %v1159, 0.2
    %v1224 = vmul.f32 %v1160, 0.2
    %v1225 = vmul.f32 %v1161, 0.2
    %v1226 = vmul.f32 %v1162, 0.2
    %v1227 = vmul.f32 %v1163, 0.2
    %v1228 = vmul.f32 %v1164, 0.2
    %v1229 = vmul.f32 %v1165, 0.2
    %v1230 = vmul.f32 %v1166, 0.2
    %v1231 = vmul.f32 %v1167, 0.2
    %v1232 = vmul.f32 %v1168, 0.2
    %v1233 = vmul.f32 %v1169, 0.2
    %v1234 = vmul.f32 %v1170, 0.2
    %v1235 = vmul.f32 %v1171, 0.2
    %v1236 = vmul.f32 %v1172, 0.2
    %v1237 = vmul.f32 %v1173, 0.2
    %v1238 = vmul.f32 %v1174, 0.2
    %v1239 = vmul.f32 %v1175, 0.2
    %v1240 = vmul.f32 %v1176, 0.2
    %v1241 = vmul.f32 %v1177, 0.2
    %v1242 = vmul.f32 %v1178, 0.2
    %v1243 = vmul.f32 %v1179, 0.2
    %v1244 = vmul.f32 %v1180, 0.2
    %v1245 = vmul.f32 %v1181, 0.2
    %v1246 = vmul.f32 %v1182, 0.2
    %v1247 = vmul.f32 %v1183, 0.2
    %v1248 = vmul.f32 %v1184, 0.2
    %v1249 = vmul.f32 %v1185, 0.2
    %v1250 = vmul.f32 %v1186, 0.2
    %v1251 = vmul.f32 %v1187, 0.2
    %v1252 = vmul.f32 %v1188, 0.2
    %v1253 = vmul.f32 %v1189, 0.2
    %v1254 = vsel %vm1190, %v1158, %v1222
    %v1255 = vsel %vm1191, %v1159, %v1223
    %v1256 = vsel %vm1192, %v1160, %v1224
    %v1257 = vsel %vm1193, %v1161, %v1225
    %v1258 = vsel %vm1194, %v1162, %v1226
    %v1259 = vsel %vm1195, %v1163, %v1227
    %v1260 = vsel %vm1196, %v1164, %v1228
    %v1261 = vsel %vm1197, %v1165, %v1229
    %v1262 = vsel %vm1198, %v1166, %v1230
    %v1263 = vsel %vm1199, %v1167, %v1231
    %v1264 = vsel %vm1200, %v1168, %v1232
    %v1265 = vsel %vm1201, %v1169, %v1233
    %v1266 = vsel %vm1202, %v1170, %v1234
    %v1267 = vsel %vm1203, %v1171, %v1235
    %v1268 = vsel %vm1204, %v1172, %v1236
    %v1269 = vsel %vm1205, %v1173, %v1237
    %v1270 = vsel %vm1206, %v1174, %v1238
    %v1271 = vsel %vm1207, %v1175, %v1239
    %v1272 = vsel %vm1208, %v1176, %v1240
    %v1273 = vsel %vm1209, %v1177, %v1241
    %v1274 = vsel %vm1210, %v1178, %v1242
    %v1275 = vsel %vm1211, %v1179, %v1243
    %v1276 = vsel %vm1212, %v1180, %v1244
    %v1277 = vsel %vm1213, %v1181, %v1245
    %v1278 = vsel %vm1214, %v1182, %v1246
    %v1279 = vsel %vm1215, %v1183, %v1247
    %v1280 = vsel %vm1216, %v1184, %v1248
    %v1281 = vsel %vm1217, %v1185, %v1249
    %v1282 = vsel %vm1218, %v1186, %v1250
    %v1283 = vsel %vm1219, %v1187, %v1251
    %v1284 = vsel %vm1220, %v1188, %v1252
    %v1285 = vsel %vm1221, %v1189, %v1253
    %1286 = vst.msk [vmem:[%s5] sm:$0xff] %vm763, %v1254
    %1287 = vst.msk [vmem:[%s5 + $0x8] sm:$0xff] %vm763, %v1255
    %1288 = vst.msk [vmem:[%s5 + $0x10] sm:$0xff] %vm763, %v1256
    %1289 = vst.msk [vmem:[%s5 + $0x18] sm:$0xff] %vm763, %v1257
    %1290 = vst.msk [vmem:[%s5 + $0x20] sm:$0xff] %vm763, %v1258
    %1291 = vst.msk [vmem:[%s5 + $0x28] sm:$0xff] %vm763, %v1259
    %1292 = vst.msk [vmem:[%s5 + $0x30] sm:$0xff] %vm763, %v1260
    %1293 = vst.msk [vmem:[%s5 + $0x38] sm:$0xff] %vm763, %v1261
    %1294 = vst.msk [vmem:[%s5 + $0x40] sm:$0xff] %vm763, %v1262
    %1295 = vst.msk [vmem:[%s5 + $0x48] sm:$0xff] %vm763, %v1263
    %1296 = vst.msk [vmem:[%s5 + $0x50] sm:$0xff] %vm763, %v1264
    %1297 = vst.msk [vmem:[%s5 + $0x58] sm:$0xff] %vm763, %v1265
    %1298 = vst.msk [vmem:[%s5 + $0x60] sm:$0xff] %vm763, %v1266
    %1299 = vst.msk [vmem:[%s5 + $0x68] sm:$0xff] %vm763, %v1267
    %1300 = vst.msk [vmem:[%s5 + $0x70] sm:$0xff] %vm763, %v1268
    %1301 = vst.msk [vmem:[%s5 + $0x78] sm:$0xff] %vm763, %v1269
    %1302 = vst.msk [vmem:[%s5 + $0x80] sm:$0xff] %vm763, %v1270
    %1303 = vst.msk [vmem:[%s5 + $0x88] sm:$0xff] %vm763, %v1271
    %1304 = vst.msk [vmem:[%s5 + $0x90] sm:$0xff] %vm763, %v1272
    %1305 = vst.msk [vmem:[%s5 + $0x98] sm:$0xff] %vm763, %v1273
    %1306 = vst.msk [vmem:[%s5 + $0xa0] sm:$0xff] %vm763, %v1274
    %1307 = vst.msk [vmem:[%s5 + $0xa8] sm:$0xff] %vm763, %v1275
    %1308 = vst.msk [vmem:[%s5 + $0xb0] sm:$0xff] %vm763, %v1276
    %1309 = vst.msk [vmem:[%s5 + $0xb8] sm:$0xff] %vm763, %v1277
    %1310 = vst.msk [vmem:[%s5 + $0xc0] sm:$0xff] %vm763, %v1278
    %1311 = vst.msk [vmem:[%s5 + $0xc8] sm:$0xff] %vm763, %v1279
    %1312 = vst.msk [vmem:[%s5 + $0xd0] sm:$0xff] %vm763, %v1280
    %1313 = vst.msk [vmem:[%s5 + $0xd8] sm:$0xff] %vm763, %v1281
    %1314 = vst.msk [vmem:[%s5 + $0xe0] sm:$0xff] %vm763, %v1282
    %1315 = vst.msk [vmem:[%s5 + $0xe8] sm:$0xff] %vm763, %v1283
    %1316 = vst.msk [vmem:[%s5 + $0xf0] sm:$0xff] %vm763, %v1284
    %1317 = vst.msk [vmem:[%s5 + $0xf8] sm:$0xff] %vm763, %v1285
  $region29: #{discriminator_forward.4} parent=0 // pred_fallthru
    _
  // Predicated region
  $region30: #{discriminator_forward.4} parent=0 // pred_check
    _
  $region31: #{discriminator_forward.4} parent=0 // pred_check_branch
    %1319 = sbr.rel (0) target = $region33
  $region32: #{discriminator_forward.4} parent=0 // pred_region
    _
  $region33: #{discriminator_forward.4} parent=0 // pred_fallthru
    _
  // Predicated region
  $region34: #{discriminator_forward.4} parent=0 // pred_check
    _
  $region35: #{discriminator_forward.4} parent=0 // pred_check_branch
    %1321 = sbr.rel (0) target = $region37
  $region36: #{discriminator_forward.4} parent=0 // pred_region
    _
  $region37: #{discriminator_forward.4} parent=0 // pred_fallthru
    _

// kernel: discriminator_forward.5
$region0: #{discriminator_forward.5}
  #allocation0 [shape = 'u32[]', space=smem, size = 0x4, offset = 0x4, fixed_abs, tag = 'smem constant byte address 0x4 - core index']
  #allocation1 [shape = 'u32[144,128]{1,0:T(1,128)}', space=vmem, size = 0x12000, scoped, tag = 'internal scratch']
  #allocation2 [shape = 'f32[64,128]{1,0:T(8,128)}', space=vmem, size = 0x8000, scoped, tag = 'scratch operand']
  %s0 = inlined_call_operand.vmem [shape: f32[64,1024], index: 0, kind: input, shape index: {}]
  %s1 = inlined_call_operand.vmem [shape: f32[1024,128], index: 1, kind: input, shape index: {}]
  %s2 = inlined_call_operand.vmem [shape: f32[1,128], index: 2, kind: input, shape index: {}]
  %s3 = inlined_call_operand.vmem [shape: f32[1,128], index: 3, kind: input, shape index: {}]
  %s4 = inlined_call_operand.vmem [shape: f32[1,128], index: 4, kind: input, shape index: {}]
  %s5 = inlined_call_operand.vmem [shape: f32[64,128], index: 5, kind: output, shape index: {}]
  %s6 = sld [smem:[#allocation0]]
  $region84: #{discriminator_forward.5} parent=0
    _
  %s8 = ssub.s32 1, %s6
  %s9 = scalar_select 0, %s8, %s6
  $region1: #{discriminator_forward.5} parent=0
    #allocation3 [shape = 'u8[262144]{0}', space=vmem, size = 0x40000, scoped, tag = 'input window, operand 0']
    loop: start=0, step=1, limit=4
    $region2: #{discriminator_forward.5} parent=1 // loop_pre_header
      _
    $region3: #{discriminator_forward.5} parent=1 // loop_header
      %s11 = sphi 0, %s15
      %p12 = scmp.ge.s32.totalorder %s11, 4
      %s21 = sphi 0, %s23
      %s24 = sphi 0, %s21
      %s25 = sphi 0, %s24
      %s41 = sphi 0, %s25
      %s47 = sphi 0, %s49
      %s50 = sphi 0, %s47
      %s51 = sphi 0, %s50
      %s67 = sphi 0, %s51
      %s71 = sphi 0, %s71
      %s73 = sphi 0, %s71
      %s74 = sphi 0, %s73
      %s88 = sphi 0, %s74
      %s92 = sphi 0, %s92
      %s94 = sphi 0, %s92
      %s95 = sphi 0, %s94
      %s109 = sphi 0, %s95
      %s113 = sphi 0, %s113
      %s115 = sphi 0, %s113
      %s116 = sphi 0, %s115
      %s130 = sphi 0, %s116
      %s134 = sphi 0, %s134
      %s136 = sphi 0, %s134
      %s137 = sphi 0, %s136
      %s151 = sphi 0, %s137
    $region4: #{discriminator_forward.5} parent=1 // loop_header_branch
      %14 = sbr.rel (%p12) target = $region8
    $region5: #{discriminator_forward.5} parent=1 // loop_body
      %s16 = ssub.s32 %s11, 1
      %s17 = ssub.s32 %s11, 2
      %s18 = sadd.s32 %s11, 1
      %s19 = ssub.s32 %s11, %s18
      %p20 = scmp.eq.s32.totalorder %s19, 0
      %s22 = sadd.s32 %s21, 1
      %s23 = scalar_select %p20, %s21, %s22
      %p26 = pneg %p20
      %p27 = scmp.eq.s32.totalorder %s11, 1
      %p28 = por %p26, %p27
      %p29 = scmp.ne.s32.totalorder %s21, %s24
      %p30 = scmp.eq.s32.totalorder %s11, 0
      %p31 = por %p29, %p30
      %p32 = scmp.ne.s32.totalorder %s21, %s24
      %p33 = scmp.eq.s32.totalorder %s16, 1
      %p34 = por %p32, %p33
      %p35 = scmp.ne.s32.totalorder %s24, %s25
      %p36 = scmp.eq.s32.totalorder %s16, 0
      %p37 = por %p35, %p36
      %p38 = scmp.ne.s32.totalorder %s24, %s25
      %p39 = scmp.eq.s32.totalorder %s17, 1
      %p40 = por %p38, %p39
      %p42 = scmp.ne.s32.totalorder %s25, %s41
      %p43 = scmp.eq.s32.totalorder %s17, 0
      %p44 = por %p42, %p43
      %s45 = ssub.s32 %s11, %s18
      %p46 = scmp.eq.s32.totalorder %s45, 0
      %s48 = sadd.s32 %s47, 1
      %s49 = scalar_select %p46, %s47, %s48
      %p52 = pneg %p46
      %p53 = scmp.eq.s32.totalorder %s11, 1
      %p54 = por %p52, %p53
      %p55 = scmp.ne.s32.totalorder %s47, %s50
      %p56 = scmp.eq.s32.totalorder %s11, 0
      %p57 = por %p55, %p56
      %p58 = scmp.ne.s32.totalorder %s47, %s50
      %p59 = scmp.eq.s32.totalorder %s16, 1
      %p60 = por %p58, %p59
      %p61 = scmp.ne.s32.totalorder %s50, %s51
      %p62 = scmp.eq.s32.totalorder %s16, 0
      %p63 = por %p61, %p62
      %p64 = scmp.ne.s32.totalorder %s50, %s51
      %p65 = scmp.eq.s32.totalorder %s17, 1
      %p66 = por %p64, %p65
      %p68 = scmp.ne.s32.totalorder %s51, %s67
      %p69 = scmp.eq.s32.totalorder %s17, 0
      %p70 = por %p68, %p69
      %s72 = sadd.s32 %s71, 1
      %p75 = scmp.eq.s32.totalorder %s11, 1
      %p76 = scmp.ne.s32.totalorder %s71, %s73
      %p77 = scmp.eq.s32.totalorder %s11, 0
      %p78 = por %p76, %p77
      %p79 = scmp.ne.s32.totalorder %s71, %s73
      %p80 = scmp.eq.s32.totalorder %s16, 1
      %p81 = por %p79, %p80
      %p82 = scmp.ne.s32.totalorder %s73, %s74
      %p83 = scmp.eq.s32.totalorder %s16, 0
      %p84 = por %p82, %p83
      %p85 = scmp.ne.s32.totalorder %s73, %s74
      %p86 = scmp.eq.s32.totalorder %s17, 1
      %p87 = por %p85, %p86
      %p89 = scmp.ne.s32.totalorder %s74, %s88
      %p90 = scmp.eq.s32.totalorder %s17, 0
      %p91 = por %p89, %p90
      %s93 = sadd.s32 %s92, 1
      %p96 = scmp.eq.s32.totalorder %s11, 1
      %p97 = scmp.ne.s32.totalorder %s92, %s94
      %p98 = scmp.eq.s32.totalorder %s11, 0
      %p99 = por %p97, %p98
      %p100 = scmp.ne.s32.totalorder %s92, %s94
      %p101 = scmp.eq.s32.totalorder %s16, 1
      %p102 = por %p100, %p101
      %p103 = scmp.ne.s32.totalorder %s94, %s95
      %p104 = scmp.eq.s32.totalorder %s16, 0
      %p105 = por %p103, %p104
      %p106 = scmp.ne.s32.totalorder %s94, %s95
      %p107 = scmp.eq.s32.totalorder %s17, 1
      %p108 = por %p106, %p107
      %p110 = scmp.ne.s32.totalorder %s95, %s109
      %p111 = scmp.eq.s32.totalorder %s17, 0
      %p112 = por %p110, %p111
      %s114 = sadd.s32 %s113, 1
      %p117 = scmp.eq.s32.totalorder %s11, 1
      %p118 = scmp.ne.s32.totalorder %s113, %s115
      %p119 = scmp.eq.s32.totalorder %s11, 0
      %p120 = por %p118, %p119
      %p121 = scmp.ne.s32.totalorder %s113, %s115
      %p122 = scmp.eq.s32.totalorder %s16, 1
      %p123 = por %p121, %p122
      %p124 = scmp.ne.s32.totalorder %s115, %s116
      %p125 = scmp.eq.s32.totalorder %s16, 0
      %p126 = por %p124, %p125
      %p127 = scmp.ne.s32.totalorder %s115, %s116
      %p128 = scmp.eq.s32.totalorder %s17, 1
      %p129 = por %p127, %p128
      %p131 = scmp.ne.s32.totalorder %s116, %s130
      %p132 = scmp.eq.s32.totalorder %s17, 0
      %p133 = por %p131, %p132
      %s135 = sadd.s32 %s134, 1
      %p138 = scmp.eq.s32.totalorder %s11, 1
      %p139 = scmp.ne.s32.totalorder %s134, %s136
      %p140 = scmp.eq.s32.totalorder %s11, 0
      %p141 = por %p139, %p140
      %p142 = scmp.ne.s32.totalorder %s134, %s136
      %p143 = scmp.eq.s32.totalorder %s16, 1
      %p144 = por %p142, %p143
      %p145 = scmp.ne.s32.totalorder %s136, %s137
      %p146 = scmp.eq.s32.totalorder %s16, 0
      %p147 = por %p145, %p146
      %p148 = scmp.ne.s32.totalorder %s136, %s137
      %p149 = scmp.eq.s32.totalorder %s17, 1
      %p150 = por %p148, %p149
      %p152 = scmp.ne.s32.totalorder %s137, %s151
      %p153 = scmp.eq.s32.totalorder %s17, 0
      %p154 = por %p152, %p153
      %p155 = scmp.le.s32.totalorder 1, %s11
      %p156 = scmp.lt.s32.totalorder %s11, 3
      %p157 = pnand %p155, %p156
      %p158 = pneg %p157
      // Predicated region
      $region9: #{discriminator_forward.5} parent=5 // pred_check
        _
      $region10: #{discriminator_forward.5} parent=5 // pred_check_branch
        %160 = sbr.rel (%p157) target = $region12
      $region11: #{discriminator_forward.5} parent=5 // pred_region
        %s161 = ssub.s32 %s11, 1
        // Predicated region
        $region13: #{discriminator_forward.5} parent=11 // pred_check
          %p162 = pneg %p84
        $region14: #{discriminator_forward.5} parent=11 // pred_check_branch
          %164 = sbr.rel (%p162) target = $region16
        $region15: #{discriminator_forward.5} parent=11 // pred_region
          _
        $region16: #{discriminator_forward.5} parent=11 // pred_fallthru
          _
        // Predicated region
        $region17: #{discriminator_forward.5} parent=11 // pred_check
          %p165 = pneg %p105
        $region18: #{discriminator_forward.5} parent=11 // pred_check_branch
          %167 = sbr.rel (%p165) target = $region20
        $region19: #{discriminator_forward.5} parent=11 // pred_region
          _
        $region20: #{discriminator_forward.5} parent=11 // pred_fallthru
          _
        // Predicated region
        $region21: #{discriminator_forward.5} parent=11 // pred_check
          %p168 = pneg %p126
        $region22: #{discriminator_forward.5} parent=11 // pred_check_branch
          %170 = sbr.rel (%p168) target = $region24
        $region23: #{discriminator_forward.5} parent=11 // pred_region
          _
        $region24: #{discriminator_forward.5} parent=11 // pred_fallthru
          _
      $region12: #{discriminator_forward.5} parent=5 // pred_fallthru
        _
      %p171 = scmp.lt.s32.totalorder %s11, 2
      // Predicated region
      $region25: #{discriminator_forward.5} parent=5 // pred_check
        %p172 = pneg %p171
      $region26: #{discriminator_forward.5} parent=5 // pred_check_branch
        %174 = sbr.rel (%p172) target = $region28
      $region27: #{discriminator_forward.5} parent=5 // pred_region
        // Predicated region
        $region29: #{discriminator_forward.5} parent=27 // pred_check
          %p175 = pneg %p31
        $region30: #{discriminator_forward.5} parent=27 // pred_check_branch
          %177 = sbr.rel (%p175) target = $region32
        $region31: #{discriminator_forward.5} parent=27 // pred_region
          %s178 = sand.u32 %s21, 1
          %s179 = sand.u32 %s21, 1
          %s180 = smul.addr %s179, 256
          %s181 = scalar_lea.vmem [#allocation3], %s180
          %s182 = smul.u32 4, %s11
          %s183 = smul.addr %s182, 8
          %s184 = scalar_lea.vmem %s0, %s183
          // Predicated region
          $region33: #{discriminator_forward.5} parent=31 // pred_check
            _
          $region34: #{discriminator_forward.5} parent=31 // pred_check_branch
            %186 = sbr.rel (0) target = $region36
          $region35: #{discriminator_forward.5} parent=31 // pred_region
            // Predicated region
            $region37: #{discriminator_forward.5} parent=35 // pred_check
              _
            $region38: #{discriminator_forward.5} parent=35 // pred_check_branch
              %188 = sbr.rel (0) target = $region40
            $region39: #{discriminator_forward.5} parent=35 // pred_region
              loop: start=0, step=1, limit=1
              $region41: #{discriminator_forward.5} parent=39 // loop_pre_header
                _
              $region42: #{discriminator_forward.5} parent=39 // loop_header
                %s190 = sphi 0, %s194
                %p191 = scmp.ge.s32.totalorder %s190, 1
                %s195 = sphi %s184, %s184
                %s196 = sphi %s181, %s181
              $region43: #{discriminator_forward.5} parent=39 // loop_header_branch
                %193 = sbr.rel (%p191) target = $region47
              $region44: #{discriminator_forward.5} parent=39 // loop_body
                %v197 = vld [vmem:[%s195] sm:$0xff]
                %198 = vst [vmem:[%s196] sm:$0xff] %v197
                %v199 = vld [vmem:[%s195 + $0x8] sm:$0xff]
                %200 = vst [vmem:[%s196 + $0x8] sm:$0xff] %v199
                %v201 = vld [vmem:[%s195 + $0x10] sm:$0xff]
                %202 = vst [vmem:[%s196 + $0x10] sm:$0xff] %v201
                %v203 = vld [vmem:[%s195 + $0x18] sm:$0xff]
                %204 = vst [vmem:[%s196 + $0x18] sm:$0xff] %v203
                %v205 = vld [vmem:[%s195 + $0x40] sm:$0xff]
                %206 = vst [vmem:[%s196 + $0x20] sm:$0xff] %v205
                %v207 = vld [vmem:[%s195 + $0x48] sm:$0xff]
                %208 = vst [vmem:[%s196 + $0x28] sm:$0xff] %v207
                %v209 = vld [vmem:[%s195 + $0x50] sm:$0xff]
                %210 = vst [vmem:[%s196 + $0x30] sm:$0xff] %v209
                %v211 = vld [vmem:[%s195 + $0x58] sm:$0xff]
                %212 = vst [vmem:[%s196 + $0x38] sm:$0xff] %v211
                %v213 = vld [vmem:[%s195 + $0x80] sm:$0xff]
                %214 = vst [vmem:[%s196 + $0x40] sm:$0xff] %v213
                %v215 = vld [vmem:[%s195 + $0x88] sm:$0xff]
                %216 = vst [vmem:[%s196 + $0x48] sm:$0xff] %v215
                %v217 = vld [vmem:[%s195 + $0x90] sm:$0xff]
                %218 = vst [vmem:[%s196 + $0x50] sm:$0xff] %v217
                %v219 = vld [vmem:[%s195 + $0x98] sm:$0xff]
                %220 = vst [vmem:[%s196 + $0x58] sm:$0xff] %v219
                %v221 = vld [vmem:[%s195 + $0xc0] sm:$0xff]
                %222 = vst [vmem:[%s196 + $0x60] sm:$0xff] %v221
                %v223 = vld [vmem:[%s195 + $0xc8] sm:$0xff]
                %224 = vst [vmem:[%s196 + $0x68] sm:$0xff] %v223
                %v225 = vld [vmem:[%s195 + $0xd0] sm:$0xff]
                %226 = vst [vmem:[%s196 + $0x70] sm:$0xff] %v225
                %v227 = vld [vmem:[%s195 + $0xd8] sm:$0xff]
                %228 = vst [vmem:[%s196 + $0x78] sm:$0xff] %v227
                %v229 = vld [vmem:[%s195 + $0x100] sm:$0xff]
                %230 = vst [vmem:[%s196 + $0x80] sm:$0xff] %v229
                %v231 = vld [vmem:[%s195 + $0x108] sm:$0xff]
                %232 = vst [vmem:[%s196 + $0x88] sm:$0xff] %v231
                %v233 = vld [vmem:[%s195 + $0x110] sm:$0xff]
                %234 = vst [vmem:[%s196 + $0x90] sm:$0xff] %v233
                %v235 = vld [vmem:[%s195 + $0x118] sm:$0xff]
                %236 = vst [vmem:[%s196 + $0x98] sm:$0xff] %v235
                %v237 = vld [vmem:[%s195 + $0x140] sm:$0xff]
                %238 = vst [vmem:[%s196 + $0xa0] sm:$0xff] %v237
                %v239 = vld [vmem:[%s195 + $0x148] sm:$0xff]
                %240 = vst [vmem:[%s196 + $0xa8] sm:$0xff] %v239
                %v241 = vld [vmem:[%s195 + $0x150] sm:$0xff]
                %242 = vst [vmem:[%s196 + $0xb0] sm:$0xff] %v241
                %v243 = vld [vmem:[%s195 + $0x158] sm:$0xff]
                %244 = vst [vmem:[%s196 + $0xb8] sm:$0xff] %v243
                %v245 = vld [vmem:[%s195 + $0x180] sm:$0xff]
                %246 = vst [vmem:[%s196 + $0xc0] sm:$0xff] %v245
                %v247 = vld [vmem:[%s195 + $0x188] sm:$0xff]
                %248 = vst [vmem:[%s196 + $0xc8] sm:$0xff] %v247
                %v249 = vld [vmem:[%s195 + $0x190] sm:$0xff]
                %250 = vst [vmem:[%s196 + $0xd0] sm:$0xff] %v249
                %v251 = vld [vmem:[%s195 + $0x198] sm:$0xff]
                %252 = vst [vmem:[%s196 + $0xd8] sm:$0xff] %v251
                %v253 = vld [vmem:[%s195 + $0x1c0] sm:$0xff]
                %254 = vst [vmem:[%s196 + $0xe0] sm:$0xff] %v253
                %v255 = vld [vmem:[%s195 + $0x1c8] sm:$0xff]
                %256 = vst [vmem:[%s196 + $0xe8] sm:$0xff] %v255
                %v257 = vld [vmem:[%s195 + $0x1d0] sm:$0xff]
                %258 = vst [vmem:[%s196 + $0xf0] sm:$0xff] %v257
                %v259 = vld [vmem:[%s195 + $0x1d8] sm:$0xff]
                %260 = vst [vmem:[%s196 + $0xf8] sm:$0xff] %v259
              $region45: #{discriminator_forward.5} parent=39 // loop_footer
                %s194 = sadd.s32 1, %s190
              $region46: #{discriminator_forward.5} parent=39 // loop_footer_branch
                %189 = sbr.rel target = $region42
              $region47: #{discriminator_forward.5} parent=39 // loop_exit
                _
            $region40: #{discriminator_forward.5} parent=35 // pred_fallthru
              _
            // Predicated region
            $region48: #{discriminator_forward.5} parent=35 // pred_check
              _
            $region49: #{discriminator_forward.5} parent=35 // pred_check_branch
              %262 = sbr.rel target = $region51
            $region50: #{discriminator_forward.5} parent=35 // pred_region
              _
            $region51: #{discriminator_forward.5} parent=35 // pred_fallthru
              _
          $region36: #{discriminator_forward.5} parent=31 // pred_fallthru
            _
          %263 = vnop
        $region32: #{discriminator_forward.5} parent=27 // pred_fallthru
          _
        // Predicated region
        $region52: #{discriminator_forward.5} parent=27 // pred_check
          %p264 = pneg %p57
        $region53: #{discriminator_forward.5} parent=27 // pred_check_branch
          %266 = sbr.rel (%p264) target = $region55
        $region54: #{discriminator_forward.5} parent=27 // pred_region
          %s267 = smul.u32 64, %s11
          %p268 = scmp.lt.s32.totalorder %s267, 127
          %s269 = scalar_select %p268, %s267, 127
          %s270 = smul.addr %s269, 8
          %s271 = scalar_lea.vmem %s1, %s270
          %s272 = smul.u32 64, %s11
        $region55: #{discriminator_forward.5} parent=27 // pred_fallthru
          _
      $region28: #{discriminator_forward.5} parent=5 // pred_fallthru
        _
      %p273 = scmp.le.s32.totalorder 1, %s11
      %p274 = scmp.lt.s32.totalorder %s11, 3
      %p275 = pnand %p273, %p274
      %p276 = pneg %p275
      // Predicated region
      $region56: #{discriminator_forward.5} parent=5 // pred_check
        _
      $region57: #{discriminator_forward.5} parent=5 // pred_check_branch
        %278 = sbr.rel (%p275) target = $region59
      $region58: #{discriminator_forward.5} parent=5 // pred_region
        %s279 = ssub.s32 %s11, 1
        %s280 = sand.u32 %s24, 1
        %s281 = sand.u32 %s24, 1
        %s282 = smul.addr %s281, 256
        %s283 = scalar_lea.vmem [#allocation3], %s282
        // Predicated region
        $region60: #{discriminator_forward.5} parent=58 // pred_check
          %p284 = pneg %p37
        $region61: #{discriminator_forward.5} parent=58 // pred_check_branch
          %286 = sbr.rel (%p284) target = $region63
        $region62: #{discriminator_forward.5} parent=58 // pred_region
          _
        $region63: #{discriminator_forward.5} parent=58 // pred_fallthru
          _
        %s287 = sand.u32 %s24, 1
        %s288 = sand.u32 %s24, 1
        %s289 = smul.addr %s288, 256
        %s290 = scalar_lea.vmem [#allocation3], %s289
        %p291 = pneg %p37
        %p292 = pneg %p34
        %s293 = smul.u32 64, %s16
        %p294 = scmp.lt.s32.totalorder %s293, 127
        %s295 = scalar_select %p294, %s293, 127
        %s296 = smul.addr %s295, 8
        %s297 = scalar_lea.vmem %s1, %s296
        %p298 = pneg %p63
        %p299 = pneg %p60
        %p300 = pneg %p84
        %p301 = pneg %p81
        %p302 = pneg %p105
        %p303 = pneg %p102
        %p304 = pneg %p126
        %p305 = pneg %p123
        %p306 = pneg %p147
        %p307 = pneg %p144
        %s308 = smul.u32 4, %s16
        %s309 = smul.u32 64, %s16
        %p310 = scmp.lt.s32.totalorder %s309, 127
        %s311 = scalar_select %p310, %s309, 127
        %s312 = smul.addr %s311, 8
        %s313 = scalar_lea.vmem %s1, %s312
        %s314 = smul.u32 64, %s16
        %p315 = scmp.eq.s32.totalorder %s16, 0
        // Predicated region
        $region64: #{discriminator_forward.5} parent=58 // pred_check
          %p316 = pneg %p315
        $region65: #{discriminator_forward.5} parent=58 // pred_check_branch
          %318 = sbr.rel (%p316) target = $region67
        $region66: #{discriminator_forward.5} parent=58 // pred_region
          %319 = vst [vmem:[#allocation2] sm:$0xff] 0.0
          %320 = vst [vmem:[#allocation2 + $0x8] sm:$0xff] 0.0
          %321 = vst [vmem:[#allocation2 + $0x10] sm:$0xff] 0.0
          %322 = vst [vmem:[#allocation2 + $0x18] sm:$0xff] 0.0
          %323 = vst [vmem:[#allocation2 + $0x20] sm:$0xff] 0.0
          %324 = vst [vmem:[#allocation2 + $0x28] sm:$0xff] 0.0
          %325 = vst [vmem:[#allocation2 + $0x30] sm:$0xff] 0.0
          %326 = vst [vmem:[#allocation2 + $0x38] sm:$0xff] 0.0
        $region67: #{discriminator_forward.5} parent=58 // pred_fallthru
          _
        %v327 = vld [vmem:[#allocation2] sm:$0xff]
        %v328 = vld [vmem:[#allocation2 + $0x8] sm:$0xff]
        %v329 = vld [vmem:[#allocation2 + $0x10] sm:$0xff]
        %v330 = vld [vmem:[#allocation2 + $0x18] sm:$0xff]
        %v331 = vld [vmem:[#allocation2 + $0x20] sm:$0xff]
        %v332 = vld [vmem:[#allocation2 + $0x28] sm:$0xff]
        %v333 = vld [vmem:[#allocation2 + $0x30] sm:$0xff]
        %v334 = vld [vmem:[#allocation2 + $0x38] sm:$0xff]
        %v335 = vld [vmem:[%s283] sm:$0xff]
        %v336 = vld [vmem:[%s283 + $0x8] sm:$0xff]
        %v337 = vld [vmem:[%s283 + $0x10] sm:$0xff]
        %v338 = vld [vmem:[%s283 + $0x18] sm:$0xff]
        %v339 = vld [vmem:[%s283 + $0x20] sm:$0xff]
        %v340 = vld [vmem:[%s283 + $0x28] sm:$0xff]
        %v341 = vld [vmem:[%s283 + $0x30] sm:$0xff]
        %v342 = vld [vmem:[%s283 + $0x38] sm:$0xff]
        %v343 = vld [vmem:[%s283 + $0x40] sm:$0xff]
        %v344 = vld [vmem:[%s283 + $0x48] sm:$0xff]
        %v345 = vld [vmem:[%s283 + $0x50] sm:$0xff]
        %v346 = vld [vmem:[%s283 + $0x58] sm:$0xff]
        %v347 = vld [vmem:[%s283 + $0x60] sm:$0xff]
        %v348 = vld [vmem:[%s283 + $0x68] sm:$0xff]
        %v349 = vld [vmem:[%s283 + $0x70] sm:$0xff]
        %v350 = vld [vmem:[%s283 + $0x78] sm:$0xff]
        %v351 = vld [vmem:[%s283 + $0x80] sm:$0xff]
        %v352 = vld [vmem:[%s283 + $0x88] sm:$0xff]
        %v353 = vld [vmem:[%s283 + $0x90] sm:$0xff]
        %v354 = vld [vmem:[%s283 + $0x98] sm:$0xff]
        %v355 = vld [vmem:[%s283 + $0xa0] sm:$0xff]
        %v356 = vld [vmem:[%s283 + $0xa8] sm:$0xff]
        %v357 = vld [vmem:[%s283 + $0xb0] sm:$0xff]
        %v358 = vld [vmem:[%s283 + $0xb8] sm:$0xff]
        %v359 = vld [vmem:[%s283 + $0xc0] sm:$0xff]
        %v360 = vld [vmem:[%s283 + $0xc8] sm:$0xff]
        %v361 = vld [vmem:[%s283 + $0xd0] sm:$0xff]
        %v362 = vld [vmem:[%s283 + $0xd8] sm:$0xff]
        %v363 = vld [vmem:[%s283 + $0xe0] sm:$0xff]
        %v364 = vld [vmem:[%s283 + $0xe8] sm:$0xff]
        %v365 = vld [vmem:[%s283 + $0xf0] sm:$0xff]
        %v366 = vld [vmem:[%s283 + $0xf8] sm:$0xff]
        %v367 = vld [vmem:[%s313] sm:$0xff]
        %v368 = vld [vmem:[%s313 + $0x8] sm:$0xff]
        %v369 = vld [vmem:[%s313 + $0x10] sm:$0xff]
        %v370 = vld [vmem:[%s313 + $0x18] sm:$0xff]
        %v371 = vld [vmem:[%s313 + $0x20] sm:$0xff]
        %v372 = vld [vmem:[%s313 + $0x28] sm:$0xff]
        %v373 = vld [vmem:[%s313 + $0x30] sm:$0xff]
        %v374 = vld [vmem:[%s313 + $0x38] sm:$0xff]
        %v375 = vld [vmem:[%s313 + $0x40] sm:$0xff]
        %v376 = vld [vmem:[%s313 + $0x48] sm:$0xff]
        %v377 = vld [vmem:[%s313 + $0x50] sm:$0xff]
        %v378 = vld [vmem:[%s313 + $0x58] sm:$0xff]
        %v379 = vld [vmem:[%s313 + $0x60] sm:$0xff]
        %v380 = vld [vmem:[%s313 + $0x68] sm:$0xff]
        %v381 = vld [vmem:[%s313 + $0x70] sm:$0xff]
        %v382 = vld [vmem:[%s313 + $0x78] sm:$0xff]
        %v383 = vld [vmem:[%s313 + $0x80] sm:$0xff]
        %v384 = vld [vmem:[%s313 + $0x88] sm:$0xff]
        %v385 = vld [vmem:[%s313 + $0x90] sm:$0xff]
        %v386 = vld [vmem:[%s313 + $0x98] sm:$0xff]
        %v387 = vld [vmem:[%s313 + $0xa0] sm:$0xff]
        %v388 = vld [vmem:[%s313 + $0xa8] sm:$0xff]
        %v389 = vld [vmem:[%s313 + $0xb0] sm:$0xff]
        %v390 = vld [vmem:[%s313 + $0xb8] sm:$0xff]
        %v391 = vld [vmem:[%s313 + $0xc0] sm:$0xff]
        %v392 = vld [vmem:[%s313 + $0xc8] sm:$0xff]
        %v393 = vld [vmem:[%s313 + $0xd0] sm:$0xff]
        %v394 = vld [vmem:[%s313 + $0xd8] sm:$0xff]
        %v395 = vld [vmem:[%s313 + $0xe0] sm:$0xff]
        %v396 = vld [vmem:[%s313 + $0xe8] sm:$0xff]
        %v397 = vld [vmem:[%s313 + $0xf0] sm:$0xff]
        %v398 = vld [vmem:[%s313 + $0xf8] sm:$0xff]
        %v399 = vld [vmem:[%s313 + $0x100] sm:$0xff]
        %v400 = vld [vmem:[%s313 + $0x108] sm:$0xff]
        %v401 = vld [vmem:[%s313 + $0x110] sm:$0xff]
        %v402 = vld [vmem:[%s313 + $0x118] sm:$0xff]
        %v403 = vld [vmem:[%s313 + $0x120] sm:$0xff]
        %v404 = vld [vmem:[%s313 + $0x128] sm:$0xff]
        %v405 = vld [vmem:[%s313 + $0x130] sm:$0xff]
        %v406 = vld [vmem:[%s313 + $0x138] sm:$0xff]
        %v407 = vld [vmem:[%s313 + $0x140] sm:$0xff]
        %v408 = vld [vmem:[%s313 + $0x148] sm:$0xff]
        %v409 = vld [vmem:[%s313 + $0x150] sm:$0xff]
        %v410 = vld [vmem:[%s313 + $0x158] sm:$0xff]
        %v411 = vld [vmem:[%s313 + $0x160] sm:$0xff]
        %v412 = vld [vmem:[%s313 + $0x168] sm:$0xff]
        %v413 = vld [vmem:[%s313 + $0x170] sm:$0xff]
        %v414 = vld [vmem:[%s313 + $0x178] sm:$0xff]
        %v415 = vld [vmem:[%s313 + $0x180] sm:$0xff]
        %v416 = vld [vmem:[%s313 + $0x188] sm:$0xff]
        %v417 = vld [vmem:[%s313 + $0x190] sm:$0xff]
        %v418 = vld [vmem:[%s313 + $0x198] sm:$0xff]
        %v419 = vld [vmem:[%s313 + $0x1a0] sm:$0xff]
        %v420 = vld [vmem:[%s313 + $0x1a8] sm:$0xff]
        %v421 = vld [vmem:[%s313 + $0x1b0] sm:$0xff]
        %v422 = vld [vmem:[%s313 + $0x1b8] sm:$0xff]
        %v423 = vld [vmem:[%s313 + $0x1c0] sm:$0xff]
        %v424 = vld [vmem:[%s313 + $0x1c8] sm:$0xff]
        %v425 = vld [vmem:[%s313 + $0x1d0] sm:$0xff]
        %v426 = vld [vmem:[%s313 + $0x1d8] sm:$0xff]
        %v427 = vld [vmem:[%s313 + $0x1e0] sm:$0xff]
        %v428 = vld [vmem:[%s313 + $0x1e8] sm:$0xff]
        %v429 = vld [vmem:[%s313 + $0x1f0] sm:$0xff]
        %v430 = vld [vmem:[%s313 + $0x1f8] sm:$0xff]
        %431 = vmatprep.subr.mxu0 0.0
        %432 = vmatpush1.msra.mxu0 %v367
        %433 = vmatprep.subr.mxu0 0.0
        %434 = vmatpush1.msra.mxu0 %v368
        %435 = vmatprep.subr.mxu0 0.0
        %436 = vmatpush1.msra.mxu0 %v369
        %437 = vmatprep.subr.mxu0 0.0
        %438 = vmatpush1.msra.mxu0 %v370
        %439 = vmatprep.subr.mxu0 0.0
        %440 = vmatpush1.msra.mxu0 %v371
        %441 = vmatprep.subr.mxu0 0.0
        %442 = vmatpush1.msra.mxu0 %v372
        %443 = vmatprep.subr.mxu0 0.0
        %444 = vmatpush1.msra.mxu0 %v373
        %445 = vmatprep.subr.mxu0 0.0
        %446 = vmatpush1.msra.mxu0 %v374
        %447 = vmatprep.subr.mxu0 0.0
        %448 = vmatpush1.msra.mxu0 %v375
        %449 = vmatprep.subr.mxu0 0.0
        %450 = vmatpush1.msra.mxu0 %v376
        %451 = vmatprep.subr.mxu0 0.0
        %452 = vmatpush1.msra.mxu0 %v377
        %453 = vmatprep.subr.mxu0 0.0
        %454 = vmatpush1.msra.mxu0 %v378
        %455 = vmatprep.subr.mxu0 0.0
        %456 = vmatpush1.msra.mxu0 %v379
        %457 = vmatprep.subr.mxu0 0.0
        %458 = vmatpush1.msra.mxu0 %v380
        %459 = vmatprep.subr.mxu0 0.0
        %460 = vmatpush1.msra.mxu0 %v381
        %461 = vmatprep.subr.mxu0 0.0
        %462 = vmatpush1.msra.mxu0 %v382
        %463 = vmatprep.subr.mxu0 0.0
        %464 = vmatpush1.msra.mxu0 %v383
        %465 = vmatprep.subr.mxu0 0.0
        %466 = vmatpush1.msra.mxu0 %v384
        %467 = vmatprep.subr.mxu0 0.0
        %468 = vmatpush1.msra.mxu0 %v385
        %469 = vmatprep.subr.mxu0 0.0
        %470 = vmatpush1.msra.mxu0 %v386
        %471 = vmatprep.subr.mxu0 0.0
        %472 = vmatpush1.msra.mxu0 %v387
        %473 = vmatprep.subr.mxu0 0.0
        %474 = vmatpush1.msra.mxu0 %v388
        %475 = vmatprep.subr.mxu0 0.0
        %476 = vmatpush1.msra.mxu0 %v389
        %477 = vmatprep.subr.mxu0 0.0
        %478 = vmatpush1.msra.mxu0 %v390
        %479 = vmatprep.subr.mxu0 0.0
        %480 = vmatpush1.msra.mxu0 %v391
        %481 = vmatprep.subr.mxu0 0.0
        %482 = vmatpush1.msra.mxu0 %v392
        %483 = vmatprep.subr.mxu0 0.0
        %484 = vmatpush1.msra.mxu0 %v393
        %485 = vmatprep.subr.mxu0 0.0
        %486 = vmatpush1.msra.mxu0 %v394
        %487 = vmatprep.subr.mxu0 0.0
        %488 = vmatpush1.msra.mxu0 %v395
        %489 = vmatprep.subr.mxu0 0.0
        %490 = vmatpush1.msra.mxu0 %v396
        %491 = vmatprep.subr.mxu0 0.0
        %492 = vmatpush1.msra.mxu0 %v397
        %493 = vmatprep.subr.mxu0 0.0
        %494 = vmatpush1.msra.mxu0 %v398
        %495 = vmatprep.mubr.f32.mxu0 %v336
        %496 = vmatmul.mubr.f32.gmra.mrb[0].mxu0 %v335
        %v497 = vpop.f32.mrb[0].mxu0
        %v498 = vadd.f32 0.0, %v497
        %v499 = vpop.f32.mrb[0].mxu0
        %500 = vmatprep.mubr.f32.mxu0 %v340
        %501 = vmatmul.mubr.f32.gmra.mrb[0].mxu0 %v339
        %v502 = vpop.f32.mrb[0].mxu0
        %v503 = vadd.f32 0.0, %v502
        %v504 = vpop.f32.mrb[0].mxu0
        %505 = vmatprep.mubr.f32.mxu0 %v344
        %506 = vmatmul.mubr.f32.gmra.mrb[0].mxu0 %v343
        %v507 = vpop.f32.mrb[0].mxu0
        %v508 = vadd.f32 0.0, %v507
        %v509 = vpop.f32.mrb[0].mxu0
        %510 = vmatprep.mubr.f32.mxu0 %v348
        %511 = vmatmul.mubr.f32.gmra.mrb[0].mxu0 %v347
        %v512 = vpop.f32.mrb[0].mxu0
        %v513 = vadd.f32 0.0, %v512
        %v514 = vpop.f32.mrb[0].mxu0
        %515 = vmatprep.mubr.f32.mxu0 %v352
        %516 = vmatmul.mubr.f32.gmra.mrb[0].mxu0 %v351
        %v517 = vpop.f32.mrb[0].mxu0
        %v518 = vadd.f32 0.0, %v517
        %v519 = vpop.f32.mrb[0].mxu0
        %520 = vmatprep.mubr.f32.mxu0 %v356
        %521 = vmatmul.mubr.f32.gmra.mrb[0].mxu0 %v355
        %v522 = vpop.f32.mrb[0].mxu0
        %v523 = vadd.f32 0.0, %v522
        %v524 = vpop.f32.mrb[0].mxu0
        %525 = vmatprep.mubr.f32.mxu0 %v360
        %526 = vmatmul.mubr.f32.gmra.mrb[0].mxu0 %v359
        %v527 = vpop.f32.mrb[0].mxu0
        %v528 = vadd.f32 0.0, %v527
        %v529 = vpop.f32.mrb[0].mxu0
        %530 = vmatprep.mubr.f32.mxu0 %v364
        %531 = vmatmul.mubr.f32.gmra.mrb[0].mxu0 %v363
        %v532 = vpop.f32.mrb[0].mxu0
        %v533 = vadd.f32 0.0, %v532
        %v534 = vpop.f32.mrb[0].mxu0
        %535 = vdwg.mxu0
        %536 = vmatprep.subr.mxu0 0.0
        %537 = vmatpush1.msra.mxu0 %v399
        %538 = vmatprep.subr.mxu0 0.0
        %539 = vmatpush1.msra.mxu0 %v400
        %540 = vmatprep.subr.mxu0 0.0
        %541 = vmatpush1.msra.mxu0 %v401
        %542 = vmatprep.subr.mxu0 0.0
        %543 = vmatpush1.msra.mxu0 %v402
        %544 = vmatprep.subr.mxu0 0.0
        %545 = vmatpush1.msra.mxu0 %v403
        %546 = vmatprep.subr.mxu0 0.0
        %547 = vmatpush1.msra.mxu0 %v404
        %548 = vmatprep.subr.mxu0 0.0
        %549 = vmatpush1.msra.mxu0 %v405
        %550 = vmatprep.subr.mxu0 0.0
        %551 = vmatpush1.msra.mxu0 %v406
        %552 = vmatprep.subr.mxu0 0.0
        %553 = vmatpush1.msra.mxu0 %v407
        %554 = vmatprep.subr.mxu0 0.0
        %555 = vmatpush1.msra.mxu0 %v408
        %556 = vmatprep.subr.mxu0 0.0
        %557 = vmatpush1.msra.mxu0 %v409
        %558 = vmatprep.subr.mxu0 0.0
        %559 = vmatpush1.msra.mxu0 %v410
        %560 = vmatprep.subr.mxu0 0.0
        %561 = vmatpush1.msra.mxu0 %v411
        %562 = vmatprep.subr.mxu0 0.0
        %563 = vmatpush1.msra.mxu0 %v412
        %564 = vmatprep.subr.mxu0 0.0
        %565 = vmatpush1.msra.mxu0 %v413
        %566 = vmatprep.subr.mxu0 0.0
        %567 = vmatpush1.msra.mxu0 %v414
        %568 = vmatprep.subr.mxu0 0.0
        %569 = vmatpush1.msra.mxu0 %v415
        %570 = vmatprep.subr.mxu0 0.0
        %571 = vmatpush1.msra.mxu0 %v416
        %572 = vmatprep.subr.mxu0 0.0
        %573 = vmatpush1.msra.mxu0 %v417
        %574 = vmatprep.subr.mxu0 0.0
        %575 = vmatpush1.msra.mxu0 %v418
        %576 = vmatprep.subr.mxu0 0.0
        %577 = vmatpush1.msra.mxu0 %v419
        %578 = vmatprep.subr.mxu0 0.0
        %579 = vmatpush1.msra.mxu0 %v420
        %580 = vmatprep.subr.mxu0 0.0
        %581 = vmatpush1.msra.mxu0 %v421
        %582 = vmatprep.subr.mxu0 0.0
        %583 = vmatpush1.msra.mxu0 %v422
        %584 = vmatprep.subr.mxu0 0.0
        %585 = vmatpush1.msra.mxu0 %v423
        %586 = vmatprep.subr.mxu0 0.0
        %587 = vmatpush1.msra.mxu0 %v424
        %588 = vmatprep.subr.mxu0 0.0
        %589 = vmatpush1.msra.mxu0 %v425
        %590 = vmatprep.subr.mxu0 0.0
        %591 = vmatpush1.msra.mxu0 %v426
        %592 = vmatprep.subr.mxu0 0.0
        %593 = vmatpush1.msra.mxu0 %v427
        %594 = vmatprep.subr.mxu0 0.0
        %595 = vmatpush1.msra.mxu0 %v428
        %596 = vmatprep.subr.mxu0 0.0
        %597 = vmatpush1.msra.mxu0 %v429
        %598 = vmatprep.subr.mxu0 0.0
        %599 = vmatpush1.msra.mxu0 %v430
        %600 = vmatprep.mubr.f32.mxu0 %v338
        %601 = vmatmul.mubr.f32.gmra.mrb[0].mxu0 %v337
        %v602 = vpop.f32.mrb[0].mxu0
        %v603 = vadd.f32 %v498, %v602
        %v604 = vpop.f32.mrb[0].mxu0
        %605 = vmatprep.mubr.f32.mxu0 %v342
        %606 = vmatmul.mubr.f32.gmra.mrb[0].mxu0 %v341
        %v607 = vpop.f32.mrb[0].mxu0
        %v608 = vadd.f32 %v503, %v607
        %v609 = vpop.f32.mrb[0].mxu0
        %610 = vmatprep.mubr.f32.mxu0 %v346
        %611 = vmatmul.mubr.f32.gmra.mrb[0].mxu0 %v345
        %v612 = vpop.f32.mrb[0].mxu0
        %v613 = vadd.f32 %v508, %v612
        %v614 = vpop.f32.mrb[0].mxu0
        %615 = vmatprep.mubr.f32.mxu0 %v350
        %616 = vmatmul.mubr.f32.gmra.mrb[0].mxu0 %v349
        %v617 = vpop.f32.mrb[0].mxu0
        %v618 = vadd.f32 %v513, %v617
        %v619 = vpop.f32.mrb[0].mxu0
        %620 = vmatprep.mubr.f32.mxu0 %v354
        %621 = vmatmul.mubr.f32.gmra.mrb[0].mxu0 %v353
        %v622 = vpop.f32.mrb[0].mxu0
        %v623 = vadd.f32 %v518, %v622
        %v624 = vpop.f32.mrb[0].mxu0
        %625 = vmatprep.mubr.f32.mxu0 %v358
        %626 = vmatmul.mubr.f32.gmra.mrb[0].mxu0 %v357
        %v627 = vpop.f32.mrb[0].mxu0
        %v628 = vadd.f32 %v523, %v627
        %v629 = vpop.f32.mrb[0].mxu0
        %630 = vmatprep.mubr.f32.mxu0 %v362
        %631 = vmatmul.mubr.f32.gmra.mrb[0].mxu0 %v361
        %v632 = vpop.f32.mrb[0].mxu0
        %v633 = vadd.f32 %v528, %v632
        %v634 = vpop.f32.mrb[0].mxu0
        %635 = vmatprep.mubr.f32.mxu0 %v366
        %636 = vmatmul.mubr.f32.gmra.mrb[0].mxu0 %v365
        %v637 = vpop.f32.mrb[0].mxu0
        %v638 = vadd.f32 %v533, %v637
        %v639 = vpop.f32.mrb[0].mxu0
        %640 = vdwg.mxu0
        %v641 = vadd.f32 %v327, %v603
        %v642 = vadd.f32 %v328, %v608
        %v643 = vadd.f32 %v329, %v613
        %v644 = vadd.f32 %v330, %v618
        %v645 = vadd.f32 %v331, %v623
        %v646 = vadd.f32 %v332, %v628
        %v647 = vadd.f32 %v333, %v633
        %v648 = vadd.f32 %v334, %v638
        %649 = vst [vmem:[#allocation2] sm:$0xff] %v641
        %650 = vst [vmem:[#allocation2 + $0x8] sm:$0xff] %v642
        %651 = vst [vmem:[#allocation2 + $0x10] sm:$0xff] %v643
        %652 = vst [vmem:[#allocation2 + $0x18] sm:$0xff] %v644
        %653 = vst [vmem:[#allocation2 + $0x20] sm:$0xff] %v645
        %654 = vst [vmem:[#allocation2 + $0x28] sm:$0xff] %v646
        %655 = vst [vmem:[#allocation2 + $0x30] sm:$0xff] %v647
        %656 = vst [vmem:[#allocation2 + $0x38] sm:$0xff] %v648
        %p657 = scmp.eq.s32.totalorder %s16, 1
        // Predicated region
        $region68: #{discriminator_forward.5} parent=58 // pred_check
          %p658 = pneg %p657
        $region69: #{discriminator_forward.5} parent=58 // pred_check_branch
          %660 = sbr.rel (%p658) target = $region71
        $region70: #{discriminator_forward.5} parent=58 // pred_region
          %v661 = vld [vmem:[#allocation2] sm:$0xff]
          %v662 = vld [vmem:[#allocation2 + $0x8] sm:$0xff]
          %v663 = vld [vmem:[#allocation2 + $0x10] sm:$0xff]
          %v664 = vld [vmem:[#allocation2 + $0x18] sm:$0xff]
          %v665 = vld [vmem:[#allocation2 + $0x20] sm:$0xff]
          %v666 = vld [vmem:[#allocation2 + $0x28] sm:$0xff]
          %v667 = vld [vmem:[#allocation2 + $0x30] sm:$0xff]
          %v668 = vld [vmem:[#allocation2 + $0x38] sm:$0xff]
          %v669 = vld [vmem:[%s2] sm:$0x1]
          %v671 = vlaneseq
          %v672 = vshrl.u32 %v671, 7
          %v673 = vsub.s32 0, %v672
          %v674 = vrot.slane %v669, %v673
          %v676 = vadd.f32 %v661, %v674
          %v677 = vadd.f32 %v662, %v674
          %v678 = vadd.f32 %v663, %v674
          %v679 = vadd.f32 %v664, %v674
          %v680 = vadd.f32 %v665, %v674
          %v681 = vadd.f32 %v666, %v674
          %v682 = vadd.f32 %v667, %v674
          %v683 = vadd.f32 %v668, %v674
          %v684 = vadd.f32 %v676, %v677
          %v685 = vadd.f32 %v684, %v678
          %v686 = vadd.f32 %v685, %v679
          %v687 = vadd.f32 %v686, %v680
          %v688 = vadd.f32 %v687, %v681
          %v689 = vadd.f32 %v688, %v682
          %v690 = vadd.f32 %v689, %v683
          %v691 = vrot.slane %v690, 4
          %v692 = vadd.f32 %v690, %v691
          %v693 = vrot.slane %v692, 2
          %v694 = vadd.f32 %v692, %v693
          %v695 = vrot.slane %v694, 1
          %v696 = vadd.f32 %v694, %v695
          %v697 = vrcp.pop 64.0
          %v698 = vmul.f32 %v696, %v697
          %v699 = vmul.f32 %v676, %v676
          %v700 = vmul.f32 %v677, %v677
          %v701 = vmul.f32 %v678, %v678
          %v702 = vmul.f32 %v679, %v679
          %v703 = vmul.f32 %v680, %v680
          %v704 = vmul.f32 %v681, %v681
          %v705 = vmul.f32 %v682, %v682
          %v706 = vmul.f32 %v683, %v683
          %v707 = vadd.f32 %v699, %v700
          %v708 = vadd.f32 %v707, %v701
          %v709 = vadd.f32 %v708, %v702
          %v710 = vadd.f32 %v709, %v703
          %v711 = vadd.f32 %v710, %v704
          %v712 = vadd.f32 %v711, %v705
          %v713 = vadd.f32 %v712, %v706
          %v714 = vrot.slane %v713, 4
          %v715 = vadd.f32 %v713, %v714
          %v716 = vrot.slane %v715, 2
          %v717 = vadd.f32 %v715, %v716
          %v718 = vrot.slane %v717, 1
          %v719 = vadd.f32 %v717, %v718
          %v720 = vmul.f32 %v719, %v697
          %v721 = vmul.f32 %v698, %v698
          %v722 = vsub.f32 %v720, %v721
          %v723 = vmax.f32 %v722, 0.0
          %v724 = vadd.f32 %v723, 1e-05
          %v725 = vrsqrt.pop %v724
          %v726 = vsub.f32 %v676, %v698
          %v727 = vsub.f32 %v677, %v698
          %v728 = vsub.f32 %v678, %v698
          %v729 = vsub.f32 %v679, %v698
          %v730 = vsub.f32 %v680, %v698
          %v731 = vsub.f32 %v681, %v698
          %v732 = vsub.f32 %v682, %v698
          %v733 = vsub.f32 %v683, %v698
          %v734 = vmul.f32 %v726, %v725
          %v735 = vmul.f32 %v727, %v725
          %v736 = vmul.f32 %v728, %v725
          %v737 = vmul.f32 %v729, %v725
          %v738 = vmul.f32 %v730, %v725
          %v739 = vmul.f32 %v731, %v725
          %v740 = vmul.f32 %v732, %v725
          %v741 = vmul.f32 %v733, %v725
          %v742 = vld [vmem:[%s3] sm:$0x1]
          %v744 = vlaneseq
          %v745 = vshrl.u32 %v744, 7
          %v746 = vsub.s32 0, %v745
          %v747 = vrot.slane %v742, %v746
          %v749 = vmul.f32 %v734, %v747
          %v750 = vmul.f32 %v735, %v747
          %v751 = vmul.f32 %v736, %v747
          %v752 = vmul.f32 %v737, %v747
          %v753 = vmul.f32 %v738, %v747
          %v754 = vmul.f32 %v739, %v747
          %v755 = vmul.f32 %v740, %v747
          %v756 = vmul.f32 %v741, %v747
          %v757 = vld [vmem:[%s4] sm:$0x1]
          %v759 = vlaneseq
          %v760 = vshrl.u32 %v759, 7
          %v761 = vsub.s32 0, %v760
          %v762 = vrot.slane %v757, %v761
          %v764 = vadd.f32 %v749, %v762
          %v765 = vadd.f32 %v750, %v762
          %v766 = vadd.f32 %v751, %v762
          %v767 = vadd.f32 %v752, %v762
          %v768 = vadd.f32 %v753, %v762
          %v769 = vadd.f32 %v754, %v762
          %v770 = vadd.f32 %v755, %v762
          %v771 = vadd.f32 %v756, %v762
          %vm772 = vcmp.gt.f32.partialorder %v764, 0.0
          %vm773 = vcmp.gt.f32.partialorder %v765, 0.0
          %vm774 = vcmp.gt.f32.partialorder %v766, 0.0
          %vm775 = vcmp.gt.f32.partialorder %v767, 0.0
          %vm776 = vcmp.gt.f32.partialorder %v768, 0.0
          %vm777 = vcmp.gt.f32.partialorder %v769, 0.0
          %vm778 = vcmp.gt.f32.partialorder %v770, 0.0
          %vm779 = vcmp.gt.f32.partialorder %v771, 0.0
          %v780 = vmul.f32 %v764, 0.2
          %v781 = vmul.f32 %v765, 0.2
          %v782 = vmul.f32 %v766, 0.2
          %v783 = vmul.f32 %v767, 0.2
          %v784 = vmul.f32 %v768, 0.2
          %v785 = vmul.f32 %v769, 0.2
          %v786 = vmul.f32 %v770, 0.2
          %v787 = vmul.f32 %v771, 0.2
          %v788 = vsel %vm772, %v764, %v780
          %v789 = vsel %vm773, %v765, %v781
          %v790 = vsel %vm774, %v766, %v782
          %v791 = vsel %vm775, %v767, %v783
          %v792 = vsel %vm776, %v768, %v784
          %v793 = vsel %vm777, %v769, %v785
          %v794 = vsel %vm778, %v770, %v786
          %v795 = vsel %vm779, %v771, %v787
          %796 = vst [vmem:[%s5] sm:$0xff] %v788
          %797 = vst [vmem:[%s5 + $0x8] sm:$0xff] %v789
          %798 = vst [vmem:[%s5 + $0x10] sm:$0xff] %v790
          %799 = vst [vmem:[%s5 + $0x18] sm:$0xff] %v791
          %800 = vst [vmem:[%s5 + $0x20] sm:$0xff] %v792
          %801 = vst [vmem:[%s5 + $0x28] sm:$0xff] %v793
          %802 = vst [vmem:[%s5 + $0x30] sm:$0xff] %v794
          %803 = vst [vmem:[%s5 + $0x38] sm:$0xff] %v795
        $region71: #{discriminator_forward.5} parent=58 // pred_fallthru
          _
        // Predicated region
        $region72: #{discriminator_forward.5} parent=58 // pred_check
          %p804 = pneg %p144
        $region73: #{discriminator_forward.5} parent=58 // pred_check_branch
          %806 = sbr.rel (%p804) target = $region75
        $region74: #{discriminator_forward.5} parent=58 // pred_region
          _
        $region75: #{discriminator_forward.5} parent=58 // pred_fallthru
          _
        // Predicated region
        $region76: #{discriminator_forward.5} parent=58 // pred_check
          %p807 = pneg %p144
        $region77: #{discriminator_forward.5} parent=58 // pred_check_branch
          %809 = sbr.rel (%p807) target = $region79
        $region78: #{discriminator_forward.5} parent=58 // pred_region
          _
        $region79: #{discriminator_forward.5} parent=58 // pred_fallthru
          _
      $region59: #{discriminator_forward.5} parent=5 // pred_fallthru
        _
      %p810 = scmp.le.s32.totalorder 2, %s11
      // Predicated region
      $region80: #{discriminator_forward.5} parent=5 // pred_check
        %p811 = pneg %p810
      $region81: #{discriminator_forward.5} parent=5 // pred_check_branch
        %813 = sbr.rel (%p811) target = $region83
      $region82: #{discriminator_forward.5} parent=5 // pred_region
        %s814 = ssub.s32 %s11, 2
      $region83: #{discriminator_forward.5} parent=5 // pred_fallthru
        _
    $region6: #{discriminator_forward.5} parent=1 // loop_footer
      %s15 = sadd.s32 1, %s11
    $region7: #{discriminator_forward.5} parent=1 // loop_footer_branch
      %10 = sbr.rel target = $region3
    $region8: #{discriminator_forward.5} parent=1 // loop_exit
      _

</llo_original>
